<compile_context>
chip_gen: v6e
topology: v6e:2x2x1
jax: 0.10.0
libtpu: 0.0.40
codegen_flags: <defaults>
</compile_context>

<pallas_src>
import functools

import jax
import jax.numpy as jnp
from jax.experimental import pallas as pl
from jax.experimental.pallas import tpu as pltpu


def _round_up(n, m):
    return ((n + m - 1) // m) * m


def _make_temporal_net_kernel(S, Bp, Hp, L, compute_dtype):
    """Builds the fused multi-layer GRU kernel (runs once, no grid)."""

    def kernel(*refs):
        # refs layout:
        #   [0]                x_flat   (S*Bp, Dp0)        compute_dtype
        #   [1 .. 4L]          per layer: wih (Dl_p, 3Hp), whh (Hp, 3Hp),
        #                                 b3 (1, 3Hp) f32,  bhn (1, Hp) f32
        #   [1+4L]             out_flat (S*Bp, Hp)          f32   (output)
        #   [2+4L]             h_n      (L, Bp, Hp)         f32   (output)
        #   [3+4L]             gi scratch  (S*Bp, 3Hp)      compute_dtype
        #   [4+4L]             seq scratch (S*Bp, Hp)       compute_dtype
        x_ref = refs[0]
        layer_refs = refs[1:1 + 4 * L]
        out_ref = refs[1 + 4 * L]
        hN_ref = refs[2 + 4 * L]
        gi_ref = refs[3 + 4 * L]
        seq_ref = refs[4 + 4 * L]

        cur_in = x_ref[...]                              # (S*Bp, D_layer) compute_dtype

        for l in range(L):
            wih_ref, whh_ref, b3_ref, bhn_ref = layer_refs[4 * l:4 * l + 4]
            last = (l == L - 1)
            dst_ref = out_ref if last else seq_ref

            # ---- Hoisted, gate-fused input projection: a single lane-aligned
            #      (S*Bp, D) @ (D, 3Hp) MXU pass, biases pre-folded
            #      (b_ih + b_hh for r/z, b_ih only for n).
            gi_ref[...] = (
                jnp.dot(cur_in, wih_ref[...], preferred_element_type=jnp.float32)
                + b3_ref[...]
            ).astype(gi_ref.dtype)

            # Hoist recurrent weights / n-gate hidden bias out of the time loop.
            w_hh = whh_ref[...]                          # (Hp, 3Hp) compute_dtype
            b_hn = bhn_ref[...]                          # (1, Hp)   f32

            def step_at(rows, h):
                hc = h.astype(compute_dtype)
                # One fused (Bp, Hp) @ (Hp, 3Hp) recurrent matmul per step.
                gh = jnp.dot(hc, w_hh, preferred_element_type=jnp.float32)
                gi_t = gi_ref[rows].astype(jnp.float32)  # (Bp, 3Hp)
                r = jax.nn.sigmoid(gi_t[:, :Hp] + gh[:, :Hp])
                z = jax.nn.sigmoid(gi_t[:, Hp:2 * Hp] + gh[:, Hp:2 * Hp])
                n = jnp.tanh(gi_t[:, 2 * Hp:] + r * (gh[:, 2 * Hp:] + b_hn))
                h_new = (1.0 - z) * n + z * h
                dst_ref[rows] = h_new.astype(dst_ref.dtype)
                return h_new

            h0 = jnp.zeros((Bp, Hp), jnp.float32)
            if S <= 64:
                # Small static trip count: fully unroll at trace time
                # (static, tile-aligned sublane offsets).
                h = h0
                for t in range(S):
                    h = step_at(pl.ds(t * Bp, Bp), h)
            else:
                def body(t, h):
                    row0 = pl.multiple_of(t * Bp, Bp)
                    return step_at(pl.ds(row0, Bp), h)

                h = jax.lax.fori_loop(0, S, body, h0, unroll=4)

            hN_ref[l] = h

            if not last:
                # Next layer's input: this layer's full sequence output,
                # kept resident in VMEM (no HBM round trip between layers).
                cur_in = seq_ref[...]

    return kernel


def _pack_layer(w_ih, w_hh, b_ih, b_hh, H, Hp, Din, Dp, compute_dtype):
    """PyTorch GRU layer params -> gate-fused, zero-padded, bias-folded inputs."""
    w_ih = jnp.asarray(w_ih, jnp.float32).reshape(3, H, Din)
    w_hh = jnp.asarray(w_hh, jnp.float32).reshape(3, H, H)
    b_i = jnp.asarray(b_ih, jnp.float32).reshape(3, 1, H)
    b_h = jnp.asarray(b_hh, jnp.float32).reshape(3, 1, H)

    # Zero-pad hidden -> Hp lanes and input -> Dp (padded lanes stay exactly 0
    # through the recurrence since their weights and biases are 0).
    w_ih = jnp.pad(w_ih, ((0, 0), (0, Hp - H), (0, Dp - Din)))
    w_hh = jnp.pad(w_hh, ((0, 0), (0, Hp - H), (0, Hp - H)))
    b_i = jnp.pad(b_i, ((0, 0), (0, 0), (0, Hp - H)))
    b_h = jnp.pad(b_h, ((0, 0), (0, 0), (0, Hp - H)))

    # Gate-concatenate along N so GI / GH are single matmuls; gates are then
    # sliced at lane offsets 0 / Hp / 2Hp (free because Hp % 128 == 0).
    wih_cat = jnp.concatenate([w_ih[0].T, w_ih[1].T, w_ih[2].T], axis=1)  # (Dp, 3Hp)
    whh_cat = jnp.concatenate([w_hh[0].T, w_hh[1].T, w_hh[2].T], axis=1)  # (Hp, 3Hp)
    # r/z gates: fold b_ih + b_hh.  n gate: b_ih only (b_hh_n is scaled by r).
    b3 = jnp.concatenate([b_i[0] + b_h[0], b_i[1] + b_h[1], b_i[2]], axis=1)  # (1, 3Hp)
    bhn = b_h[2]                                                              # (1, Hp)
    return (wih_cat.astype(compute_dtype), whh_cat.astype(compute_dtype), b3, bhn)


@functools.partial(jax.jit, static_argnames=("compute_dtype",))
def temporal_net_forward(x, params, compute_dtype=jnp.float32):
    """Equivalent of TemporalNet.forward -> (output, h_n).

    x      : (S, B, in_dim)  float32
    params : list of (w_ih (3H,D), w_hh (3H,H), b_ih (3H,), b_hh (3H,)) per layer
    compute_dtype : dtype for matmul operands and the GI/seq scratch (f32 or
                    bf16); accumulation and the hidden state are always fp32.
    """
    S, B, D = x.shape
    L = len(params)
    H = params[0][1].shape[1]

    cbytes = jnp.dtype(compute_dtype).itemsize
    sublane = 8 if cbytes == 4 else 16
    Bp = max(_round_up(B, sublane), sublane)       # sublane-aligned batch
    Hp = max(_round_up(H, 128), 128)               # lane-aligned hidden
    Dp0 = max(_round_up(D, 128), 128)              # lane-aligned input dim

    x_p = jnp.pad(jnp.asarray(x, jnp.float32), ((0, 0), (0, Bp - B), (0, Dp0 - D)))
    flat_inputs = [x_p.reshape(S * Bp, Dp0).astype(compute_dtype)]
    din, dp = D, Dp0
    for (w_ih, w_hh, b_ih, b_hh) in params:
        flat_inputs.extend(
            _pack_layer(w_ih, w_hh, b_ih, b_hh, H, Hp, din, dp, compute_dtype))
        din, dp = H, Hp

    # ---- Size the scoped VMEM limit from the real resident footprint
    # (everything is single-buffered: no grid => weights/x load exactly once).
    total = S * Bp * Dp0 * cbytes                           # x
    dp = Dp0
    for _ in range(L):
        total += (dp * 3 * Hp + Hp * 3 * Hp) * cbytes       # weights
        total += (3 * Hp + Hp) * 4                          # biases (f32)
        dp = Hp
    total += S * Bp * Hp * 4 + L * Bp * Hp * 4              # outputs
    total += S * Bp * 3 * Hp * cbytes + S * Bp * Hp * cbytes  # gi + seq scratch
    vmem_limit = int(min(64 * 1024 * 1024,
                         max(2 * total + (1 << 20), 16 * 1024 * 1024)))

    kernel = _make_temporal_net_kernel(S, Bp, Hp, L, compute_dtype)
    vmem = pl.BlockSpec(memory_space=pltpu.MemorySpace.VMEM)

    out_flat, h_n = pl.pallas_call(
        kernel,
        out_shape=(jax.ShapeDtypeStruct((S * Bp, Hp), jnp.float32),
                   jax.ShapeDtypeStruct((L, Bp, Hp), jnp.float32)),
        in_specs=[vmem] * len(flat_inputs),
        out_specs=(vmem, vmem),
        scratch_shapes=[
            pltpu.VMEM((S * Bp, 3 * Hp), compute_dtype),   # hoisted fused GI
            pltpu.VMEM((S * Bp, Hp), compute_dtype),       # inter-layer activations
        ],
        compiler_params=pltpu.CompilerParams(vmem_limit_bytes=vmem_limit),
    )(*flat_inputs)

    # Strip batch / hidden padding before returning.
    out = out_flat.reshape(S, Bp, Hp)[:, :B, :H]
    h_n = h_n[:, :B, :H]
    return out, h_n


def init_gru_params(key, in_dim, hidden, layer_num):
    """Deterministic init mirroring PyTorch's U(-1/sqrt(H), 1/sqrt(H))."""
    params = []
    k = 1.0 / jnp.sqrt(hidden)
    for layer in range(layer_num):
        d = in_dim if layer == 0 else hidden
        key, k1, k2, k3, k4 = jax.random.split(key, 5)
        w_ih = jax.random.uniform(k1, (3 * hidden, d), jnp.float32, -k, k)
        w_hh = jax.random.uniform(k2, (3 * hidden, hidden), jnp.float32, -k, k)
        b_ih = jax.random.uniform(k3, (3 * hidden,), jnp.float32, -k, k)
        b_hh = jax.random.uniform(k4, (3 * hidden,), jnp.float32, -k, k)
        params.append((w_ih, w_hh, b_ih, b_hh))
    return params


def gru_reference(x, params):
    """Pure-JAX reference (lax.scan, fp32) for correctness check."""
    def layer(x, w_ih, w_hh, b_ih, b_hh):
        H = w_hh.shape[1]

        def step(h, xt):
            gi = xt @ w_ih.T + b_ih
            gh = h @ w_hh.T + b_hh
            r = jax.nn.sigmoid(gi[:, :H] + gh[:, :H])
            z = jax.nn.sigmoid(gi[:, H:2 * H] + gh[:, H:2 * H])
            n = jnp.tanh(gi[:, 2 * H:] + r * gh[:, 2 * H:])
            h_new = (1.0 - z) * n + z * h
            return h_new, h_new

        h0 = jnp.zeros((x.shape[1], H), jnp.float32)
        h_last, ys = jax.lax.scan(step, h0, x)
        return ys, h_last

    out = x
    hs = []
    for (w_ih, w_hh, b_ih, b_hh) in params:
        out, h_last = layer(out, w_ih, w_hh, b_ih, b_hh)
        hs.append(h_last)
    return out, jnp.stack(hs, axis=0)


if __name__ == "__main__":
    in_dim, out_dim, layer_num = 16, 32, 2
    seq_len, batch = 8, 4

    key = jax.random.PRNGKey(0)
    key, xkey = jax.random.split(key)
    x = jax.random.normal(xkey, (seq_len, batch, in_dim), jnp.float32)
    params = init_gru_params(key, in_dim, out_dim, layer_num)

    ref_out, ref_h = gru_reference(x, params)

    # fp32 MXU operands: tight check against the pure-JAX reference.
    out, h_n = temporal_net_forward(x, params, compute_dtype=jnp.float32)
    out = jax.block_until_ready(out)
    h_n = jax.block_until_ready(h_n)
    assert out.shape == (seq_len, batch, out_dim)
    assert h_n.shape == (layer_num, batch, out_dim)
    assert jnp.allclose(out, ref_out, atol=1e-5, rtol=1e-5)
    assert jnp.allclose(h_n, ref_h, atol=1e-5, rtol=1e-5)

    # bf16 MXU operands + bf16 GI/seq scratch (native MXU path, fp32
    # accumulation / fp32 hidden state): loose tolerance vs the fp32 reference.
    out_bf, h_bf = temporal_net_forward(x, params, compute_dtype=jnp.bfloat16)
    out_bf = jax.block_until_ready(out_bf)
    h_bf = jax.block_until_ready(h_bf)
    assert out_bf.shape == (seq_len, batch, out_dim)
    assert h_bf.shape == (layer_num, batch, out_dim)
    assert jnp.allclose(out_bf, ref_out, atol=1e-1, rtol=1e-1)
    assert jnp.allclose(h_bf, ref_h, atol=1e-1, rtol=1e-1)

    print("KERNEL_OK")
</pallas_src>

<mosaic_0001>
module attributes {stable_mosaic.version = 11 : i64} {
  func.func @kernel(%arg0: memref<64x128xf32, #tpu.memory_space<vmem>>, %arg1: memref<128x384xf32, #tpu.memory_space<vmem>>, %arg2: memref<128x384xf32, #tpu.memory_space<vmem>>, %arg3: memref<1x384xf32, #tpu.memory_space<vmem>>, %arg4: memref<1x128xf32, #tpu.memory_space<vmem>>, %arg5: memref<128x384xf32, #tpu.memory_space<vmem>>, %arg6: memref<128x384xf32, #tpu.memory_space<vmem>>, %arg7: memref<1x384xf32, #tpu.memory_space<vmem>>, %arg8: memref<1x128xf32, #tpu.memory_space<vmem>>, %arg9: memref<64x128xf32, #tpu.memory_space<vmem>>, %arg10: memref<2x8x128xf32, #tpu.memory_space<vmem>>, %arg11: memref<64x384xf32, #tpu.memory_space<vmem>>, %arg12: memref<64x128xf32, #tpu.memory_space<vmem>>) attributes {dimension_semantics = [], scalar_prefetch = 0 : i64, scratch_operands = 2 : i64, tpu.core_type = #tpu.core_type<tc>} {
    %c0 = arith.constant 0 : index
    %c0_0 = arith.constant 0 : index
    %0 = vector.load %arg0[%c0, %c0_0] : memref<64x128xf32, #tpu.memory_space<vmem>>, vector<64x128xf32>
    %c0_1 = arith.constant 0 : index
    %c0_2 = arith.constant 0 : index
    %1 = vector.load %arg1[%c0_1, %c0_2] : memref<128x384xf32, #tpu.memory_space<vmem>>, vector<128x384xf32>
    %cst = arith.constant dense<0.000000e+00> : vector<64x384xf32>
    %2 = tpu.matmul %0, %1, %cst {dimension_numbers = #tpu.dot_dimension_numbers<[1], [0], [0], [1], [0, 0, 1, 1], [], []>} : vector<64x128xf32>, vector<128x384xf32>, vector<64x384xf32> -> vector<64x384xf32>
    %c0_3 = arith.constant 0 : index
    %c0_4 = arith.constant 0 : index
    %3 = vector.load %arg3[%c0_3, %c0_4] : memref<1x384xf32, #tpu.memory_space<vmem>>, vector<1x384xf32>
    %4 = vector.broadcast %3 : vector<1x384xf32> to vector<64x384xf32>
    %5 = arith.addf %2, %4 : vector<64x384xf32>
    %c0_5 = arith.constant 0 : index
    %c0_6 = arith.constant 0 : index
    %6 = vector.load %arg11[%c0_5, %c0_6] : memref<64x384xf32, #tpu.memory_space<vmem>>, vector<64x384xf32>
    tpu.vector_store %arg11[%c0_5, %c0_6], %5 {strides = array<i32>} : memref<64x384xf32, #tpu.memory_space<vmem>>, vector<64x384xf32>,
    %c0_7 = arith.constant 0 : index
    %c0_8 = arith.constant 0 : index
    %7 = vector.load %arg2[%c0_7, %c0_8] : memref<128x384xf32, #tpu.memory_space<vmem>>, vector<128x384xf32>
    %c0_9 = arith.constant 0 : index
    %c0_10 = arith.constant 0 : index
    %8 = vector.load %arg4[%c0_9, %c0_10] : memref<1x128xf32, #tpu.memory_space<vmem>>, vector<1x128xf32>
    %cst_11 = arith.constant 0.000000e+00 : f32
    %9 = vector.broadcast %cst_11 : f32 to vector<8x128xf32>
    %cst_12 = arith.constant dense<0.000000e+00> : vector<8x384xf32>
    %10 = tpu.matmul %9, %7, %cst_12 {dimension_numbers = #tpu.dot_dimension_numbers<[1], [0], [0], [1], [0, 0, 1, 1], [], []>} : vector<8x128xf32>, vector<128x384xf32>, vector<8x384xf32> -> vector<8x384xf32>
    %c0_13 = arith.constant 0 : index
    %c0_14 = arith.constant 0 : index
    %11 = vector.load %arg11[%c0_13, %c0_14] : memref<64x384xf32, #tpu.memory_space<vmem>>, vector<8x384xf32>
    %12 = vector.extract_strided_slice %11 {offsets = [0, 0], sizes = [8, 128], strides = [1, 1]} : vector<8x384xf32> to vector<8x128xf32>
    %13 = vector.extract_strided_slice %10 {offsets = [0, 0], sizes = [8, 128], strides = [1, 1]} : vector<8x384xf32> to vector<8x128xf32>
    %14 = arith.addf %12, %13 : vector<8x128xf32>
    %15 = arith.negf %14 : vector<8x128xf32>
    %16 = math.exp %15 : vector<8x128xf32>
    %cst_15 = arith.constant 1.000000e+00 : f32
    %17 = vector.broadcast %cst_15 : f32 to vector<8x128xf32>
    %18 = arith.addf %17, %16 : vector<8x128xf32>
    %19 = arith.divf %17, %18 : vector<8x128xf32>
    %20 = vector.extract_strided_slice %11 {offsets = [0, 128], sizes = [8, 128], strides = [1, 1]} : vector<8x384xf32> to vector<8x128xf32>
    %21 = vector.extract_strided_slice %10 {offsets = [0, 128], sizes = [8, 128], strides = [1, 1]} : vector<8x384xf32> to vector<8x128xf32>
    %22 = arith.addf %20, %21 : vector<8x128xf32>
    %23 = arith.negf %22 : vector<8x128xf32>
    %24 = math.exp %23 : vector<8x128xf32>
    %cst_16 = arith.constant 1.000000e+00 : f32
    %25 = vector.broadcast %cst_16 : f32 to vector<8x128xf32>
    %26 = arith.addf %25, %24 : vector<8x128xf32>
    %27 = arith.divf %25, %26 : vector<8x128xf32>
    %28 = vector.extract_strided_slice %11 {offsets = [0, 256], sizes = [8, 128], strides = [1, 1]} : vector<8x384xf32> to vector<8x128xf32>
    %29 = vector.extract_strided_slice %10 {offsets = [0, 256], sizes = [8, 128], strides = [1, 1]} : vector<8x384xf32> to vector<8x128xf32>
    %30 = vector.broadcast %8 : vector<1x128xf32> to vector<8x128xf32>
    %31 = arith.addf %29, %30 : vector<8x128xf32>
    %32 = arith.mulf %19, %31 : vector<8x128xf32>
    %33 = arith.addf %28, %32 : vector<8x128xf32>
    %34 = math.tanh %33 : vector<8x128xf32>
    %cst_17 = arith.constant 1.000000e+00 : f32
    %35 = vector.broadcast %cst_17 : f32 to vector<8x128xf32>
    %36 = arith.subf %35, %27 : vector<8x128xf32>
    %37 = arith.mulf %36, %34 : vector<8x128xf32>
    %38 = arith.mulf %27, %9 : vector<8x128xf32>
    %39 = arith.addf %37, %38 : vector<8x128xf32>
    %c0_18 = arith.constant 0 : index
    %c0_19 = arith.constant 0 : index
    %40 = vector.load %arg12[%c0_18, %c0_19] : memref<64x128xf32, #tpu.memory_space<vmem>>, vector<8x128xf32>
    tpu.vector_store %arg12[%c0_18, %c0_19], %39 {strides = array<i32>} : memref<64x128xf32, #tpu.memory_space<vmem>>, vector<8x128xf32>,
    %cst_20 = arith.constant dense<0.000000e+00> : vector<8x384xf32>
    %41 = tpu.matmul %39, %7, %cst_20 {dimension_numbers = #tpu.dot_dimension_numbers<[1], [0], [0], [1], [0, 0, 1, 1], [], []>} : vector<8x128xf32>, vector<128x384xf32>, vector<8x384xf32> -> vector<8x384xf32>
    %c8 = arith.constant 8 : index
    %c0_21 = arith.constant 0 : index
    %42 = vector.load %arg11[%c8, %c0_21] : memref<64x384xf32, #tpu.memory_space<vmem>>, vector<8x384xf32>
    %43 = vector.extract_strided_slice %42 {offsets = [0, 0], sizes = [8, 128], strides = [1, 1]} : vector<8x384xf32> to vector<8x128xf32>
    %44 = vector.extract_strided_slice %41 {offsets = [0, 0], sizes = [8, 128], strides = [1, 1]} : vector<8x384xf32> to vector<8x128xf32>
    %45 = arith.addf %43, %44 : vector<8x128xf32>
    %46 = arith.negf %45 : vector<8x128xf32>
    %47 = math.exp %46 : vector<8x128xf32>
    %cst_22 = arith.constant 1.000000e+00 : f32
    %48 = vector.broadcast %cst_22 : f32 to vector<8x128xf32>
    %49 = arith.addf %48, %47 : vector<8x128xf32>
    %50 = arith.divf %48, %49 : vector<8x128xf32>
    %51 = vector.extract_strided_slice %42 {offsets = [0, 128], sizes = [8, 128], strides = [1, 1]} : vector<8x384xf32> to vector<8x128xf32>
    %52 = vector.extract_strided_slice %41 {offsets = [0, 128], sizes = [8, 128], strides = [1, 1]} : vector<8x384xf32> to vector<8x128xf32>
    %53 = arith.addf %51, %52 : vector<8x128xf32>
    %54 = arith.negf %53 : vector<8x128xf32>
    %55 = math.exp %54 : vector<8x128xf32>
    %cst_23 = arith.constant 1.000000e+00 : f32
    %56 = vector.broadcast %cst_23 : f32 to vector<8x128xf32>
    %57 = arith.addf %56, %55 : vector<8x128xf32>
    %58 = arith.divf %56, %57 : vector<8x128xf32>
    %59 = vector.extract_strided_slice %42 {offsets = [0, 256], sizes = [8, 128], strides = [1, 1]} : vector<8x384xf32> to vector<8x128xf32>
    %60 = vector.extract_strided_slice %41 {offsets = [0, 256], sizes = [8, 128], strides = [1, 1]} : vector<8x384xf32> to vector<8x128xf32>
    %61 = vector.broadcast %8 : vector<1x128xf32> to vector<8x128xf32>
    %62 = arith.addf %60, %61 : vector<8x128xf32>
    %63 = arith.mulf %50, %62 : vector<8x128xf32>
    %64 = arith.addf %59, %63 : vector<8x128xf32>
    %65 = math.tanh %64 : vector<8x128xf32>
    %cst_24 = arith.constant 1.000000e+00 : f32
    %66 = vector.broadcast %cst_24 : f32 to vector<8x128xf32>
    %67 = arith.subf %66, %58 : vector<8x128xf32>
    %68 = arith.mulf %67, %65 : vector<8x128xf32>
    %69 = arith.mulf %58, %39 : vector<8x128xf32>
    %70 = arith.addf %68, %69 : vector<8x128xf32>
    %c8_25 = arith.constant 8 : index
    %c0_26 = arith.constant 0 : index
    %71 = vector.load %arg12[%c8_25, %c0_26] : memref<64x128xf32, #tpu.memory_space<vmem>>, vector<8x128xf32>
    tpu.vector_store %arg12[%c8_25, %c0_26], %70 {strides = array<i32>} : memref<64x128xf32, #tpu.memory_space<vmem>>, vector<8x128xf32>,
    %cst_27 = arith.constant dense<0.000000e+00> : vector<8x384xf32>
    %72 = tpu.matmul %70, %7, %cst_27 {dimension_numbers = #tpu.dot_dimension_numbers<[1], [0], [0], [1], [0, 0, 1, 1], [], []>} : vector<8x128xf32>, vector<128x384xf32>, vector<8x384xf32> -> vector<8x384xf32>
    %c16 = arith.constant 16 : index
    %c0_28 = arith.constant 0 : index
    %73 = vector.load %arg11[%c16, %c0_28] : memref<64x384xf32, #tpu.memory_space<vmem>>, vector<8x384xf32>
    %74 = vector.extract_strided_slice %73 {offsets = [0, 0], sizes = [8, 128], strides = [1, 1]} : vector<8x384xf32> to vector<8x128xf32>
    %75 = vector.extract_strided_slice %72 {offsets = [0, 0], sizes = [8, 128], strides = [1, 1]} : vector<8x384xf32> to vector<8x128xf32>
    %76 = arith.addf %74, %75 : vector<8x128xf32>
    %77 = arith.negf %76 : vector<8x128xf32>
    %78 = math.exp %77 : vector<8x128xf32>
    %cst_29 = arith.constant 1.000000e+00 : f32
    %79 = vector.broadcast %cst_29 : f32 to vector<8x128xf32>
    %80 = arith.addf %79, %78 : vector<8x128xf32>
    %81 = arith.divf %79, %80 : vector<8x128xf32>
    %82 = vector.extract_strided_slice %73 {offsets = [0, 128], sizes = [8, 128], strides = [1, 1]} : vector<8x384xf32> to vector<8x128xf32>
    %83 = vector.extract_strided_slice %72 {offsets = [0, 128], sizes = [8, 128], strides = [1, 1]} : vector<8x384xf32> to vector<8x128xf32>
    %84 = arith.addf %82, %83 : vector<8x128xf32>
    %85 = arith.negf %84 : vector<8x128xf32>
    %86 = math.exp %85 : vector<8x128xf32>
    %cst_30 = arith.constant 1.000000e+00 : f32
    %87 = vector.broadcast %cst_30 : f32 to vector<8x128xf32>
    %88 = arith.addf %87, %86 : vector<8x128xf32>
    %89 = arith.divf %87, %88 : vector<8x128xf32>
    %90 = vector.extract_strided_slice %73 {offsets = [0, 256], sizes = [8, 128], strides = [1, 1]} : vector<8x384xf32> to vector<8x128xf32>
    %91 = vector.extract_strided_slice %72 {offsets = [0, 256], sizes = [8, 128], strides = [1, 1]} : vector<8x384xf32> to vector<8x128xf32>
    %92 = vector.broadcast %8 : vector<1x128xf32> to vector<8x128xf32>
    %93 = arith.addf %91, %92 : vector<8x128xf32>
    %94 = arith.mulf %81, %93 : vector<8x128xf32>
    %95 = arith.addf %90, %94 : vector<8x128xf32>
    %96 = math.tanh %95 : vector<8x128xf32>
    %cst_31 = arith.constant 1.000000e+00 : f32
    %97 = vector.broadcast %cst_31 : f32 to vector<8x128xf32>
    %98 = arith.subf %97, %89 : vector<8x128xf32>
    %99 = arith.mulf %98, %96 : vector<8x128xf32>
    %100 = arith.mulf %89, %70 : vector<8x128xf32>
    %101 = arith.addf %99, %100 : vector<8x128xf32>
    %c16_32 = arith.constant 16 : index
    %c0_33 = arith.constant 0 : index
    %102 = vector.load %arg12[%c16_32, %c0_33] : memref<64x128xf32, #tpu.memory_space<vmem>>, vector<8x128xf32>
    tpu.vector_store %arg12[%c16_32, %c0_33], %101 {strides = array<i32>} : memref<64x128xf32, #tpu.memory_space<vmem>>, vector<8x128xf32>,
    %cst_34 = arith.constant dense<0.000000e+00> : vector<8x384xf32>
    %103 = tpu.matmul %101, %7, %cst_34 {dimension_numbers = #tpu.dot_dimension_numbers<[1], [0], [0], [1], [0, 0, 1, 1], [], []>} : vector<8x128xf32>, vector<128x384xf32>, vector<8x384xf32> -> vector<8x384xf32>
    %c24 = arith.constant 24 : index
    %c0_35 = arith.constant 0 : index
    %104 = vector.load %arg11[%c24, %c0_35] : memref<64x384xf32, #tpu.memory_space<vmem>>, vector<8x384xf32>
    %105 = vector.extract_strided_slice %104 {offsets = [0, 0], sizes = [8, 128], strides = [1, 1]} : vector<8x384xf32> to vector<8x128xf32>
    %106 = vector.extract_strided_slice %103 {offsets = [0, 0], sizes = [8, 128], strides = [1, 1]} : vector<8x384xf32> to vector<8x128xf32>
    %107 = arith.addf %105, %106 : vector<8x128xf32>
    %108 = arith.negf %107 : vector<8x128xf32>
    %109 = math.exp %108 : vector<8x128xf32>
    %cst_36 = arith.constant 1.000000e+00 : f32
    %110 = vector.broadcast %cst_36 : f32 to vector<8x128xf32>
    %111 = arith.addf %110, %109 : vector<8x128xf32>
    %112 = arith.divf %110, %111 : vector<8x128xf32>
    %113 = vector.extract_strided_slice %104 {offsets = [0, 128], sizes = [8, 128], strides = [1, 1]} : vector<8x384xf32> to vector<8x128xf32>
    %114 = vector.extract_strided_slice %103 {offsets = [0, 128], sizes = [8, 128], strides = [1, 1]} : vector<8x384xf32> to vector<8x128xf32>
    %115 = arith.addf %113, %114 : vector<8x128xf32>
    %116 = arith.negf %115 : vector<8x128xf32>
    %117 = math.exp %116 : vector<8x128xf32>
    %cst_37 = arith.constant 1.000000e+00 : f32
    %118 = vector.broadcast %cst_37 : f32 to vector<8x128xf32>
    %119 = arith.addf %118, %117 : vector<8x128xf32>
    %120 = arith.divf %118, %119 : vector<8x128xf32>
    %121 = vector.extract_strided_slice %104 {offsets = [0, 256], sizes = [8, 128], strides = [1, 1]} : vector<8x384xf32> to vector<8x128xf32>
    %122 = vector.extract_strided_slice %103 {offsets = [0, 256], sizes = [8, 128], strides = [1, 1]} : vector<8x384xf32> to vector<8x128xf32>
    %123 = vector.broadcast %8 : vector<1x128xf32> to vector<8x128xf32>
    %124 = arith.addf %122, %123 : vector<8x128xf32>
    %125 = arith.mulf %112, %124 : vector<8x128xf32>
    %126 = arith.addf %121, %125 : vector<8x128xf32>
    %127 = math.tanh %126 : vector<8x128xf32>
    %cst_38 = arith.constant 1.000000e+00 : f32
    %128 = vector.broadcast %cst_38 : f32 to vector<8x128xf32>
    %129 = arith.subf %128, %120 : vector<8x128xf32>
    %130 = arith.mulf %129, %127 : vector<8x128xf32>
    %131 = arith.mulf %120, %101 : vector<8x128xf32>
    %132 = arith.addf %130, %131 : vector<8x128xf32>
    %c24_39 = arith.constant 24 : index
    %c0_40 = arith.constant 0 : index
    %133 = vector.load %arg12[%c24_39, %c0_40] : memref<64x128xf32, #tpu.memory_space<vmem>>, vector<8x128xf32>
    tpu.vector_store %arg12[%c24_39, %c0_40], %132 {strides = array<i32>} : memref<64x128xf32, #tpu.memory_space<vmem>>, vector<8x128xf32>,
    %cst_41 = arith.constant dense<0.000000e+00> : vector<8x384xf32>
    %134 = tpu.matmul %132, %7, %cst_41 {dimension_numbers = #tpu.dot_dimension_numbers<[1], [0], [0], [1], [0, 0, 1, 1], [], []>} : vector<8x128xf32>, vector<128x384xf32>, vector<8x384xf32> -> vector<8x384xf32>
    %c32 = arith.constant 32 : index
    %c0_42 = arith.constant 0 : index
    %135 = vector.load %arg11[%c32, %c0_42] : memref<64x384xf32, #tpu.memory_space<vmem>>, vector<8x384xf32>
    %136 = vector.extract_strided_slice %135 {offsets = [0, 0], sizes = [8, 128], strides = [1, 1]} : vector<8x384xf32> to vector<8x128xf32>
    %137 = vector.extract_strided_slice %134 {offsets = [0, 0], sizes = [8, 128], strides = [1, 1]} : vector<8x384xf32> to vector<8x128xf32>
    %138 = arith.addf %136, %137 : vector<8x128xf32>
    %139 = arith.negf %138 : vector<8x128xf32>
    %140 = math.exp %139 : vector<8x128xf32>
    %cst_43 = arith.constant 1.000000e+00 : f32
    %141 = vector.broadcast %cst_43 : f32 to vector<8x128xf32>
    %142 = arith.addf %141, %140 : vector<8x128xf32>
    %143 = arith.divf %141, %142 : vector<8x128xf32>
    %144 = vector.extract_strided_slice %135 {offsets = [0, 128], sizes = [8, 128], strides = [1, 1]} : vector<8x384xf32> to vector<8x128xf32>
    %145 = vector.extract_strided_slice %134 {offsets = [0, 128], sizes = [8, 128], strides = [1, 1]} : vector<8x384xf32> to vector<8x128xf32>
    %146 = arith.addf %144, %145 : vector<8x128xf32>
    %147 = arith.negf %146 : vector<8x128xf32>
    %148 = math.exp %147 : vector<8x128xf32>
    %cst_44 = arith.constant 1.000000e+00 : f32
    %149 = vector.broadcast %cst_44 : f32 to vector<8x128xf32>
    %150 = arith.addf %149, %148 : vector<8x128xf32>
    %151 = arith.divf %149, %150 : vector<8x128xf32>
    %152 = vector.extract_strided_slice %135 {offsets = [0, 256], sizes = [8, 128], strides = [1, 1]} : vector<8x384xf32> to vector<8x128xf32>
    %153 = vector.extract_strided_slice %134 {offsets = [0, 256], sizes = [8, 128], strides = [1, 1]} : vector<8x384xf32> to vector<8x128xf32>
    %154 = vector.broadcast %8 : vector<1x128xf32> to vector<8x128xf32>
    %155 = arith.addf %153, %154 : vector<8x128xf32>
    %156 = arith.mulf %143, %155 : vector<8x128xf32>
    %157 = arith.addf %152, %156 : vector<8x128xf32>
    %158 = math.tanh %157 : vector<8x128xf32>
    %cst_45 = arith.constant 1.000000e+00 : f32
    %159 = vector.broadcast %cst_45 : f32 to vector<8x128xf32>
    %160 = arith.subf %159, %151 : vector<8x128xf32>
    %161 = arith.mulf %160, %158 : vector<8x128xf32>
    %162 = arith.mulf %151, %132 : vector<8x128xf32>
    %163 = arith.addf %161, %162 : vector<8x128xf32>
    %c32_46 = arith.constant 32 : index
    %c0_47 = arith.constant 0 : index
    %164 = vector.load %arg12[%c32_46, %c0_47] : memref<64x128xf32, #tpu.memory_space<vmem>>, vector<8x128xf32>
    tpu.vector_store %arg12[%c32_46, %c0_47], %163 {strides = array<i32>} : memref<64x128xf32, #tpu.memory_space<vmem>>, vector<8x128xf32>,
    %cst_48 = arith.constant dense<0.000000e+00> : vector<8x384xf32>
    %165 = tpu.matmul %163, %7, %cst_48 {dimension_numbers = #tpu.dot_dimension_numbers<[1], [0], [0], [1], [0, 0, 1, 1], [], []>} : vector<8x128xf32>, vector<128x384xf32>, vector<8x384xf32> -> vector<8x384xf32>
    %c40 = arith.constant 40 : index
    %c0_49 = arith.constant 0 : index
    %166 = vector.load %arg11[%c40, %c0_49] : memref<64x384xf32, #tpu.memory_space<vmem>>, vector<8x384xf32>
    %167 = vector.extract_strided_slice %166 {offsets = [0, 0], sizes = [8, 128], strides = [1, 1]} : vector<8x384xf32> to vector<8x128xf32>
    %168 = vector.extract_strided_slice %165 {offsets = [0, 0], sizes = [8, 128], strides = [1, 1]} : vector<8x384xf32> to vector<8x128xf32>
    %169 = arith.addf %167, %168 : vector<8x128xf32>
    %170 = arith.negf %169 : vector<8x128xf32>
    %171 = math.exp %170 : vector<8x128xf32>
    %cst_50 = arith.constant 1.000000e+00 : f32
    %172 = vector.broadcast %cst_50 : f32 to vector<8x128xf32>
    %173 = arith.addf %172, %171 : vector<8x128xf32>
    %174 = arith.divf %172, %173 : vector<8x128xf32>
    %175 = vector.extract_strided_slice %166 {offsets = [0, 128], sizes = [8, 128], strides = [1, 1]} : vector<8x384xf32> to vector<8x128xf32>
    %176 = vector.extract_strided_slice %165 {offsets = [0, 128], sizes = [8, 128], strides = [1, 1]} : vector<8x384xf32> to vector<8x128xf32>
    %177 = arith.addf %175, %176 : vector<8x128xf32>
    %178 = arith.negf %177 : vector<8x128xf32>
    %179 = math.exp %178 : vector<8x128xf32>
    %cst_51 = arith.constant 1.000000e+00 : f32
    %180 = vector.broadcast %cst_51 : f32 to vector<8x128xf32>
    %181 = arith.addf %180, %179 : vector<8x128xf32>
    %182 = arith.divf %180, %181 : vector<8x128xf32>
    %183 = vector.extract_strided_slice %166 {offsets = [0, 256], sizes = [8, 128], strides = [1, 1]} : vector<8x384xf32> to vector<8x128xf32>
    %184 = vector.extract_strided_slice %165 {offsets = [0, 256], sizes = [8, 128], strides = [1, 1]} : vector<8x384xf32> to vector<8x128xf32>
    %185 = vector.broadcast %8 : vector<1x128xf32> to vector<8x128xf32>
    %186 = arith.addf %184, %185 : vector<8x128xf32>
    %187 = arith.mulf %174, %186 : vector<8x128xf32>
    %188 = arith.addf %183, %187 : vector<8x128xf32>
    %189 = math.tanh %188 : vector<8x128xf32>
    %cst_52 = arith.constant 1.000000e+00 : f32
    %190 = vector.broadcast %cst_52 : f32 to vector<8x128xf32>
    %191 = arith.subf %190, %182 : vector<8x128xf32>
    %192 = arith.mulf %191, %189 : vector<8x128xf32>
    %193 = arith.mulf %182, %163 : vector<8x128xf32>
    %194 = arith.addf %192, %193 : vector<8x128xf32>
    %c40_53 = arith.constant 40 : index
    %c0_54 = arith.constant 0 : index
    %195 = vector.load %arg12[%c40_53, %c0_54] : memref<64x128xf32, #tpu.memory_space<vmem>>, vector<8x128xf32>
    tpu.vector_store %arg12[%c40_53, %c0_54], %194 {strides = array<i32>} : memref<64x128xf32, #tpu.memory_space<vmem>>, vector<8x128xf32>,
    %cst_55 = arith.constant dense<0.000000e+00> : vector<8x384xf32>
    %196 = tpu.matmul %194, %7, %cst_55 {dimension_numbers = #tpu.dot_dimension_numbers<[1], [0], [0], [1], [0, 0, 1, 1], [], []>} : vector<8x128xf32>, vector<128x384xf32>, vector<8x384xf32> -> vector<8x384xf32>
    %c48 = arith.constant 48 : index
    %c0_56 = arith.constant 0 : index
    %197 = vector.load %arg11[%c48, %c0_56] : memref<64x384xf32, #tpu.memory_space<vmem>>, vector<8x384xf32>
    %198 = vector.extract_strided_slice %197 {offsets = [0, 0], sizes = [8, 128], strides = [1, 1]} : vector<8x384xf32> to vector<8x128xf32>
    %199 = vector.extract_strided_slice %196 {offsets = [0, 0], sizes = [8, 128], strides = [1, 1]} : vector<8x384xf32> to vector<8x128xf32>
    %200 = arith.addf %198, %199 : vector<8x128xf32>
    %201 = arith.negf %200 : vector<8x128xf32>
    %202 = math.exp %201 : vector<8x128xf32>
    %cst_57 = arith.constant 1.000000e+00 : f32
    %203 = vector.broadcast %cst_57 : f32 to vector<8x128xf32>
    %204 = arith.addf %203, %202 : vector<8x128xf32>
    %205 = arith.divf %203, %204 : vector<8x128xf32>
    %206 = vector.extract_strided_slice %197 {offsets = [0, 128], sizes = [8, 128], strides = [1, 1]} : vector<8x384xf32> to vector<8x128xf32>
    %207 = vector.extract_strided_slice %196 {offsets = [0, 128], sizes = [8, 128], strides = [1, 1]} : vector<8x384xf32> to vector<8x128xf32>
    %208 = arith.addf %206, %207 : vector<8x128xf32>
    %209 = arith.negf %208 : vector<8x128xf32>
    %210 = math.exp %209 : vector<8x128xf32>
    %cst_58 = arith.constant 1.000000e+00 : f32
    %211 = vector.broadcast %cst_58 : f32 to vector<8x128xf32>
    %212 = arith.addf %211, %210 : vector<8x128xf32>
    %213 = arith.divf %211, %212 : vector<8x128xf32>
    %214 = vector.extract_strided_slice %197 {offsets = [0, 256], sizes = [8, 128], strides = [1, 1]} : vector<8x384xf32> to vector<8x128xf32>
    %215 = vector.extract_strided_slice %196 {offsets = [0, 256], sizes = [8, 128], strides = [1, 1]} : vector<8x384xf32> to vector<8x128xf32>
    %216 = vector.broadcast %8 : vector<1x128xf32> to vector<8x128xf32>
    %217 = arith.addf %215, %216 : vector<8x128xf32>
    %218 = arith.mulf %205, %217 : vector<8x128xf32>
    %219 = arith.addf %214, %218 : vector<8x128xf32>
    %220 = math.tanh %219 : vector<8x128xf32>
    %cst_59 = arith.constant 1.000000e+00 : f32
    %221 = vector.broadcast %cst_59 : f32 to vector<8x128xf32>
    %222 = arith.subf %221, %213 : vector<8x128xf32>
    %223 = arith.mulf %222, %220 : vector<8x128xf32>
    %224 = arith.mulf %213, %194 : vector<8x128xf32>
    %225 = arith.addf %223, %224 : vector<8x128xf32>
    %c48_60 = arith.constant 48 : index
    %c0_61 = arith.constant 0 : index
    %226 = vector.load %arg12[%c48_60, %c0_61] : memref<64x128xf32, #tpu.memory_space<vmem>>, vector<8x128xf32>
    tpu.vector_store %arg12[%c48_60, %c0_61], %225 {strides = array<i32>} : memref<64x128xf32, #tpu.memory_space<vmem>>, vector<8x128xf32>,
    %cst_62 = arith.constant dense<0.000000e+00> : vector<8x384xf32>
    %227 = tpu.matmul %225, %7, %cst_62 {dimension_numbers = #tpu.dot_dimension_numbers<[1], [0], [0], [1], [0, 0, 1, 1], [], []>} : vector<8x128xf32>, vector<128x384xf32>, vector<8x384xf32> -> vector<8x384xf32>
    %c56 = arith.constant 56 : index
    %c0_63 = arith.constant 0 : index
    %228 = vector.load %arg11[%c56, %c0_63] : memref<64x384xf32, #tpu.memory_space<vmem>>, vector<8x384xf32>
    %229 = vector.extract_strided_slice %228 {offsets = [0, 0], sizes = [8, 128], strides = [1, 1]} : vector<8x384xf32> to vector<8x128xf32>
    %230 = vector.extract_strided_slice %227 {offsets = [0, 0], sizes = [8, 128], strides = [1, 1]} : vector<8x384xf32> to vector<8x128xf32>
    %231 = arith.addf %229, %230 : vector<8x128xf32>
    %232 = arith.negf %231 : vector<8x128xf32>
    %233 = math.exp %232 : vector<8x128xf32>
    %cst_64 = arith.constant 1.000000e+00 : f32
    %234 = vector.broadcast %cst_64 : f32 to vector<8x128xf32>
    %235 = arith.addf %234, %233 : vector<8x128xf32>
    %236 = arith.divf %234, %235 : vector<8x128xf32>
    %237 = vector.extract_strided_slice %228 {offsets = [0, 128], sizes = [8, 128], strides = [1, 1]} : vector<8x384xf32> to vector<8x128xf32>
    %238 = vector.extract_strided_slice %227 {offsets = [0, 128], sizes = [8, 128], strides = [1, 1]} : vector<8x384xf32> to vector<8x128xf32>
    %239 = arith.addf %237, %238 : vector<8x128xf32>
    %240 = arith.negf %239 : vector<8x128xf32>
    %241 = math.exp %240 : vector<8x128xf32>
    %cst_65 = arith.constant 1.000000e+00 : f32
    %242 = vector.broadcast %cst_65 : f32 to vector<8x128xf32>
    %243 = arith.addf %242, %241 : vector<8x128xf32>
    %244 = arith.divf %242, %243 : vector<8x128xf32>
    %245 = vector.extract_strided_slice %228 {offsets = [0, 256], sizes = [8, 128], strides = [1, 1]} : vector<8x384xf32> to vector<8x128xf32>
    %246 = vector.extract_strided_slice %227 {offsets = [0, 256], sizes = [8, 128], strides = [1, 1]} : vector<8x384xf32> to vector<8x128xf32>
    %247 = vector.broadcast %8 : vector<1x128xf32> to vector<8x128xf32>
    %248 = arith.addf %246, %247 : vector<8x128xf32>
    %249 = arith.mulf %236, %248 : vector<8x128xf32>
    %250 = arith.addf %245, %249 : vector<8x128xf32>
    %251 = math.tanh %250 : vector<8x128xf32>
    %cst_66 = arith.constant 1.000000e+00 : f32
    %252 = vector.broadcast %cst_66 : f32 to vector<8x128xf32>
    %253 = arith.subf %252, %244 : vector<8x128xf32>
    %254 = arith.mulf %253, %251 : vector<8x128xf32>
    %255 = arith.mulf %244, %225 : vector<8x128xf32>
    %256 = arith.addf %254, %255 : vector<8x128xf32>
    %c56_67 = arith.constant 56 : index
    %c0_68 = arith.constant 0 : index
    %257 = vector.load %arg12[%c56_67, %c0_68] : memref<64x128xf32, #tpu.memory_space<vmem>>, vector<8x128xf32>
    tpu.vector_store %arg12[%c56_67, %c0_68], %256 {strides = array<i32>} : memref<64x128xf32, #tpu.memory_space<vmem>>, vector<8x128xf32>,
    %c0_69 = arith.constant 0 : index
    %c0_70 = arith.constant 0 : index
    %c0_71 = arith.constant 0 : index
    %258 = vector.load %arg10[%c0_69, %c0_70, %c0_71] : memref<2x8x128xf32, #tpu.memory_space<vmem>>, vector<1x8x128xf32>
    %259 = vector.shape_cast %258 : vector<1x8x128xf32> to vector<8x128xf32>
    %260 = vector.shape_cast %256 : vector<8x128xf32> to vector<1x8x128xf32>
    tpu.vector_store %arg10[%c0_69, %c0_70, %c0_71], %260 {strides = array<i32>} : memref<2x8x128xf32, #tpu.memory_space<vmem>>, vector<1x8x128xf32>,
    %c0_72 = arith.constant 0 : index
    %c0_73 = arith.constant 0 : index
    %261 = vector.load %arg12[%c0_72, %c0_73] : memref<64x128xf32, #tpu.memory_space<vmem>>, vector<64x128xf32>
    %c0_74 = arith.constant 0 : index
    %c0_75 = arith.constant 0 : index
    %262 = vector.load %arg5[%c0_74, %c0_75] : memref<128x384xf32, #tpu.memory_space<vmem>>, vector<128x384xf32>
    %cst_76 = arith.constant dense<0.000000e+00> : vector<64x384xf32>
    %263 = tpu.matmul %261, %262, %cst_76 {dimension_numbers = #tpu.dot_dimension_numbers<[1], [0], [0], [1], [0, 0, 1, 1], [], []>} : vector<64x128xf32>, vector<128x384xf32>, vector<64x384xf32> -> vector<64x384xf32>
    %c0_77 = arith.constant 0 : index
    %c0_78 = arith.constant 0 : index
    %264 = vector.load %arg7[%c0_77, %c0_78] : memref<1x384xf32, #tpu.memory_space<vmem>>, vector<1x384xf32>
    %265 = vector.broadcast %264 : vector<1x384xf32> to vector<64x384xf32>
    %266 = arith.addf %263, %265 : vector<64x384xf32>
    %c0_79 = arith.constant 0 : index
    %c0_80 = arith.constant 0 : index
    %267 = vector.load %arg11[%c0_79, %c0_80] : memref<64x384xf32, #tpu.memory_space<vmem>>, vector<64x384xf32>
    tpu.vector_store %arg11[%c0_79, %c0_80], %266 {strides = array<i32>} : memref<64x384xf32, #tpu.memory_space<vmem>>, vector<64x384xf32>,
    %c0_81 = arith.constant 0 : index
    %c0_82 = arith.constant 0 : index
    %268 = vector.load %arg6[%c0_81, %c0_82] : memref<128x384xf32, #tpu.memory_space<vmem>>, vector<128x384xf32>
    %c0_83 = arith.constant 0 : index
    %c0_84 = arith.constant 0 : index
    %269 = vector.load %arg8[%c0_83, %c0_84] : memref<1x128xf32, #tpu.memory_space<vmem>>, vector<1x128xf32>
    %cst_85 = arith.constant 0.000000e+00 : f32
    %270 = vector.broadcast %cst_85 : f32 to vector<8x128xf32>
    %cst_86 = arith.constant dense<0.000000e+00> : vector<8x384xf32>
    %271 = tpu.matmul %270, %268, %cst_86 {dimension_numbers = #tpu.dot_dimension_numbers<[1], [0], [0], [1], [0, 0, 1, 1], [], []>} : vector<8x128xf32>, vector<128x384xf32>, vector<8x384xf32> -> vector<8x384xf32>
    %c0_87 = arith.constant 0 : index
    %c0_88 = arith.constant 0 : index
    %272 = vector.load %arg11[%c0_87, %c0_88] : memref<64x384xf32, #tpu.memory_space<vmem>>, vector<8x384xf32>
    %273 = vector.extract_strided_slice %272 {offsets = [0, 0], sizes = [8, 128], strides = [1, 1]} : vector<8x384xf32> to vector<8x128xf32>
    %274 = vector.extract_strided_slice %271 {offsets = [0, 0], sizes = [8, 128], strides = [1, 1]} : vector<8x384xf32> to vector<8x128xf32>
    %275 = arith.addf %273, %274 : vector<8x128xf32>
    %276 = arith.negf %275 : vector<8x128xf32>
    %277 = math.exp %276 : vector<8x128xf32>
    %cst_89 = arith.constant 1.000000e+00 : f32
    %278 = vector.broadcast %cst_89 : f32 to vector<8x128xf32>
    %279 = arith.addf %278, %277 : vector<8x128xf32>
    %280 = arith.divf %278, %279 : vector<8x128xf32>
    %281 = vector.extract_strided_slice %272 {offsets = [0, 128], sizes = [8, 128], strides = [1, 1]} : vector<8x384xf32> to vector<8x128xf32>
    %282 = vector.extract_strided_slice %271 {offsets = [0, 128], sizes = [8, 128], strides = [1, 1]} : vector<8x384xf32> to vector<8x128xf32>
    %283 = arith.addf %281, %282 : vector<8x128xf32>
    %284 = arith.negf %283 : vector<8x128xf32>
    %285 = math.exp %284 : vector<8x128xf32>
    %cst_90 = arith.constant 1.000000e+00 : f32
    %286 = vector.broadcast %cst_90 : f32 to vector<8x128xf32>
    %287 = arith.addf %286, %285 : vector<8x128xf32>
    %288 = arith.divf %286, %287 : vector<8x128xf32>
    %289 = vector.extract_strided_slice %272 {offsets = [0, 256], sizes = [8, 128], strides = [1, 1]} : vector<8x384xf32> to vector<8x128xf32>
    %290 = vector.extract_strided_slice %271 {offsets = [0, 256], sizes = [8, 128], strides = [1, 1]} : vector<8x384xf32> to vector<8x128xf32>
    %291 = vector.broadcast %269 : vector<1x128xf32> to vector<8x128xf32>
    %292 = arith.addf %290, %291 : vector<8x128xf32>
    %293 = arith.mulf %280, %292 : vector<8x128xf32>
    %294 = arith.addf %289, %293 : vector<8x128xf32>
    %295 = math.tanh %294 : vector<8x128xf32>
    %cst_91 = arith.constant 1.000000e+00 : f32
    %296 = vector.broadcast %cst_91 : f32 to vector<8x128xf32>
    %297 = arith.subf %296, %288 : vector<8x128xf32>
    %298 = arith.mulf %297, %295 : vector<8x128xf32>
    %299 = arith.mulf %288, %270 : vector<8x128xf32>
    %300 = arith.addf %298, %299 : vector<8x128xf32>
    %c0_92 = arith.constant 0 : index
    %c0_93 = arith.constant 0 : index
    %301 = vector.load %arg9[%c0_92, %c0_93] : memref<64x128xf32, #tpu.memory_space<vmem>>, vector<8x128xf32>
    tpu.vector_store %arg9[%c0_92, %c0_93], %300 {strides = array<i32>} : memref<64x128xf32, #tpu.memory_space<vmem>>, vector<8x128xf32>,
    %cst_94 = arith.constant dense<0.000000e+00> : vector<8x384xf32>
    %302 = tpu.matmul %300, %268, %cst_94 {dimension_numbers = #tpu.dot_dimension_numbers<[1], [0], [0], [1], [0, 0, 1, 1], [], []>} : vector<8x128xf32>, vector<128x384xf32>, vector<8x384xf32> -> vector<8x384xf32>
    %c8_95 = arith.constant 8 : index
    %c0_96 = arith.constant 0 : index
    %303 = vector.load %arg11[%c8_95, %c0_96] : memref<64x384xf32, #tpu.memory_space<vmem>>, vector<8x384xf32>
    %304 = vector.extract_strided_slice %303 {offsets = [0, 0], sizes = [8, 128], strides = [1, 1]} : vector<8x384xf32> to vector<8x128xf32>
    %305 = vector.extract_strided_slice %302 {offsets = [0, 0], sizes = [8, 128], strides = [1, 1]} : vector<8x384xf32> to vector<8x128xf32>
    %306 = arith.addf %304, %305 : vector<8x128xf32>
    %307 = arith.negf %306 : vector<8x128xf32>
    %308 = math.exp %307 : vector<8x128xf32>
    %cst_97 = arith.constant 1.000000e+00 : f32
    %309 = vector.broadcast %cst_97 : f32 to vector<8x128xf32>
    %310 = arith.addf %309, %308 : vector<8x128xf32>
    %311 = arith.divf %309, %310 : vector<8x128xf32>
    %312 = vector.extract_strided_slice %303 {offsets = [0, 128], sizes = [8, 128], strides = [1, 1]} : vector<8x384xf32> to vector<8x128xf32>
    %313 = vector.extract_strided_slice %302 {offsets = [0, 128], sizes = [8, 128], strides = [1, 1]} : vector<8x384xf32> to vector<8x128xf32>
    %314 = arith.addf %312, %313 : vector<8x128xf32>
    %315 = arith.negf %314 : vector<8x128xf32>
    %316 = math.exp %315 : vector<8x128xf32>
    %cst_98 = arith.constant 1.000000e+00 : f32
    %317 = vector.broadcast %cst_98 : f32 to vector<8x128xf32>
    %318 = arith.addf %317, %316 : vector<8x128xf32>
    %319 = arith.divf %317, %318 : vector<8x128xf32>
    %320 = vector.extract_strided_slice %303 {offsets = [0, 256], sizes = [8, 128], strides = [1, 1]} : vector<8x384xf32> to vector<8x128xf32>
    %321 = vector.extract_strided_slice %302 {offsets = [0, 256], sizes = [8, 128], strides = [1, 1]} : vector<8x384xf32> to vector<8x128xf32>
    %322 = vector.broadcast %269 : vector<1x128xf32> to vector<8x128xf32>
    %323 = arith.addf %321, %322 : vector<8x128xf32>
    %324 = arith.mulf %311, %323 : vector<8x128xf32>
    %325 = arith.addf %320, %324 : vector<8x128xf32>
    %326 = math.tanh %325 : vector<8x128xf32>
    %cst_99 = arith.constant 1.000000e+00 : f32
    %327 = vector.broadcast %cst_99 : f32 to vector<8x128xf32>
    %328 = arith.subf %327, %319 : vector<8x128xf32>
    %329 = arith.mulf %328, %326 : vector<8x128xf32>
    %330 = arith.mulf %319, %300 : vector<8x128xf32>
    %331 = arith.addf %329, %330 : vector<8x128xf32>
    %c8_100 = arith.constant 8 : index
    %c0_101 = arith.constant 0 : index
    %332 = vector.load %arg9[%c8_100, %c0_101] : memref<64x128xf32, #tpu.memory_space<vmem>>, vector<8x128xf32>
    tpu.vector_store %arg9[%c8_100, %c0_101], %331 {strides = array<i32>} : memref<64x128xf32, #tpu.memory_space<vmem>>, vector<8x128xf32>,
    %cst_102 = arith.constant dense<0.000000e+00> : vector<8x384xf32>
    %333 = tpu.matmul %331, %268, %cst_102 {dimension_numbers = #tpu.dot_dimension_numbers<[1], [0], [0], [1], [0, 0, 1, 1], [], []>} : vector<8x128xf32>, vector<128x384xf32>, vector<8x384xf32> -> vector<8x384xf32>
    %c16_103 = arith.constant 16 : index
    %c0_104 = arith.constant 0 : index
    %334 = vector.load %arg11[%c16_103, %c0_104] : memref<64x384xf32, #tpu.memory_space<vmem>>, vector<8x384xf32>
    %335 = vector.extract_strided_slice %334 {offsets = [0, 0], sizes = [8, 128], strides = [1, 1]} : vector<8x384xf32> to vector<8x128xf32>
    %336 = vector.extract_strided_slice %333 {offsets = [0, 0], sizes = [8, 128], strides = [1, 1]} : vector<8x384xf32> to vector<8x128xf32>
    %337 = arith.addf %335, %336 : vector<8x128xf32>
    %338 = arith.negf %337 : vector<8x128xf32>
    %339 = math.exp %338 : vector<8x128xf32>
    %cst_105 = arith.constant 1.000000e+00 : f32
    %340 = vector.broadcast %cst_105 : f32 to vector<8x128xf32>
    %341 = arith.addf %340, %339 : vector<8x128xf32>
    %342 = arith.divf %340, %341 : vector<8x128xf32>
    %343 = vector.extract_strided_slice %334 {offsets = [0, 128], sizes = [8, 128], strides = [1, 1]} : vector<8x384xf32> to vector<8x128xf32>
    %344 = vector.extract_strided_slice %333 {offsets = [0, 128], sizes = [8, 128], strides = [1, 1]} : vector<8x384xf32> to vector<8x128xf32>
    %345 = arith.addf %343, %344 : vector<8x128xf32>
    %346 = arith.negf %345 : vector<8x128xf32>
    %347 = math.exp %346 : vector<8x128xf32>
    %cst_106 = arith.constant 1.000000e+00 : f32
    %348 = vector.broadcast %cst_106 : f32 to vector<8x128xf32>
    %349 = arith.addf %348, %347 : vector<8x128xf32>
    %350 = arith.divf %348, %349 : vector<8x128xf32>
    %351 = vector.extract_strided_slice %334 {offsets = [0, 256], sizes = [8, 128], strides = [1, 1]} : vector<8x384xf32> to vector<8x128xf32>
    %352 = vector.extract_strided_slice %333 {offsets = [0, 256], sizes = [8, 128], strides = [1, 1]} : vector<8x384xf32> to vector<8x128xf32>
    %353 = vector.broadcast %269 : vector<1x128xf32> to vector<8x128xf32>
    %354 = arith.addf %352, %353 : vector<8x128xf32>
    %355 = arith.mulf %342, %354 : vector<8x128xf32>
    %356 = arith.addf %351, %355 : vector<8x128xf32>
    %357 = math.tanh %356 : vector<8x128xf32>
    %cst_107 = arith.constant 1.000000e+00 : f32
    %358 = vector.broadcast %cst_107 : f32 to vector<8x128xf32>
    %359 = arith.subf %358, %350 : vector<8x128xf32>
    %360 = arith.mulf %359, %357 : vector<8x128xf32>
    %361 = arith.mulf %350, %331 : vector<8x128xf32>
    %362 = arith.addf %360, %361 : vector<8x128xf32>
    %c16_108 = arith.constant 16 : index
    %c0_109 = arith.constant 0 : index
    %363 = vector.load %arg9[%c16_108, %c0_109] : memref<64x128xf32, #tpu.memory_space<vmem>>, vector<8x128xf32>
    tpu.vector_store %arg9[%c16_108, %c0_109], %362 {strides = array<i32>} : memref<64x128xf32, #tpu.memory_space<vmem>>, vector<8x128xf32>,
    %cst_110 = arith.constant dense<0.000000e+00> : vector<8x384xf32>
    %364 = tpu.matmul %362, %268, %cst_110 {dimension_numbers = #tpu.dot_dimension_numbers<[1], [0], [0], [1], [0, 0, 1, 1], [], []>} : vector<8x128xf32>, vector<128x384xf32>, vector<8x384xf32> -> vector<8x384xf32>
    %c24_111 = arith.constant 24 : index
    %c0_112 = arith.constant 0 : index
    %365 = vector.load %arg11[%c24_111, %c0_112] : memref<64x384xf32, #tpu.memory_space<vmem>>, vector<8x384xf32>
    %366 = vector.extract_strided_slice %365 {offsets = [0, 0], sizes = [8, 128], strides = [1, 1]} : vector<8x384xf32> to vector<8x128xf32>
    %367 = vector.extract_strided_slice %364 {offsets = [0, 0], sizes = [8, 128], strides = [1, 1]} : vector<8x384xf32> to vector<8x128xf32>
    %368 = arith.addf %366, %367 : vector<8x128xf32>
    %369 = arith.negf %368 : vector<8x128xf32>
    %370 = math.exp %369 : vector<8x128xf32>
    %cst_113 = arith.constant 1.000000e+00 : f32
    %371 = vector.broadcast %cst_113 : f32 to vector<8x128xf32>
    %372 = arith.addf %371, %370 : vector<8x128xf32>
    %373 = arith.divf %371, %372 : vector<8x128xf32>
    %374 = vector.extract_strided_slice %365 {offsets = [0, 128], sizes = [8, 128], strides = [1, 1]} : vector<8x384xf32> to vector<8x128xf32>
    %375 = vector.extract_strided_slice %364 {offsets = [0, 128], sizes = [8, 128], strides = [1, 1]} : vector<8x384xf32> to vector<8x128xf32>
    %376 = arith.addf %374, %375 : vector<8x128xf32>
    %377 = arith.negf %376 : vector<8x128xf32>
    %378 = math.exp %377 : vector<8x128xf32>
    %cst_114 = arith.constant 1.000000e+00 : f32
    %379 = vector.broadcast %cst_114 : f32 to vector<8x128xf32>
    %380 = arith.addf %379, %378 : vector<8x128xf32>
    %381 = arith.divf %379, %380 : vector<8x128xf32>
    %382 = vector.extract_strided_slice %365 {offsets = [0, 256], sizes = [8, 128], strides = [1, 1]} : vector<8x384xf32> to vector<8x128xf32>
    %383 = vector.extract_strided_slice %364 {offsets = [0, 256], sizes = [8, 128], strides = [1, 1]} : vector<8x384xf32> to vector<8x128xf32>
    %384 = vector.broadcast %269 : vector<1x128xf32> to vector<8x128xf32>
    %385 = arith.addf %383, %384 : vector<8x128xf32>
    %386 = arith.mulf %373, %385 : vector<8x128xf32>
    %387 = arith.addf %382, %386 : vector<8x128xf32>
    %388 = math.tanh %387 : vector<8x128xf32>
    %cst_115 = arith.constant 1.000000e+00 : f32
    %389 = vector.broadcast %cst_115 : f32 to vector<8x128xf32>
    %390 = arith.subf %389, %381 : vector<8x128xf32>
    %391 = arith.mulf %390, %388 : vector<8x128xf32>
    %392 = arith.mulf %381, %362 : vector<8x128xf32>
    %393 = arith.addf %391, %392 : vector<8x128xf32>
    %c24_116 = arith.constant 24 : index
    %c0_117 = arith.constant 0 : index
    %394 = vector.load %arg9[%c24_116, %c0_117] : memref<64x128xf32, #tpu.memory_space<vmem>>, vector<8x128xf32>
    tpu.vector_store %arg9[%c24_116, %c0_117], %393 {strides = array<i32>} : memref<64x128xf32, #tpu.memory_space<vmem>>, vector<8x128xf32>,
    %cst_118 = arith.constant dense<0.000000e+00> : vector<8x384xf32>
    %395 = tpu.matmul %393, %268, %cst_118 {dimension_numbers = #tpu.dot_dimension_numbers<[1], [0], [0], [1], [0, 0, 1, 1], [], []>} : vector<8x128xf32>, vector<128x384xf32>, vector<8x384xf32> -> vector<8x384xf32>
    %c32_119 = arith.constant 32 : index
    %c0_120 = arith.constant 0 : index
    %396 = vector.load %arg11[%c32_119, %c0_120] : memref<64x384xf32, #tpu.memory_space<vmem>>, vector<8x384xf32>
    %397 = vector.extract_strided_slice %396 {offsets = [0, 0], sizes = [8, 128], strides = [1, 1]} : vector<8x384xf32> to vector<8x128xf32>
    %398 = vector.extract_strided_slice %395 {offsets = [0, 0], sizes = [8, 128], strides = [1, 1]} : vector<8x384xf32> to vector<8x128xf32>
    %399 = arith.addf %397, %398 : vector<8x128xf32>
    %400 = arith.negf %399 : vector<8x128xf32>
    %401 = math.exp %400 : vector<8x128xf32>
    %cst_121 = arith.constant 1.000000e+00 : f32
    %402 = vector.broadcast %cst_121 : f32 to vector<8x128xf32>
    %403 = arith.addf %402, %401 : vector<8x128xf32>
    %404 = arith.divf %402, %403 : vector<8x128xf32>
    %405 = vector.extract_strided_slice %396 {offsets = [0, 128], sizes = [8, 128], strides = [1, 1]} : vector<8x384xf32> to vector<8x128xf32>
    %406 = vector.extract_strided_slice %395 {offsets = [0, 128], sizes = [8, 128], strides = [1, 1]} : vector<8x384xf32> to vector<8x128xf32>
    %407 = arith.addf %405, %406 : vector<8x128xf32>
    %408 = arith.negf %407 : vector<8x128xf32>
    %409 = math.exp %408 : vector<8x128xf32>
    %cst_122 = arith.constant 1.000000e+00 : f32
    %410 = vector.broadcast %cst_122 : f32 to vector<8x128xf32>
    %411 = arith.addf %410, %409 : vector<8x128xf32>
    %412 = arith.divf %410, %411 : vector<8x128xf32>
    %413 = vector.extract_strided_slice %396 {offsets = [0, 256], sizes = [8, 128], strides = [1, 1]} : vector<8x384xf32> to vector<8x128xf32>
    %414 = vector.extract_strided_slice %395 {offsets = [0, 256], sizes = [8, 128], strides = [1, 1]} : vector<8x384xf32> to vector<8x128xf32>
    %415 = vector.broadcast %269 : vector<1x128xf32> to vector<8x128xf32>
    %416 = arith.addf %414, %415 : vector<8x128xf32>
    %417 = arith.mulf %404, %416 : vector<8x128xf32>
    %418 = arith.addf %413, %417 : vector<8x128xf32>
    %419 = math.tanh %418 : vector<8x128xf32>
    %cst_123 = arith.constant 1.000000e+00 : f32
    %420 = vector.broadcast %cst_123 : f32 to vector<8x128xf32>
    %421 = arith.subf %420, %412 : vector<8x128xf32>
    %422 = arith.mulf %421, %419 : vector<8x128xf32>
    %423 = arith.mulf %412, %393 : vector<8x128xf32>
    %424 = arith.addf %422, %423 : vector<8x128xf32>
    %c32_124 = arith.constant 32 : index
    %c0_125 = arith.constant 0 : index
    %425 = vector.load %arg9[%c32_124, %c0_125] : memref<64x128xf32, #tpu.memory_space<vmem>>, vector<8x128xf32>
    tpu.vector_store %arg9[%c32_124, %c0_125], %424 {strides = array<i32>} : memref<64x128xf32, #tpu.memory_space<vmem>>, vector<8x128xf32>,
    %cst_126 = arith.constant dense<0.000000e+00> : vector<8x384xf32>
    %426 = tpu.matmul %424, %268, %cst_126 {dimension_numbers = #tpu.dot_dimension_numbers<[1], [0], [0], [1], [0, 0, 1, 1], [], []>} : vector<8x128xf32>, vector<128x384xf32>, vector<8x384xf32> -> vector<8x384xf32>
    %c40_127 = arith.constant 40 : index
    %c0_128 = arith.constant 0 : index
    %427 = vector.load %arg11[%c40_127, %c0_128] : memref<64x384xf32, #tpu.memory_space<vmem>>, vector<8x384xf32>
    %428 = vector.extract_strided_slice %427 {offsets = [0, 0], sizes = [8, 128], strides = [1, 1]} : vector<8x384xf32> to vector<8x128xf32>
    %429 = vector.extract_strided_slice %426 {offsets = [0, 0], sizes = [8, 128], strides = [1, 1]} : vector<8x384xf32> to vector<8x128xf32>
    %430 = arith.addf %428, %429 : vector<8x128xf32>
    %431 = arith.negf %430 : vector<8x128xf32>
    %432 = math.exp %431 : vector<8x128xf32>
    %cst_129 = arith.constant 1.000000e+00 : f32
    %433 = vector.broadcast %cst_129 : f32 to vector<8x128xf32>
    %434 = arith.addf %433, %432 : vector<8x128xf32>
    %435 = arith.divf %433, %434 : vector<8x128xf32>
    %436 = vector.extract_strided_slice %427 {offsets = [0, 128], sizes = [8, 128], strides = [1, 1]} : vector<8x384xf32> to vector<8x128xf32>
    %437 = vector.extract_strided_slice %426 {offsets = [0, 128], sizes = [8, 128], strides = [1, 1]} : vector<8x384xf32> to vector<8x128xf32>
    %438 = arith.addf %436, %437 : vector<8x128xf32>
    %439 = arith.negf %438 : vector<8x128xf32>
    %440 = math.exp %439 : vector<8x128xf32>
    %cst_130 = arith.constant 1.000000e+00 : f32
    %441 = vector.broadcast %cst_130 : f32 to vector<8x128xf32>
    %442 = arith.addf %441, %440 : vector<8x128xf32>
    %443 = arith.divf %441, %442 : vector<8x128xf32>
    %444 = vector.extract_strided_slice %427 {offsets = [0, 256], sizes = [8, 128], strides = [1, 1]} : vector<8x384xf32> to vector<8x128xf32>
    %445 = vector.extract_strided_slice %426 {offsets = [0, 256], sizes = [8, 128], strides = [1, 1]} : vector<8x384xf32> to vector<8x128xf32>
    %446 = vector.broadcast %269 : vector<1x128xf32> to vector<8x128xf32>
    %447 = arith.addf %445, %446 : vector<8x128xf32>
    %448 = arith.mulf %435, %447 : vector<8x128xf32>
    %449 = arith.addf %444, %448 : vector<8x128xf32>
    %450 = math.tanh %449 : vector<8x128xf32>
    %cst_131 = arith.constant 1.000000e+00 : f32
    %451 = vector.broadcast %cst_131 : f32 to vector<8x128xf32>
    %452 = arith.subf %451, %443 : vector<8x128xf32>
    %453 = arith.mulf %452, %450 : vector<8x128xf32>
    %454 = arith.mulf %443, %424 : vector<8x128xf32>
    %455 = arith.addf %453, %454 : vector<8x128xf32>
    %c40_132 = arith.constant 40 : index
    %c0_133 = arith.constant 0 : index
    %456 = vector.load %arg9[%c40_132, %c0_133] : memref<64x128xf32, #tpu.memory_space<vmem>>, vector<8x128xf32>
    tpu.vector_store %arg9[%c40_132, %c0_133], %455 {strides = array<i32>} : memref<64x128xf32, #tpu.memory_space<vmem>>, vector<8x128xf32>,
    %cst_134 = arith.constant dense<0.000000e+00> : vector<8x384xf32>
    %457 = tpu.matmul %455, %268, %cst_134 {dimension_numbers = #tpu.dot_dimension_numbers<[1], [0], [0], [1], [0, 0, 1, 1], [], []>} : vector<8x128xf32>, vector<128x384xf32>, vector<8x384xf32> -> vector<8x384xf32>
    %c48_135 = arith.constant 48 : index
    %c0_136 = arith.constant 0 : index
    %458 = vector.load %arg11[%c48_135, %c0_136] : memref<64x384xf32, #tpu.memory_space<vmem>>, vector<8x384xf32>
    %459 = vector.extract_strided_slice %458 {offsets = [0, 0], sizes = [8, 128], strides = [1, 1]} : vector<8x384xf32> to vector<8x128xf32>
    %460 = vector.extract_strided_slice %457 {offsets = [0, 0], sizes = [8, 128], strides = [1, 1]} : vector<8x384xf32> to vector<8x128xf32>
    %461 = arith.addf %459, %460 : vector<8x128xf32>
    %462 = arith.negf %461 : vector<8x128xf32>
    %463 = math.exp %462 : vector<8x128xf32>
    %cst_137 = arith.constant 1.000000e+00 : f32
    %464 = vector.broadcast %cst_137 : f32 to vector<8x128xf32>
    %465 = arith.addf %464, %463 : vector<8x128xf32>
    %466 = arith.divf %464, %465 : vector<8x128xf32>
    %467 = vector.extract_strided_slice %458 {offsets = [0, 128], sizes = [8, 128], strides = [1, 1]} : vector<8x384xf32> to vector<8x128xf32>
    %468 = vector.extract_strided_slice %457 {offsets = [0, 128], sizes = [8, 128], strides = [1, 1]} : vector<8x384xf32> to vector<8x128xf32>
    %469 = arith.addf %467, %468 : vector<8x128xf32>
    %470 = arith.negf %469 : vector<8x128xf32>
    %471 = math.exp %470 : vector<8x128xf32>
    %cst_138 = arith.constant 1.000000e+00 : f32
    %472 = vector.broadcast %cst_138 : f32 to vector<8x128xf32>
    %473 = arith.addf %472, %471 : vector<8x128xf32>
    %474 = arith.divf %472, %473 : vector<8x128xf32>
    %475 = vector.extract_strided_slice %458 {offsets = [0, 256], sizes = [8, 128], strides = [1, 1]} : vector<8x384xf32> to vector<8x128xf32>
    %476 = vector.extract_strided_slice %457 {offsets = [0, 256], sizes = [8, 128], strides = [1, 1]} : vector<8x384xf32> to vector<8x128xf32>
    %477 = vector.broadcast %269 : vector<1x128xf32> to vector<8x128xf32>
    %478 = arith.addf %476, %477 : vector<8x128xf32>
    %479 = arith.mulf %466, %478 : vector<8x128xf32>
    %480 = arith.addf %475, %479 : vector<8x128xf32>
    %481 = math.tanh %480 : vector<8x128xf32>
    %cst_139 = arith.constant 1.000000e+00 : f32
    %482 = vector.broadcast %cst_139 : f32 to vector<8x128xf32>
    %483 = arith.subf %482, %474 : vector<8x128xf32>
    %484 = arith.mulf %483, %481 : vector<8x128xf32>
    %485 = arith.mulf %474, %455 : vector<8x128xf32>
    %486 = arith.addf %484, %485 : vector<8x128xf32>
    %c48_140 = arith.constant 48 : index
    %c0_141 = arith.constant 0 : index
    %487 = vector.load %arg9[%c48_140, %c0_141] : memref<64x128xf32, #tpu.memory_space<vmem>>, vector<8x128xf32>
    tpu.vector_store %arg9[%c48_140, %c0_141], %486 {strides = array<i32>} : memref<64x128xf32, #tpu.memory_space<vmem>>, vector<8x128xf32>,
    %cst_142 = arith.constant dense<0.000000e+00> : vector<8x384xf32>
    %488 = tpu.matmul %486, %268, %cst_142 {dimension_numbers = #tpu.dot_dimension_numbers<[1], [0], [0], [1], [0, 0, 1, 1], [], []>} : vector<8x128xf32>, vector<128x384xf32>, vector<8x384xf32> -> vector<8x384xf32>
    %c56_143 = arith.constant 56 : index
    %c0_144 = arith.constant 0 : index
    %489 = vector.load %arg11[%c56_143, %c0_144] : memref<64x384xf32, #tpu.memory_space<vmem>>, vector<8x384xf32>
    %490 = vector.extract_strided_slice %489 {offsets = [0, 0], sizes = [8, 128], strides = [1, 1]} : vector<8x384xf32> to vector<8x128xf32>
    %491 = vector.extract_strided_slice %488 {offsets = [0, 0], sizes = [8, 128], strides = [1, 1]} : vector<8x384xf32> to vector<8x128xf32>
    %492 = arith.addf %490, %491 : vector<8x128xf32>
    %493 = arith.negf %492 : vector<8x128xf32>
    %494 = math.exp %493 : vector<8x128xf32>
    %cst_145 = arith.constant 1.000000e+00 : f32
    %495 = vector.broadcast %cst_145 : f32 to vector<8x128xf32>
    %496 = arith.addf %495, %494 : vector<8x128xf32>
    %497 = arith.divf %495, %496 : vector<8x128xf32>
    %498 = vector.extract_strided_slice %489 {offsets = [0, 128], sizes = [8, 128], strides = [1, 1]} : vector<8x384xf32> to vector<8x128xf32>
    %499 = vector.extract_strided_slice %488 {offsets = [0, 128], sizes = [8, 128], strides = [1, 1]} : vector<8x384xf32> to vector<8x128xf32>
    %500 = arith.addf %498, %499 : vector<8x128xf32>
    %501 = arith.negf %500 : vector<8x128xf32>
    %502 = math.exp %501 : vector<8x128xf32>
    %cst_146 = arith.constant 1.000000e+00 : f32
    %503 = vector.broadcast %cst_146 : f32 to vector<8x128xf32>
    %504 = arith.addf %503, %502 : vector<8x128xf32>
    %505 = arith.divf %503, %504 : vector<8x128xf32>
    %506 = vector.extract_strided_slice %489 {offsets = [0, 256], sizes = [8, 128], strides = [1, 1]} : vector<8x384xf32> to vector<8x128xf32>
    %507 = vector.extract_strided_slice %488 {offsets = [0, 256], sizes = [8, 128], strides = [1, 1]} : vector<8x384xf32> to vector<8x128xf32>
    %508 = vector.broadcast %269 : vector<1x128xf32> to vector<8x128xf32>
    %509 = arith.addf %507, %508 : vector<8x128xf32>
    %510 = arith.mulf %497, %509 : vector<8x128xf32>
    %511 = arith.addf %506, %510 : vector<8x128xf32>
    %512 = math.tanh %511 : vector<8x128xf32>
    %cst_147 = arith.constant 1.000000e+00 : f32
    %513 = vector.broadcast %cst_147 : f32 to vector<8x128xf32>
    %514 = arith.subf %513, %505 : vector<8x128xf32>
    %515 = arith.mulf %514, %512 : vector<8x128xf32>
    %516 = arith.mulf %505, %486 : vector<8x128xf32>
    %517 = arith.addf %515, %516 : vector<8x128xf32>
    %c56_148 = arith.constant 56 : index
    %c0_149 = arith.constant 0 : index
    %518 = vector.load %arg9[%c56_148, %c0_149] : memref<64x128xf32, #tpu.memory_space<vmem>>, vector<8x128xf32>
    tpu.vector_store %arg9[%c56_148, %c0_149], %517 {strides = array<i32>} : memref<64x128xf32, #tpu.memory_space<vmem>>, vector<8x128xf32>,
    %c1 = arith.constant 1 : index
    %c0_150 = arith.constant 0 : index
    %c0_151 = arith.constant 0 : index
    %519 = vector.load %arg10[%c1, %c0_150, %c0_151] : memref<2x8x128xf32, #tpu.memory_space<vmem>>, vector<1x8x128xf32>
    %520 = vector.shape_cast %519 : vector<1x8x128xf32> to vector<8x128xf32>
    %521 = vector.shape_cast %517 : vector<8x128xf32> to vector<1x8x128xf32>
    tpu.vector_store %arg10[%c1, %c0_150, %c0_151], %521 {strides = array<i32>} : memref<2x8x128xf32, #tpu.memory_space<vmem>>, vector<1x8x128xf32>,
    return
  }
}

</mosaic_0001>

<llo_original>
// kernel: temporal_net_forward.1
$region0: #{temporal_net_forward.1}
  #allocation0 [shape = 'u32[]', space=smem, size = 0x4, offset = 0x4, fixed_abs, tag = 'smem constant byte address 0x4 - core index']
  #allocation1 [shape = 'u32[144,128]{1,0:T(1,128)}', space=vmem, size = 0x12000, scoped, tag = 'internal scratch']
  #allocation2 [shape = 'f32[64,384]{1,0:T(8,128)}', space=vmem, size = 0x18000, scoped, tag = 'scratch operand']
  #allocation3 [shape = 'f32[64,128]{1,0:T(8,128)}', space=vmem, size = 0x8000, scoped, tag = 'scratch operand']
  %s0 = inlined_call_operand.vmem [shape: f32[64,128], index: 0, kind: input, shape index: {}]
  %s1 = inlined_call_operand.vmem [shape: f32[128,384], index: 1, kind: input, shape index: {}]
  %s2 = inlined_call_operand.vmem [shape: f32[128,384], index: 2, kind: input, shape index: {}]
  %s3 = inlined_call_operand.vmem [shape: f32[1,384], index: 3, kind: input, shape index: {}]
  %s4 = inlined_call_operand.vmem [shape: f32[1,128], index: 4, kind: input, shape index: {}]
  %s5 = inlined_call_operand.vmem [shape: f32[128,384], index: 5, kind: input, shape index: {}]
  %s6 = inlined_call_operand.vmem [shape: f32[128,384], index: 6, kind: input, shape index: {}]
  %s7 = inlined_call_operand.vmem [shape: f32[1,384], index: 7, kind: input, shape index: {}]
  %s8 = inlined_call_operand.vmem [shape: f32[1,128], index: 8, kind: input, shape index: {}]
  %s9 = inlined_call_operand.vmem [shape: f32[64,128], index: 9, kind: output, shape index: {0}]
  %s10 = inlined_call_operand.vmem [shape: f32[2,8,128], index: 10, kind: output, shape index: {1}]
  %11 = xla_tuple %s9, %s10
  %s12 = sld [smem:[#allocation0]]
  $region54: #{temporal_net_forward.1} parent=0
    _
  %s14 = ssub.s32 1, %s12
  %s15 = scalar_select 0, %s14, %s12
  // Predicated region
  $region2: #{temporal_net_forward.1} parent=0 // pred_check
    _
  $region3: #{temporal_net_forward.1} parent=0 // pred_check_branch
    %17 = sbr.rel (0) target = $region5
  $region4: #{temporal_net_forward.1} parent=0 // pred_region
    _
  $region5: #{temporal_net_forward.1} parent=0 // pred_fallthru
    _
  // Predicated region
  $region6: #{temporal_net_forward.1} parent=0 // pred_check
    _
  $region7: #{temporal_net_forward.1} parent=0 // pred_check_branch
    %19 = sbr.rel (0) target = $region9
  $region8: #{temporal_net_forward.1} parent=0 // pred_region
    _
  $region9: #{temporal_net_forward.1} parent=0 // pred_fallthru
    _
  // Predicated region
  $region10: #{temporal_net_forward.1} parent=0 // pred_check
    _
  $region11: #{temporal_net_forward.1} parent=0 // pred_check_branch
    %21 = sbr.rel (0) target = $region13
  $region12: #{temporal_net_forward.1} parent=0 // pred_region
    _
  $region13: #{temporal_net_forward.1} parent=0 // pred_fallthru
    _
  // Predicated region
  $region14: #{temporal_net_forward.1} parent=0 // pred_check
    _
  $region15: #{temporal_net_forward.1} parent=0 // pred_check_branch
    %23 = sbr.rel (0) target = $region17
  $region16: #{temporal_net_forward.1} parent=0 // pred_region
    _
  $region17: #{temporal_net_forward.1} parent=0 // pred_fallthru
    _
  // Predicated region
  $region18: #{temporal_net_forward.1} parent=0 // pred_check
    _
  $region19: #{temporal_net_forward.1} parent=0 // pred_check_branch
    %25 = sbr.rel (0) target = $region21
  $region20: #{temporal_net_forward.1} parent=0 // pred_region
    _
  $region21: #{temporal_net_forward.1} parent=0 // pred_fallthru
    _
  // Predicated region
  $region22: #{temporal_net_forward.1} parent=0 // pred_check
    _
  $region23: #{temporal_net_forward.1} parent=0 // pred_check_branch
    %27 = sbr.rel (0) target = $region25
  $region24: #{temporal_net_forward.1} parent=0 // pred_region
    _
  $region25: #{temporal_net_forward.1} parent=0 // pred_fallthru
    _
  // Predicated region
  $region26: #{temporal_net_forward.1} parent=0 // pred_check
    _
  $region27: #{temporal_net_forward.1} parent=0 // pred_check_branch
    %29 = sbr.rel (0) target = $region29
  $region28: #{temporal_net_forward.1} parent=0 // pred_region
    _
  $region29: #{temporal_net_forward.1} parent=0 // pred_fallthru
    _
  // Predicated region
  $region30: #{temporal_net_forward.1} parent=0 // pred_check
    _
  $region31: #{temporal_net_forward.1} parent=0 // pred_check_branch
    %31 = sbr.rel (0) target = $region33
  $region32: #{temporal_net_forward.1} parent=0 // pred_region
    _
  $region33: #{temporal_net_forward.1} parent=0 // pred_fallthru
    _
  // Predicated region
  $region34: #{temporal_net_forward.1} parent=0 // pred_check
    _
  $region35: #{temporal_net_forward.1} parent=0 // pred_check_branch
    %33 = sbr.rel (0) target = $region37
  $region36: #{temporal_net_forward.1} parent=0 // pred_region
    _
  $region37: #{temporal_net_forward.1} parent=0 // pred_fallthru
    _
  %v34 = vld [vmem:[%s0] sm:$0xff]
  %v35 = vld [vmem:[%s0 + $0x8] sm:$0xff]
  %v36 = vld [vmem:[%s0 + $0x10] sm:$0xff]
  %v37 = vld [vmem:[%s0 + $0x18] sm:$0xff]
  %v38 = vld [vmem:[%s0 + $0x20] sm:$0xff]
  %v39 = vld [vmem:[%s0 + $0x28] sm:$0xff]
  %v40 = vld [vmem:[%s0 + $0x30] sm:$0xff]
  %v41 = vld [vmem:[%s0 + $0x38] sm:$0xff]
  %v42 = vld [vmem:[%s1] sm:$0xff]
  %v43 = vld [vmem:[%s1 + $0x8] sm:$0xff]
  %v44 = vld [vmem:[%s1 + $0x10] sm:$0xff]
  %v45 = vld [vmem:[%s1 + $0x18] sm:$0xff]
  %v46 = vld [vmem:[%s1 + $0x20] sm:$0xff]
  %v47 = vld [vmem:[%s1 + $0x28] sm:$0xff]
  %v48 = vld [vmem:[%s1 + $0x30] sm:$0xff]
  %v49 = vld [vmem:[%s1 + $0x38] sm:$0xff]
  %v50 = vld [vmem:[%s1 + $0x40] sm:$0xff]
  %v51 = vld [vmem:[%s1 + $0x48] sm:$0xff]
  %v52 = vld [vmem:[%s1 + $0x50] sm:$0xff]
  %v53 = vld [vmem:[%s1 + $0x58] sm:$0xff]
  %v54 = vld [vmem:[%s1 + $0x60] sm:$0xff]
  %v55 = vld [vmem:[%s1 + $0x68] sm:$0xff]
  %v56 = vld [vmem:[%s1 + $0x70] sm:$0xff]
  %v57 = vld [vmem:[%s1 + $0x78] sm:$0xff]
  %v58 = vld [vmem:[%s1 + $0x80] sm:$0xff]
  %v59 = vld [vmem:[%s1 + $0x88] sm:$0xff]
  %v60 = vld [vmem:[%s1 + $0x90] sm:$0xff]
  %v61 = vld [vmem:[%s1 + $0x98] sm:$0xff]
  %v62 = vld [vmem:[%s1 + $0xa0] sm:$0xff]
  %v63 = vld [vmem:[%s1 + $0xa8] sm:$0xff]
  %v64 = vld [vmem:[%s1 + $0xb0] sm:$0xff]
  %v65 = vld [vmem:[%s1 + $0xb8] sm:$0xff]
  %v66 = vld [vmem:[%s1 + $0xc0] sm:$0xff]
  %v67 = vld [vmem:[%s1 + $0xc8] sm:$0xff]
  %v68 = vld [vmem:[%s1 + $0xd0] sm:$0xff]
  %v69 = vld [vmem:[%s1 + $0xd8] sm:$0xff]
  %v70 = vld [vmem:[%s1 + $0xe0] sm:$0xff]
  %v71 = vld [vmem:[%s1 + $0xe8] sm:$0xff]
  %v72 = vld [vmem:[%s1 + $0xf0] sm:$0xff]
  %v73 = vld [vmem:[%s1 + $0xf8] sm:$0xff]
  %v74 = vld [vmem:[%s1 + $0x100] sm:$0xff]
  %v75 = vld [vmem:[%s1 + $0x108] sm:$0xff]
  %v76 = vld [vmem:[%s1 + $0x110] sm:$0xff]
  %v77 = vld [vmem:[%s1 + $0x118] sm:$0xff]
  %v78 = vld [vmem:[%s1 + $0x120] sm:$0xff]
  %v79 = vld [vmem:[%s1 + $0x128] sm:$0xff]
  %v80 = vld [vmem:[%s1 + $0x130] sm:$0xff]
  %v81 = vld [vmem:[%s1 + $0x138] sm:$0xff]
  %v82 = vld [vmem:[%s1 + $0x140] sm:$0xff]
  %v83 = vld [vmem:[%s1 + $0x148] sm:$0xff]
  %v84 = vld [vmem:[%s1 + $0x150] sm:$0xff]
  %v85 = vld [vmem:[%s1 + $0x158] sm:$0xff]
  %v86 = vld [vmem:[%s1 + $0x160] sm:$0xff]
  %v87 = vld [vmem:[%s1 + $0x168] sm:$0xff]
  %v88 = vld [vmem:[%s1 + $0x170] sm:$0xff]
  %v89 = vld [vmem:[%s1 + $0x178] sm:$0xff]
  %v90 = vld [vmem:[%s3] sm:$0x7]
  %v92 = vlaneseq
  %v93 = vshrl.u32 %v92, 7
  %v94 = vsub.s32 0, %v93
  %v95 = vrot.slane %v90, %v94
  %v96 = vlaneseq
  %v97 = vshrl.u32 %v96, 7
  %v98 = vsub.s32 1, %v97
  %v99 = vrot.slane %v90, %v98
  %v100 = vlaneseq
  %v101 = vshrl.u32 %v100, 7
  %v102 = vsub.s32 2, %v101
  %v103 = vrot.slane %v90, %v102
  %107 = vmatprep.subr.mxu0 %v88
  %108 = vmatpush1.msra.mxu0 %v87
  %109 = vmatprep.subr.mxu0 %v85
  %110 = vmatpush1.msra.mxu0 %v84
  %111 = vmatprep.subr.mxu0 %v82
  %112 = vmatpush1.msra.mxu0 %v81
  %113 = vmatprep.subr.mxu0 %v79
  %114 = vmatpush1.msra.mxu0 %v78
  %115 = vmatprep.subr.mxu0 %v76
  %116 = vmatpush1.msra.mxu0 %v75
  %117 = vmatprep.subr.mxu0 %v73
  %118 = vmatpush1.msra.mxu0 %v72
  %119 = vmatprep.subr.mxu0 %v70
  %120 = vmatpush1.msra.mxu0 %v69
  %121 = vmatprep.subr.mxu0 %v67
  %122 = vmatpush1.msra.mxu0 %v66
  %123 = vmatprep.subr.mxu0 %v64
  %124 = vmatpush1.msra.mxu0 %v63
  %125 = vmatprep.subr.mxu0 %v61
  %126 = vmatpush1.msra.mxu0 %v60
  %127 = vmatprep.subr.mxu0 %v58
  %128 = vmatpush1.msra.mxu0 %v57
  %129 = vmatprep.subr.mxu0 %v55
  %130 = vmatpush1.msra.mxu0 %v54
  %131 = vmatprep.subr.mxu0 %v52
  %132 = vmatpush1.msra.mxu0 %v51
  %133 = vmatprep.subr.mxu0 %v49
  %134 = vmatpush1.msra.mxu0 %v48
  %135 = vmatprep.subr.mxu0 %v46
  %136 = vmatpush1.msra.mxu0 %v45
  %137 = vmatprep.subr.mxu0 %v43
  %138 = vmatpush1.msra.mxu0 %v42
  %139 = vmatprep.subr.mxu0 0.0
  %140 = vmatpush2.msra.mxu0 0.0
  %141 = vmatprep.subr.mxu0 0.0
  %142 = vmatpush2.msra.mxu0 0.0
  %143 = vmatprep.subr.mxu0 0.0
  %144 = vmatpush2.msra.mxu0 0.0
  %145 = vmatprep.subr.mxu0 0.0
  %146 = vmatpush2.msra.mxu0 0.0
  %147 = vmatprep.subr.mxu0 0.0
  %148 = vmatpush2.msra.mxu0 0.0
  %149 = vmatprep.subr.mxu0 0.0
  %150 = vmatpush2.msra.mxu0 0.0
  %151 = vmatprep.subr.mxu0 0.0
  %152 = vmatpush2.msra.mxu0 0.0
  %153 = vmatprep.subr.mxu0 0.0
  %154 = vmatpush2.msra.mxu0 0.0
  %155 = vmatprep.subr.mxu0 0.0
  %156 = vmatpush2.msra.mxu0 0.0
  %157 = vmatprep.subr.mxu0 0.0
  %158 = vmatpush2.msra.mxu0 0.0
  %159 = vmatprep.subr.mxu0 0.0
  %160 = vmatpush2.msra.mxu0 0.0
  %161 = vmatprep.subr.mxu0 0.0
  %162 = vmatpush2.msra.mxu0 0.0
  %163 = vmatprep.subr.mxu0 0.0
  %164 = vmatpush2.msra.mxu0 0.0
  %165 = vmatprep.subr.mxu0 0.0
  %166 = vmatpush2.msra.mxu0 0.0
  %167 = vmatprep.subr.mxu0 0.0
  %168 = vmatpush2.msra.mxu0 0.0
  %169 = vmatprep.subr.mxu0 0.0
  %170 = vmatpush2.msra.mxu0 0.0
  %171 = vmatprep.mubr.f32.mxu0 0.0
  %172 = vmatmul.mubr.f32.gmra.mxu0 %v34
  %v173 = vpop.f32.mrf.mxu0
  %v174 = vadd.f32 %v95, %v173
  %v175 = vpop.f32.mrf.mxu0
  %v176 = vadd.f32 %v99, %v175
  %177 = vmatprep.mubr.f32.mxu0 0.0
  %178 = vmatmul.mubr.f32.gmra.mxu0 %v35
  %v179 = vpop.f32.mrf.mxu0
  %v180 = vadd.f32 %v95, %v179
  %v181 = vpop.f32.mrf.mxu0
  %v182 = vadd.f32 %v99, %v181
  %183 = vmatprep.mubr.f32.mxu0 0.0
  %184 = vmatmul.mubr.f32.gmra.mxu0 %v36
  %v185 = vpop.f32.mrf.mxu0
  %v186 = vadd.f32 %v95, %v185
  %v187 = vpop.f32.mrf.mxu0
  %v188 = vadd.f32 %v99, %v187
  %189 = vmatprep.mubr.f32.mxu0 0.0
  %190 = vmatmul.mubr.f32.gmra.mxu0 %v37
  %v191 = vpop.f32.mrf.mxu0
  %v192 = vadd.f32 %v95, %v191
  %v193 = vpop.f32.mrf.mxu0
  %v194 = vadd.f32 %v99, %v193
  %195 = vmatprep.mubr.f32.mxu0 0.0
  %196 = vmatmul.mubr.f32.gmra.mxu0 %v38
  %v197 = vpop.f32.mrf.mxu0
  %v198 = vadd.f32 %v95, %v197
  %v199 = vpop.f32.mrf.mxu0
  %v200 = vadd.f32 %v99, %v199
  %201 = vmatprep.mubr.f32.mxu0 0.0
  %202 = vmatmul.mubr.f32.gmra.mxu0 %v39
  %v203 = vpop.f32.mrf.mxu0
  %v204 = vadd.f32 %v95, %v203
  %v205 = vpop.f32.mrf.mxu0
  %v206 = vadd.f32 %v99, %v205
  %207 = vmatprep.mubr.f32.mxu0 0.0
  %208 = vmatmul.mubr.f32.gmra.mxu0 %v40
  %v209 = vpop.f32.mrf.mxu0
  %v210 = vadd.f32 %v95, %v209
  %v211 = vpop.f32.mrf.mxu0
  %v212 = vadd.f32 %v99, %v211
  %213 = vmatprep.mubr.f32.mxu0 0.0
  %214 = vmatmul.mubr.f32.gmra.mxu0 %v41
  %v215 = vpop.f32.mrf.mxu0
  %v216 = vadd.f32 %v95, %v215
  %v217 = vpop.f32.mrf.mxu0
  %v218 = vadd.f32 %v99, %v217
  %219 = vdwg.mxu0
  %220 = vmatprep.subr.mxu0 0.0
  %221 = vmatpush1.msra.mxu0 %v89
  %222 = vmatprep.subr.mxu0 0.0
  %223 = vmatpush1.msra.mxu0 %v86
  %224 = vmatprep.subr.mxu0 0.0
  %225 = vmatpush1.msra.mxu0 %v83
  %226 = vmatprep.subr.mxu0 0.0
  %227 = vmatpush1.msra.mxu0 %v80
  %228 = vmatprep.subr.mxu0 0.0
  %229 = vmatpush1.msra.mxu0 %v77
  %230 = vmatprep.subr.mxu0 0.0
  %231 = vmatpush1.msra.mxu0 %v74
  %232 = vmatprep.subr.mxu0 0.0
  %233 = vmatpush1.msra.mxu0 %v71
  %234 = vmatprep.subr.mxu0 0.0
  %235 = vmatpush1.msra.mxu0 %v68
  %236 = vmatprep.subr.mxu0 0.0
  %237 = vmatpush1.msra.mxu0 %v65
  %238 = vmatprep.subr.mxu0 0.0
  %239 = vmatpush1.msra.mxu0 %v62
  %240 = vmatprep.subr.mxu0 0.0
  %241 = vmatpush1.msra.mxu0 %v59
  %242 = vmatprep.subr.mxu0 0.0
  %243 = vmatpush1.msra.mxu0 %v56
  %244 = vmatprep.subr.mxu0 0.0
  %245 = vmatpush1.msra.mxu0 %v53
  %246 = vmatprep.subr.mxu0 0.0
  %247 = vmatpush1.msra.mxu0 %v50
  %248 = vmatprep.subr.mxu0 0.0
  %249 = vmatpush1.msra.mxu0 %v47
  %250 = vmatprep.subr.mxu0 0.0
  %251 = vmatpush1.msra.mxu0 %v44
  %252 = vmatprep.subr.mxu0 0.0
  %253 = vmatpush2.msra.mxu0 0.0
  %254 = vmatprep.subr.mxu0 0.0
  %255 = vmatpush2.msra.mxu0 0.0
  %256 = vmatprep.subr.mxu0 0.0
  %257 = vmatpush2.msra.mxu0 0.0
  %258 = vmatprep.subr.mxu0 0.0
  %259 = vmatpush2.msra.mxu0 0.0
  %260 = vmatprep.subr.mxu0 0.0
  %261 = vmatpush2.msra.mxu0 0.0
  %262 = vmatprep.subr.mxu0 0.0
  %263 = vmatpush2.msra.mxu0 0.0
  %264 = vmatprep.subr.mxu0 0.0
  %265 = vmatpush2.msra.mxu0 0.0
  %266 = vmatprep.subr.mxu0 0.0
  %267 = vmatpush2.msra.mxu0 0.0
  %268 = vmatprep.subr.mxu0 0.0
  %269 = vmatpush2.msra.mxu0 0.0
  %270 = vmatprep.subr.mxu0 0.0
  %271 = vmatpush2.msra.mxu0 0.0
  %272 = vmatprep.subr.mxu0 0.0
  %273 = vmatpush2.msra.mxu0 0.0
  %274 = vmatprep.subr.mxu0 0.0
  %275 = vmatpush2.msra.mxu0 0.0
  %276 = vmatprep.subr.mxu0 0.0
  %277 = vmatpush2.msra.mxu0 0.0
  %278 = vmatprep.subr.mxu0 0.0
  %279 = vmatpush2.msra.mxu0 0.0
  %280 = vmatprep.subr.mxu0 0.0
  %281 = vmatpush2.msra.mxu0 0.0
  %282 = vmatprep.subr.mxu0 0.0
  %283 = vmatpush2.msra.mxu0 0.0
  %284 = vmatprep.mubr.f32.mxu0 0.0
  %285 = vmatmul.mubr.f32.gmra.mxu0 %v34
  %v286 = vpop.f32.mrf.mxu0
  %v287 = vadd.f32 %v103, %v286
  %v288 = vpop.f32.mrf.mxu0
  %289 = vmatprep.mubr.f32.mxu0 0.0
  %290 = vmatmul.mubr.f32.gmra.mxu0 %v35
  %v291 = vpop.f32.mrf.mxu0
  %v292 = vadd.f32 %v103, %v291
  %v293 = vpop.f32.mrf.mxu0
  %294 = vmatprep.mubr.f32.mxu0 0.0
  %295 = vmatmul.mubr.f32.gmra.mxu0 %v36
  %v296 = vpop.f32.mrf.mxu0
  %v297 = vadd.f32 %v103, %v296
  %v298 = vpop.f32.mrf.mxu0
  %299 = vmatprep.mubr.f32.mxu0 0.0
  %300 = vmatmul.mubr.f32.gmra.mxu0 %v37
  %v301 = vpop.f32.mrf.mxu0
  %v302 = vadd.f32 %v103, %v301
  %v303 = vpop.f32.mrf.mxu0
  %304 = vmatprep.mubr.f32.mxu0 0.0
  %305 = vmatmul.mubr.f32.gmra.mxu0 %v38
  %v306 = vpop.f32.mrf.mxu0
  %v307 = vadd.f32 %v103, %v306
  %v308 = vpop.f32.mrf.mxu0
  %309 = vmatprep.mubr.f32.mxu0 0.0
  %310 = vmatmul.mubr.f32.gmra.mxu0 %v39
  %v311 = vpop.f32.mrf.mxu0
  %v312 = vadd.f32 %v103, %v311
  %v313 = vpop.f32.mrf.mxu0
  %314 = vmatprep.mubr.f32.mxu0 0.0
  %315 = vmatmul.mubr.f32.gmra.mxu0 %v40
  %v316 = vpop.f32.mrf.mxu0
  %v317 = vadd.f32 %v103, %v316
  %v318 = vpop.f32.mrf.mxu0
  %319 = vmatprep.mubr.f32.mxu0 0.0
  %320 = vmatmul.mubr.f32.gmra.mxu0 %v41
  %v321 = vpop.f32.mrf.mxu0
  %v322 = vadd.f32 %v103, %v321
  %v323 = vpop.f32.mrf.mxu0
  %324 = vdwg.mxu0
  %325 = vst [vmem:[#allocation2] sm:$0xff] %v174
  %326 = vst [vmem:[#allocation2 + $0x8] sm:$0xff] %v176
  %327 = vst [vmem:[#allocation2 + $0x10] sm:$0xff] %v287
  %328 = vst [vmem:[#allocation2 + $0x18] sm:$0xff] %v180
  %329 = vst [vmem:[#allocation2 + $0x20] sm:$0xff] %v182
  %330 = vst [vmem:[#allocation2 + $0x28] sm:$0xff] %v292
  %331 = vst [vmem:[#allocation2 + $0x30] sm:$0xff] %v186
  %332 = vst [vmem:[#allocation2 + $0x38] sm:$0xff] %v188
  %333 = vst [vmem:[#allocation2 + $0x40] sm:$0xff] %v297
  %334 = vst [vmem:[#allocation2 + $0x48] sm:$0xff] %v192
  %335 = vst [vmem:[#allocation2 + $0x50] sm:$0xff] %v194
  %336 = vst [vmem:[#allocation2 + $0x58] sm:$0xff] %v302
  %337 = vst [vmem:[#allocation2 + $0x60] sm:$0xff] %v198
  %338 = vst [vmem:[#allocation2 + $0x68] sm:$0xff] %v200
  %339 = vst [vmem:[#allocation2 + $0x70] sm:$0xff] %v307
  %340 = vst [vmem:[#allocation2 + $0x78] sm:$0xff] %v204
  %341 = vst [vmem:[#allocation2 + $0x80] sm:$0xff] %v206
  %342 = vst [vmem:[#allocation2 + $0x88] sm:$0xff] %v312
  %343 = vst [vmem:[#allocation2 + $0x90] sm:$0xff] %v210
  %344 = vst [vmem:[#allocation2 + $0x98] sm:$0xff] %v212
  %345 = vst [vmem:[#allocation2 + $0xa0] sm:$0xff] %v317
  %346 = vst [vmem:[#allocation2 + $0xa8] sm:$0xff] %v216
  %347 = vst [vmem:[#allocation2 + $0xb0] sm:$0xff] %v218
  %348 = vst [vmem:[#allocation2 + $0xb8] sm:$0xff] %v322
  %v349 = vld [vmem:[%s2] sm:$0xff]
  %v350 = vld [vmem:[%s2 + $0x8] sm:$0xff]
  %v351 = vld [vmem:[%s2 + $0x10] sm:$0xff]
  %v352 = vld [vmem:[%s2 + $0x18] sm:$0xff]
  %v353 = vld [vmem:[%s2 + $0x20] sm:$0xff]
  %v354 = vld [vmem:[%s2 + $0x28] sm:$0xff]
  %v355 = vld [vmem:[%s2 + $0x30] sm:$0xff]
  %v356 = vld [vmem:[%s2 + $0x38] sm:$0xff]
  %v357 = vld [vmem:[%s2 + $0x40] sm:$0xff]
  %v358 = vld [vmem:[%s2 + $0x48] sm:$0xff]
  %v359 = vld [vmem:[%s2 + $0x50] sm:$0xff]
  %v360 = vld [vmem:[%s2 + $0x58] sm:$0xff]
  %v361 = vld [vmem:[%s2 + $0x60] sm:$0xff]
  %v362 = vld [vmem:[%s2 + $0x68] sm:$0xff]
  %v363 = vld [vmem:[%s2 + $0x70] sm:$0xff]
  %v364 = vld [vmem:[%s2 + $0x78] sm:$0xff]
  %v365 = vld [vmem:[%s2 + $0x80] sm:$0xff]
  %v366 = vld [vmem:[%s2 + $0x88] sm:$0xff]
  %v367 = vld [vmem:[%s2 + $0x90] sm:$0xff]
  %v368 = vld [vmem:[%s2 + $0x98] sm:$0xff]
  %v369 = vld [vmem:[%s2 + $0xa0] sm:$0xff]
  %v370 = vld [vmem:[%s2 + $0xa8] sm:$0xff]
  %v371 = vld [vmem:[%s2 + $0xb0] sm:$0xff]
  %v372 = vld [vmem:[%s2 + $0xb8] sm:$0xff]
  %v373 = vld [vmem:[%s2 + $0xc0] sm:$0xff]
  %v374 = vld [vmem:[%s2 + $0xc8] sm:$0xff]
  %v375 = vld [vmem:[%s2 + $0xd0] sm:$0xff]
  %v376 = vld [vmem:[%s2 + $0xd8] sm:$0xff]
  %v377 = vld [vmem:[%s2 + $0xe0] sm:$0xff]
  %v378 = vld [vmem:[%s2 + $0xe8] sm:$0xff]
  %v379 = vld [vmem:[%s2 + $0xf0] sm:$0xff]
  %v380 = vld [vmem:[%s2 + $0xf8] sm:$0xff]
  %v381 = vld [vmem:[%s2 + $0x100] sm:$0xff]
  %v382 = vld [vmem:[%s2 + $0x108] sm:$0xff]
  %v383 = vld [vmem:[%s2 + $0x110] sm:$0xff]
  %v384 = vld [vmem:[%s2 + $0x118] sm:$0xff]
  %v385 = vld [vmem:[%s2 + $0x120] sm:$0xff]
  %v386 = vld [vmem:[%s2 + $0x128] sm:$0xff]
  %v387 = vld [vmem:[%s2 + $0x130] sm:$0xff]
  %v388 = vld [vmem:[%s2 + $0x138] sm:$0xff]
  %v389 = vld [vmem:[%s2 + $0x140] sm:$0xff]
  %v390 = vld [vmem:[%s2 + $0x148] sm:$0xff]
  %v391 = vld [vmem:[%s2 + $0x150] sm:$0xff]
  %v392 = vld [vmem:[%s2 + $0x158] sm:$0xff]
  %v393 = vld [vmem:[%s2 + $0x160] sm:$0xff]
  %v394 = vld [vmem:[%s2 + $0x168] sm:$0xff]
  %v395 = vld [vmem:[%s2 + $0x170] sm:$0xff]
  %v396 = vld [vmem:[%s2 + $0x178] sm:$0xff]
  %v397 = vld [vmem:[%s4] sm:$0x1]
  %398 = vmatprep.subr.mxu0 %v395
  %399 = vmatpush1.msra.mxu0 %v394
  %400 = vmatprep.subr.mxu0 %v392
  %401 = vmatpush1.msra.mxu0 %v391
  %402 = vmatprep.subr.mxu0 %v389
  %403 = vmatpush1.msra.mxu0 %v388
  %404 = vmatprep.subr.mxu0 %v386
  %405 = vmatpush1.msra.mxu0 %v385
  %406 = vmatprep.subr.mxu0 %v383
  %407 = vmatpush1.msra.mxu0 %v382
  %408 = vmatprep.subr.mxu0 %v380
  %409 = vmatpush1.msra.mxu0 %v379
  %410 = vmatprep.subr.mxu0 %v377
  %411 = vmatpush1.msra.mxu0 %v376
  %412 = vmatprep.subr.mxu0 %v374
  %413 = vmatpush1.msra.mxu0 %v373
  %414 = vmatprep.subr.mxu0 %v371
  %415 = vmatpush1.msra.mxu0 %v370
  %416 = vmatprep.subr.mxu0 %v368
  %417 = vmatpush1.msra.mxu0 %v367
  %418 = vmatprep.subr.mxu0 %v365
  %419 = vmatpush1.msra.mxu0 %v364
  %420 = vmatprep.subr.mxu0 %v362
  %421 = vmatpush1.msra.mxu0 %v361
  %422 = vmatprep.subr.mxu0 %v359
  %423 = vmatpush1.msra.mxu0 %v358
  %424 = vmatprep.subr.mxu0 %v356
  %425 = vmatpush1.msra.mxu0 %v355
  %426 = vmatprep.subr.mxu0 %v353
  %427 = vmatpush1.msra.mxu0 %v352
  %428 = vmatprep.subr.mxu0 %v350
  %429 = vmatpush1.msra.mxu0 %v349
  %430 = vmatprep.subr.mxu0 0.0
  %431 = vmatpush2.msra.mxu0 0.0
  %432 = vmatprep.subr.mxu0 0.0
  %433 = vmatpush2.msra.mxu0 0.0
  %434 = vmatprep.subr.mxu0 0.0
  %435 = vmatpush2.msra.mxu0 0.0
  %436 = vmatprep.subr.mxu0 0.0
  %437 = vmatpush2.msra.mxu0 0.0
  %438 = vmatprep.subr.mxu0 0.0
  %439 = vmatpush2.msra.mxu0 0.0
  %440 = vmatprep.subr.mxu0 0.0
  %441 = vmatpush2.msra.mxu0 0.0
  %442 = vmatprep.subr.mxu0 0.0
  %443 = vmatpush2.msra.mxu0 0.0
  %444 = vmatprep.subr.mxu0 0.0
  %445 = vmatpush2.msra.mxu0 0.0
  %446 = vmatprep.subr.mxu0 0.0
  %447 = vmatpush2.msra.mxu0 0.0
  %448 = vmatprep.subr.mxu0 0.0
  %449 = vmatpush2.msra.mxu0 0.0
  %450 = vmatprep.subr.mxu0 0.0
  %451 = vmatpush2.msra.mxu0 0.0
  %452 = vmatprep.subr.mxu0 0.0
  %453 = vmatpush2.msra.mxu0 0.0
  %454 = vmatprep.subr.mxu0 0.0
  %455 = vmatpush2.msra.mxu0 0.0
  %456 = vmatprep.subr.mxu0 0.0
  %457 = vmatpush2.msra.mxu0 0.0
  %458 = vmatprep.subr.mxu0 0.0
  %459 = vmatpush2.msra.mxu0 0.0
  %460 = vmatprep.subr.mxu0 0.0
  %461 = vmatpush2.msra.mxu0 0.0
  %462 = vmatprep.mubr.f32.mxu0 0.0
  %463 = vmatmul.mubr.f32.gmra.mxu0 0.0
  %v464 = vpop.f32.mrf.mxu0
  %v465 = vadd.f32 0.0, %v464
  %v466 = vpop.f32.mrf.mxu0
  %v467 = vadd.f32 0.0, %v466
  %468 = vdwg.mxu0
  %469 = vmatprep.subr.mxu0 0.0
  %470 = vmatpush1.msra.mxu0 %v396
  %471 = vmatprep.subr.mxu0 0.0
  %472 = vmatpush1.msra.mxu0 %v393
  %473 = vmatprep.subr.mxu0 0.0
  %474 = vmatpush1.msra.mxu0 %v390
  %475 = vmatprep.subr.mxu0 0.0
  %476 = vmatpush1.msra.mxu0 %v387
  %477 = vmatprep.subr.mxu0 0.0
  %478 = vmatpush1.msra.mxu0 %v384
  %479 = vmatprep.subr.mxu0 0.0
  %480 = vmatpush1.msra.mxu0 %v381
  %481 = vmatprep.subr.mxu0 0.0
  %482 = vmatpush1.msra.mxu0 %v378
  %483 = vmatprep.subr.mxu0 0.0
  %484 = vmatpush1.msra.mxu0 %v375
  %485 = vmatprep.subr.mxu0 0.0
  %486 = vmatpush1.msra.mxu0 %v372
  %487 = vmatprep.subr.mxu0 0.0
  %488 = vmatpush1.msra.mxu0 %v369
  %489 = vmatprep.subr.mxu0 0.0
  %490 = vmatpush1.msra.mxu0 %v366
  %491 = vmatprep.subr.mxu0 0.0
  %492 = vmatpush1.msra.mxu0 %v363
  %493 = vmatprep.subr.mxu0 0.0
  %494 = vmatpush1.msra.mxu0 %v360
  %495 = vmatprep.subr.mxu0 0.0
  %496 = vmatpush1.msra.mxu0 %v357
  %497 = vmatprep.subr.mxu0 0.0
  %498 = vmatpush1.msra.mxu0 %v354
  %499 = vmatprep.subr.mxu0 0.0
  %500 = vmatpush1.msra.mxu0 %v351
  %501 = vmatprep.subr.mxu0 0.0
  %502 = vmatpush2.msra.mxu0 0.0
  %503 = vmatprep.subr.mxu0 0.0
  %504 = vmatpush2.msra.mxu0 0.0
  %505 = vmatprep.subr.mxu0 0.0
  %506 = vmatpush2.msra.mxu0 0.0
  %507 = vmatprep.subr.mxu0 0.0
  %508 = vmatpush2.msra.mxu0 0.0
  %509 = vmatprep.subr.mxu0 0.0
  %510 = vmatpush2.msra.mxu0 0.0
  %511 = vmatprep.subr.mxu0 0.0
  %512 = vmatpush2.msra.mxu0 0.0
  %513 = vmatprep.subr.mxu0 0.0
  %514 = vmatpush2.msra.mxu0 0.0
  %515 = vmatprep.subr.mxu0 0.0
  %516 = vmatpush2.msra.mxu0 0.0
  %517 = vmatprep.subr.mxu0 0.0
  %518 = vmatpush2.msra.mxu0 0.0
  %519 = vmatprep.subr.mxu0 0.0
  %520 = vmatpush2.msra.mxu0 0.0
  %521 = vmatprep.subr.mxu0 0.0
  %522 = vmatpush2.msra.mxu0 0.0
  %523 = vmatprep.subr.mxu0 0.0
  %524 = vmatpush2.msra.mxu0 0.0
  %525 = vmatprep.subr.mxu0 0.0
  %526 = vmatpush2.msra.mxu0 0.0
  %527 = vmatprep.subr.mxu0 0.0
  %528 = vmatpush2.msra.mxu0 0.0
  %529 = vmatprep.subr.mxu0 0.0
  %530 = vmatpush2.msra.mxu0 0.0
  %531 = vmatprep.subr.mxu0 0.0
  %532 = vmatpush2.msra.mxu0 0.0
  %533 = vmatprep.mubr.f32.mxu0 0.0
  %534 = vmatmul.mubr.f32.gmra.mxu0 0.0
  %v535 = vpop.f32.mrf.mxu0
  %v536 = vadd.f32 0.0, %v535
  %v537 = vpop.f32.mrf.mxu0
  %538 = vdwg.mxu0
  %v539 = vld [vmem:[#allocation2] sm:$0xff]
  %v540 = vld [vmem:[#allocation2 + $0x8] sm:$0xff]
  %v541 = vld [vmem:[#allocation2 + $0x10] sm:$0xff]
  %v542 = vadd.f32 %v539, %v465
  %v543 = vxor.u32 %v542, 2147483648
  %v544 = vmul.f32 %v543, 1.442695
  %v545 = vpow.pop %v544
  %v546 = vadd.f32 %v545, 1.0
  %v547 = vrcp.pop %v546
  %v548 = vmul.f32 1.0, %v547
  %v549 = vadd.f32 %v540, %v467
  %v550 = vxor.u32 %v549, 2147483648
  %v551 = vmul.f32 %v550, 1.442695
  %v552 = vpow.pop %v551
  %v553 = vadd.f32 %v552, 1.0
  %v554 = vrcp.pop %v553
  %v555 = vmul.f32 1.0, %v554
  %v557 = vlaneseq
  %v558 = vshrl.u32 %v557, 7
  %v559 = vsub.s32 0, %v558
  %v560 = vrot.slane %v397, %v559
  %v562 = vadd.f32 %v536, %v560
  %v563 = vmul.f32 %v548, %v562
  %v564 = vadd.f32 %v541, %v563
  %v565 = vtanh.pop %v564
  %v566 = vsub.f32 1.0, %v555
  %v567 = vmul.f32 %v566, %v565
  %v568 = vmul.f32 %v555, 0.0
  %v569 = vadd.f32 %v567, %v568
  %570 = vst [vmem:[#allocation3] sm:$0xff] %v569
  %571 = vmatprep.subr.mxu0 %v395
  %572 = vmatpush1.msra.mxu0 %v394
  %573 = vmatprep.subr.mxu0 %v392
  %574 = vmatpush1.msra.mxu0 %v391
  %575 = vmatprep.subr.mxu0 %v389
  %576 = vmatpush1.msra.mxu0 %v388
  %577 = vmatprep.subr.mxu0 %v386
  %578 = vmatpush1.msra.mxu0 %v385
  %579 = vmatprep.subr.mxu0 %v383
  %580 = vmatpush1.msra.mxu0 %v382
  %581 = vmatprep.subr.mxu0 %v380
  %582 = vmatpush1.msra.mxu0 %v379
  %583 = vmatprep.subr.mxu0 %v377
  %584 = vmatpush1.msra.mxu0 %v376
  %585 = vmatprep.subr.mxu0 %v374
  %586 = vmatpush1.msra.mxu0 %v373
  %587 = vmatprep.subr.mxu0 %v371
  %588 = vmatpush1.msra.mxu0 %v370
  %589 = vmatprep.subr.mxu0 %v368
  %590 = vmatpush1.msra.mxu0 %v367
  %591 = vmatprep.subr.mxu0 %v365
  %592 = vmatpush1.msra.mxu0 %v364
  %593 = vmatprep.subr.mxu0 %v362
  %594 = vmatpush1.msra.mxu0 %v361
  %595 = vmatprep.subr.mxu0 %v359
  %596 = vmatpush1.msra.mxu0 %v358
  %597 = vmatprep.subr.mxu0 %v356
  %598 = vmatpush1.msra.mxu0 %v355
  %599 = vmatprep.subr.mxu0 %v353
  %600 = vmatpush1.msra.mxu0 %v352
  %601 = vmatprep.subr.mxu0 %v350
  %602 = vmatpush1.msra.mxu0 %v349
  %603 = vmatprep.subr.mxu0 0.0
  %604 = vmatpush2.msra.mxu0 0.0
  %605 = vmatprep.subr.mxu0 0.0
  %606 = vmatpush2.msra.mxu0 0.0
  %607 = vmatprep.subr.mxu0 0.0
  %608 = vmatpush2.msra.mxu0 0.0
  %609 = vmatprep.subr.mxu0 0.0
  %610 = vmatpush2.msra.mxu0 0.0
  %611 = vmatprep.subr.mxu0 0.0
  %612 = vmatpush2.msra.mxu0 0.0
  %613 = vmatprep.subr.mxu0 0.0
  %614 = vmatpush2.msra.mxu0 0.0
  %615 = vmatprep.subr.mxu0 0.0
  %616 = vmatpush2.msra.mxu0 0.0
  %617 = vmatprep.subr.mxu0 0.0
  %618 = vmatpush2.msra.mxu0 0.0
  %619 = vmatprep.subr.mxu0 0.0
  %620 = vmatpush2.msra.mxu0 0.0
  %621 = vmatprep.subr.mxu0 0.0
  %622 = vmatpush2.msra.mxu0 0.0
  %623 = vmatprep.subr.mxu0 0.0
  %624 = vmatpush2.msra.mxu0 0.0
  %625 = vmatprep.subr.mxu0 0.0
  %626 = vmatpush2.msra.mxu0 0.0
  %627 = vmatprep.subr.mxu0 0.0
  %628 = vmatpush2.msra.mxu0 0.0
  %629 = vmatprep.subr.mxu0 0.0
  %630 = vmatpush2.msra.mxu0 0.0
  %631 = vmatprep.subr.mxu0 0.0
  %632 = vmatpush2.msra.mxu0 0.0
  %633 = vmatprep.subr.mxu0 0.0
  %634 = vmatpush2.msra.mxu0 0.0
  %635 = vmatprep.mubr.f32.mxu0 0.0
  %636 = vmatmul.mubr.f32.gmra.mxu0 %v569
  %v637 = vpop.f32.mrf.mxu0
  %v638 = vadd.f32 0.0, %v637
  %v639 = vpop.f32.mrf.mxu0
  %v640 = vadd.f32 0.0, %v639
  %641 = vdwg.mxu0
  %642 = vmatprep.subr.mxu0 0.0
  %643 = vmatpush1.msra.mxu0 %v396
  %644 = vmatprep.subr.mxu0 0.0
  %645 = vmatpush1.msra.mxu0 %v393
  %646 = vmatprep.subr.mxu0 0.0
  %647 = vmatpush1.msra.mxu0 %v390
  %648 = vmatprep.subr.mxu0 0.0
  %649 = vmatpush1.msra.mxu0 %v387
  %650 = vmatprep.subr.mxu0 0.0
  %651 = vmatpush1.msra.mxu0 %v384
  %652 = vmatprep.subr.mxu0 0.0
  %653 = vmatpush1.msra.mxu0 %v381
  %654 = vmatprep.subr.mxu0 0.0
  %655 = vmatpush1.msra.mxu0 %v378
  %656 = vmatprep.subr.mxu0 0.0
  %657 = vmatpush1.msra.mxu0 %v375
  %658 = vmatprep.subr.mxu0 0.0
  %659 = vmatpush1.msra.mxu0 %v372
  %660 = vmatprep.subr.mxu0 0.0
  %661 = vmatpush1.msra.mxu0 %v369
  %662 = vmatprep.subr.mxu0 0.0
  %663 = vmatpush1.msra.mxu0 %v366
  %664 = vmatprep.subr.mxu0 0.0
  %665 = vmatpush1.msra.mxu0 %v363
  %666 = vmatprep.subr.mxu0 0.0
  %667 = vmatpush1.msra.mxu0 %v360
  %668 = vmatprep.subr.mxu0 0.0
  %669 = vmatpush1.msra.mxu0 %v357
  %670 = vmatprep.subr.mxu0 0.0
  %671 = vmatpush1.msra.mxu0 %v354
  %672 = vmatprep.subr.mxu0 0.0
  %673 = vmatpush1.msra.mxu0 %v351
  %674 = vmatprep.subr.mxu0 0.0
  %675 = vmatpush2.msra.mxu0 0.0
  %676 = vmatprep.subr.mxu0 0.0
  %677 = vmatpush2.msra.mxu0 0.0
  %678 = vmatprep.subr.mxu0 0.0
  %679 = vmatpush2.msra.mxu0 0.0
  %680 = vmatprep.subr.mxu0 0.0
  %681 = vmatpush2.msra.mxu0 0.0
  %682 = vmatprep.subr.mxu0 0.0
  %683 = vmatpush2.msra.mxu0 0.0
  %684 = vmatprep.subr.mxu0 0.0
  %685 = vmatpush2.msra.mxu0 0.0
  %686 = vmatprep.subr.mxu0 0.0
  %687 = vmatpush2.msra.mxu0 0.0
  %688 = vmatprep.subr.mxu0 0.0
  %689 = vmatpush2.msra.mxu0 0.0
  %690 = vmatprep.subr.mxu0 0.0
  %691 = vmatpush2.msra.mxu0 0.0
  %692 = vmatprep.subr.mxu0 0.0
  %693 = vmatpush2.msra.mxu0 0.0
  %694 = vmatprep.subr.mxu0 0.0
  %695 = vmatpush2.msra.mxu0 0.0
  %696 = vmatprep.subr.mxu0 0.0
  %697 = vmatpush2.msra.mxu0 0.0
  %698 = vmatprep.subr.mxu0 0.0
  %699 = vmatpush2.msra.mxu0 0.0
  %700 = vmatprep.subr.mxu0 0.0
  %701 = vmatpush2.msra.mxu0 0.0
  %702 = vmatprep.subr.mxu0 0.0
  %703 = vmatpush2.msra.mxu0 0.0
  %704 = vmatprep.subr.mxu0 0.0
  %705 = vmatpush2.msra.mxu0 0.0
  %706 = vmatprep.mubr.f32.mxu0 0.0
  %707 = vmatmul.mubr.f32.gmra.mxu0 %v569
  %v708 = vpop.f32.mrf.mxu0
  %v709 = vadd.f32 0.0, %v708
  %v710 = vpop.f32.mrf.mxu0
  %711 = vdwg.mxu0
  %v712 = vld [vmem:[#allocation2 + $0x18] sm:$0xff]
  %v713 = vld [vmem:[#allocation2 + $0x20] sm:$0xff]
  %v714 = vld [vmem:[#allocation2 + $0x28] sm:$0xff]
  %v715 = vadd.f32 %v712, %v638
  %v716 = vxor.u32 %v715, 2147483648
  %v717 = vmul.f32 %v716, 1.442695
  %v718 = vpow.pop %v717
  %v719 = vadd.f32 %v718, 1.0
  %v720 = vrcp.pop %v719
  %v721 = vmul.f32 1.0, %v720
  %v722 = vadd.f32 %v713, %v640
  %v723 = vxor.u32 %v722, 2147483648
  %v724 = vmul.f32 %v723, 1.442695
  %v725 = vpow.pop %v724
  %v726 = vadd.f32 %v725, 1.0
  %v727 = vrcp.pop %v726
  %v728 = vmul.f32 1.0, %v727
  %v729 = vadd.f32 %v709, %v560
  %v730 = vmul.f32 %v721, %v729
  %v731 = vadd.f32 %v714, %v730
  %v732 = vtanh.pop %v731
  %v733 = vsub.f32 1.0, %v728
  %v734 = vmul.f32 %v733, %v732
  %v735 = vmul.f32 %v728, %v569
  %v736 = vadd.f32 %v734, %v735
  %737 = vst [vmem:[#allocation3 + $0x8] sm:$0xff] %v736
  %738 = vmatprep.subr.mxu0 %v395
  %739 = vmatpush1.msra.mxu0 %v394
  %740 = vmatprep.subr.mxu0 %v392
  %741 = vmatpush1.msra.mxu0 %v391
  %742 = vmatprep.subr.mxu0 %v389
  %743 = vmatpush1.msra.mxu0 %v388
  %744 = vmatprep.subr.mxu0 %v386
  %745 = vmatpush1.msra.mxu0 %v385
  %746 = vmatprep.subr.mxu0 %v383
  %747 = vmatpush1.msra.mxu0 %v382
  %748 = vmatprep.subr.mxu0 %v380
  %749 = vmatpush1.msra.mxu0 %v379
  %750 = vmatprep.subr.mxu0 %v377
  %751 = vmatpush1.msra.mxu0 %v376
  %752 = vmatprep.subr.mxu0 %v374
  %753 = vmatpush1.msra.mxu0 %v373
  %754 = vmatprep.subr.mxu0 %v371
  %755 = vmatpush1.msra.mxu0 %v370
  %756 = vmatprep.subr.mxu0 %v368
  %757 = vmatpush1.msra.mxu0 %v367
  %758 = vmatprep.subr.mxu0 %v365
  %759 = vmatpush1.msra.mxu0 %v364
  %760 = vmatprep.subr.mxu0 %v362
  %761 = vmatpush1.msra.mxu0 %v361
  %762 = vmatprep.subr.mxu0 %v359
  %763 = vmatpush1.msra.mxu0 %v358
  %764 = vmatprep.subr.mxu0 %v356
  %765 = vmatpush1.msra.mxu0 %v355
  %766 = vmatprep.subr.mxu0 %v353
  %767 = vmatpush1.msra.mxu0 %v352
  %768 = vmatprep.subr.mxu0 %v350
  %769 = vmatpush1.msra.mxu0 %v349
  %770 = vmatprep.subr.mxu0 0.0
  %771 = vmatpush2.msra.mxu0 0.0
  %772 = vmatprep.subr.mxu0 0.0
  %773 = vmatpush2.msra.mxu0 0.0
  %774 = vmatprep.subr.mxu0 0.0
  %775 = vmatpush2.msra.mxu0 0.0
  %776 = vmatprep.subr.mxu0 0.0
  %777 = vmatpush2.msra.mxu0 0.0
  %778 = vmatprep.subr.mxu0 0.0
  %779 = vmatpush2.msra.mxu0 0.0
  %780 = vmatprep.subr.mxu0 0.0
  %781 = vmatpush2.msra.mxu0 0.0
  %782 = vmatprep.subr.mxu0 0.0
  %783 = vmatpush2.msra.mxu0 0.0
  %784 = vmatprep.subr.mxu0 0.0
  %785 = vmatpush2.msra.mxu0 0.0
  %786 = vmatprep.subr.mxu0 0.0
  %787 = vmatpush2.msra.mxu0 0.0
  %788 = vmatprep.subr.mxu0 0.0
  %789 = vmatpush2.msra.mxu0 0.0
  %790 = vmatprep.subr.mxu0 0.0
  %791 = vmatpush2.msra.mxu0 0.0
  %792 = vmatprep.subr.mxu0 0.0
  %793 = vmatpush2.msra.mxu0 0.0
  %794 = vmatprep.subr.mxu0 0.0
  %795 = vmatpush2.msra.mxu0 0.0
  %796 = vmatprep.subr.mxu0 0.0
  %797 = vmatpush2.msra.mxu0 0.0
  %798 = vmatprep.subr.mxu0 0.0
  %799 = vmatpush2.msra.mxu0 0.0
  %800 = vmatprep.subr.mxu0 0.0
  %801 = vmatpush2.msra.mxu0 0.0
  %802 = vmatprep.mubr.f32.mxu0 0.0
  %803 = vmatmul.mubr.f32.gmra.mxu0 %v736
  %v804 = vpop.f32.mrf.mxu0
  %v805 = vadd.f32 0.0, %v804
  %v806 = vpop.f32.mrf.mxu0
  %v807 = vadd.f32 0.0, %v806
  %808 = vdwg.mxu0
  %809 = vmatprep.subr.mxu0 0.0
  %810 = vmatpush1.msra.mxu0 %v396
  %811 = vmatprep.subr.mxu0 0.0
  %812 = vmatpush1.msra.mxu0 %v393
  %813 = vmatprep.subr.mxu0 0.0
  %814 = vmatpush1.msra.mxu0 %v390
  %815 = vmatprep.subr.mxu0 0.0
  %816 = vmatpush1.msra.mxu0 %v387
  %817 = vmatprep.subr.mxu0 0.0
  %818 = vmatpush1.msra.mxu0 %v384
  %819 = vmatprep.subr.mxu0 0.0
  %820 = vmatpush1.msra.mxu0 %v381
  %821 = vmatprep.subr.mxu0 0.0
  %822 = vmatpush1.msra.mxu0 %v378
  %823 = vmatprep.subr.mxu0 0.0
  %824 = vmatpush1.msra.mxu0 %v375
  %825 = vmatprep.subr.mxu0 0.0
  %826 = vmatpush1.msra.mxu0 %v372
  %827 = vmatprep.subr.mxu0 0.0
  %828 = vmatpush1.msra.mxu0 %v369
  %829 = vmatprep.subr.mxu0 0.0
  %830 = vmatpush1.msra.mxu0 %v366
  %831 = vmatprep.subr.mxu0 0.0
  %832 = vmatpush1.msra.mxu0 %v363
  %833 = vmatprep.subr.mxu0 0.0
  %834 = vmatpush1.msra.mxu0 %v360
  %835 = vmatprep.subr.mxu0 0.0
  %836 = vmatpush1.msra.mxu0 %v357
  %837 = vmatprep.subr.mxu0 0.0
  %838 = vmatpush1.msra.mxu0 %v354
  %839 = vmatprep.subr.mxu0 0.0
  %840 = vmatpush1.msra.mxu0 %v351
  %841 = vmatprep.subr.mxu0 0.0
  %842 = vmatpush2.msra.mxu0 0.0
  %843 = vmatprep.subr.mxu0 0.0
  %844 = vmatpush2.msra.mxu0 0.0
  %845 = vmatprep.subr.mxu0 0.0
  %846 = vmatpush2.msra.mxu0 0.0
  %847 = vmatprep.subr.mxu0 0.0
  %848 = vmatpush2.msra.mxu0 0.0
  %849 = vmatprep.subr.mxu0 0.0
  %850 = vmatpush2.msra.mxu0 0.0
  %851 = vmatprep.subr.mxu0 0.0
  %852 = vmatpush2.msra.mxu0 0.0
  %853 = vmatprep.subr.mxu0 0.0
  %854 = vmatpush2.msra.mxu0 0.0
  %855 = vmatprep.subr.mxu0 0.0
  %856 = vmatpush2.msra.mxu0 0.0
  %857 = vmatprep.subr.mxu0 0.0
  %858 = vmatpush2.msra.mxu0 0.0
  %859 = vmatprep.subr.mxu0 0.0
  %860 = vmatpush2.msra.mxu0 0.0
  %861 = vmatprep.subr.mxu0 0.0
  %862 = vmatpush2.msra.mxu0 0.0
  %863 = vmatprep.subr.mxu0 0.0
  %864 = vmatpush2.msra.mxu0 0.0
  %865 = vmatprep.subr.mxu0 0.0
  %866 = vmatpush2.msra.mxu0 0.0
  %867 = vmatprep.subr.mxu0 0.0
  %868 = vmatpush2.msra.mxu0 0.0
  %869 = vmatprep.subr.mxu0 0.0
  %870 = vmatpush2.msra.mxu0 0.0
  %871 = vmatprep.subr.mxu0 0.0
  %872 = vmatpush2.msra.mxu0 0.0
  %873 = vmatprep.mubr.f32.mxu0 0.0
  %874 = vmatmul.mubr.f32.gmra.mxu0 %v736
  %v875 = vpop.f32.mrf.mxu0
  %v876 = vadd.f32 0.0, %v875
  %v877 = vpop.f32.mrf.mxu0
  %878 = vdwg.mxu0
  %v879 = vld [vmem:[#allocation2 + $0x30] sm:$0xff]
  %v880 = vld [vmem:[#allocation2 + $0x38] sm:$0xff]
  %v881 = vld [vmem:[#allocation2 + $0x40] sm:$0xff]
  %v882 = vadd.f32 %v879, %v805
  %v883 = vxor.u32 %v882, 2147483648
  %v884 = vmul.f32 %v883, 1.442695
  %v885 = vpow.pop %v884
  %v886 = vadd.f32 %v885, 1.0
  %v887 = vrcp.pop %v886
  %v888 = vmul.f32 1.0, %v887
  %v889 = vadd.f32 %v880, %v807
  %v890 = vxor.u32 %v889, 2147483648
  %v891 = vmul.f32 %v890, 1.442695
  %v892 = vpow.pop %v891
  %v893 = vadd.f32 %v892, 1.0
  %v894 = vrcp.pop %v893
  %v895 = vmul.f32 1.0, %v894
  %v896 = vadd.f32 %v876, %v560
  %v897 = vmul.f32 %v888, %v896
  %v898 = vadd.f32 %v881, %v897
  %v899 = vtanh.pop %v898
  %v900 = vsub.f32 1.0, %v895
  %v901 = vmul.f32 %v900, %v899
  %v902 = vmul.f32 %v895, %v736
  %v903 = vadd.f32 %v901, %v902
  %904 = vst [vmem:[#allocation3 + $0x10] sm:$0xff] %v903
  %905 = vmatprep.subr.mxu0 %v395
  %906 = vmatpush1.msra.mxu0 %v394
  %907 = vmatprep.subr.mxu0 %v392
  %908 = vmatpush1.msra.mxu0 %v391
  %909 = vmatprep.subr.mxu0 %v389
  %910 = vmatpush1.msra.mxu0 %v388
  %911 = vmatprep.subr.mxu0 %v386
  %912 = vmatpush1.msra.mxu0 %v385
  %913 = vmatprep.subr.mxu0 %v383
  %914 = vmatpush1.msra.mxu0 %v382
  %915 = vmatprep.subr.mxu0 %v380
  %916 = vmatpush1.msra.mxu0 %v379
  %917 = vmatprep.subr.mxu0 %v377
  %918 = vmatpush1.msra.mxu0 %v376
  %919 = vmatprep.subr.mxu0 %v374
  %920 = vmatpush1.msra.mxu0 %v373
  %921 = vmatprep.subr.mxu0 %v371
  %922 = vmatpush1.msra.mxu0 %v370
  %923 = vmatprep.subr.mxu0 %v368
  %924 = vmatpush1.msra.mxu0 %v367
  %925 = vmatprep.subr.mxu0 %v365
  %926 = vmatpush1.msra.mxu0 %v364
  %927 = vmatprep.subr.mxu0 %v362
  %928 = vmatpush1.msra.mxu0 %v361
  %929 = vmatprep.subr.mxu0 %v359
  %930 = vmatpush1.msra.mxu0 %v358
  %931 = vmatprep.subr.mxu0 %v356
  %932 = vmatpush1.msra.mxu0 %v355
  %933 = vmatprep.subr.mxu0 %v353
  %934 = vmatpush1.msra.mxu0 %v352
  %935 = vmatprep.subr.mxu0 %v350
  %936 = vmatpush1.msra.mxu0 %v349
  %937 = vmatprep.subr.mxu0 0.0
  %938 = vmatpush2.msra.mxu0 0.0
  %939 = vmatprep.subr.mxu0 0.0
  %940 = vmatpush2.msra.mxu0 0.0
  %941 = vmatprep.subr.mxu0 0.0
  %942 = vmatpush2.msra.mxu0 0.0
  %943 = vmatprep.subr.mxu0 0.0
  %944 = vmatpush2.msra.mxu0 0.0
  %945 = vmatprep.subr.mxu0 0.0
  %946 = vmatpush2.msra.mxu0 0.0
  %947 = vmatprep.subr.mxu0 0.0
  %948 = vmatpush2.msra.mxu0 0.0
  %949 = vmatprep.subr.mxu0 0.0
  %950 = vmatpush2.msra.mxu0 0.0
  %951 = vmatprep.subr.mxu0 0.0
  %952 = vmatpush2.msra.mxu0 0.0
  %953 = vmatprep.subr.mxu0 0.0
  %954 = vmatpush2.msra.mxu0 0.0
  %955 = vmatprep.subr.mxu0 0.0
  %956 = vmatpush2.msra.mxu0 0.0
  %957 = vmatprep.subr.mxu0 0.0
  %958 = vmatpush2.msra.mxu0 0.0
  %959 = vmatprep.subr.mxu0 0.0
  %960 = vmatpush2.msra.mxu0 0.0
  %961 = vmatprep.subr.mxu0 0.0
  %962 = vmatpush2.msra.mxu0 0.0
  %963 = vmatprep.subr.mxu0 0.0
  %964 = vmatpush2.msra.mxu0 0.0
  %965 = vmatprep.subr.mxu0 0.0
  %966 = vmatpush2.msra.mxu0 0.0
  %967 = vmatprep.subr.mxu0 0.0
  %968 = vmatpush2.msra.mxu0 0.0
  %969 = vmatprep.mubr.f32.mxu0 0.0
  %970 = vmatmul.mubr.f32.gmra.mxu0 %v903
  %v971 = vpop.f32.mrf.mxu0
  %v972 = vadd.f32 0.0, %v971
  %v973 = vpop.f32.mrf.mxu0
  %v974 = vadd.f32 0.0, %v973
  %975 = vdwg.mxu0
  %976 = vmatprep.subr.mxu0 0.0
  %977 = vmatpush1.msra.mxu0 %v396
  %978 = vmatprep.subr.mxu0 0.0
  %979 = vmatpush1.msra.mxu0 %v393
  %980 = vmatprep.subr.mxu0 0.0
  %981 = vmatpush1.msra.mxu0 %v390
  %982 = vmatprep.subr.mxu0 0.0
  %983 = vmatpush1.msra.mxu0 %v387
  %984 = vmatprep.subr.mxu0 0.0
  %985 = vmatpush1.msra.mxu0 %v384
  %986 = vmatprep.subr.mxu0 0.0
  %987 = vmatpush1.msra.mxu0 %v381
  %988 = vmatprep.subr.mxu0 0.0
  %989 = vmatpush1.msra.mxu0 %v378
  %990 = vmatprep.subr.mxu0 0.0
  %991 = vmatpush1.msra.mxu0 %v375
  %992 = vmatprep.subr.mxu0 0.0
  %993 = vmatpush1.msra.mxu0 %v372
  %994 = vmatprep.subr.mxu0 0.0
  %995 = vmatpush1.msra.mxu0 %v369
  %996 = vmatprep.subr.mxu0 0.0
  %997 = vmatpush1.msra.mxu0 %v366
  %998 = vmatprep.subr.mxu0 0.0
  %999 = vmatpush1.msra.mxu0 %v363
  %1000 = vmatprep.subr.mxu0 0.0
  %1001 = vmatpush1.msra.mxu0 %v360
  %1002 = vmatprep.subr.mxu0 0.0
  %1003 = vmatpush1.msra.mxu0 %v357
  %1004 = vmatprep.subr.mxu0 0.0
  %1005 = vmatpush1.msra.mxu0 %v354
  %1006 = vmatprep.subr.mxu0 0.0
  %1007 = vmatpush1.msra.mxu0 %v351
  %1008 = vmatprep.subr.mxu0 0.0
  %1009 = vmatpush2.msra.mxu0 0.0
  %1010 = vmatprep.subr.mxu0 0.0
  %1011 = vmatpush2.msra.mxu0 0.0
  %1012 = vmatprep.subr.mxu0 0.0
  %1013 = vmatpush2.msra.mxu0 0.0
  %1014 = vmatprep.subr.mxu0 0.0
  %1015 = vmatpush2.msra.mxu0 0.0
  %1016 = vmatprep.subr.mxu0 0.0
  %1017 = vmatpush2.msra.mxu0 0.0
  %1018 = vmatprep.subr.mxu0 0.0
  %1019 = vmatpush2.msra.mxu0 0.0
  %1020 = vmatprep.subr.mxu0 0.0
  %1021 = vmatpush2.msra.mxu0 0.0
  %1022 = vmatprep.subr.mxu0 0.0
  %1023 = vmatpush2.msra.mxu0 0.0
  %1024 = vmatprep.subr.mxu0 0.0
  %1025 = vmatpush2.msra.mxu0 0.0
  %1026 = vmatprep.subr.mxu0 0.0
  %1027 = vmatpush2.msra.mxu0 0.0
  %1028 = vmatprep.subr.mxu0 0.0
  %1029 = vmatpush2.msra.mxu0 0.0
  %1030 = vmatprep.subr.mxu0 0.0
  %1031 = vmatpush2.msra.mxu0 0.0
  %1032 = vmatprep.subr.mxu0 0.0
  %1033 = vmatpush2.msra.mxu0 0.0
  %1034 = vmatprep.subr.mxu0 0.0
  %1035 = vmatpush2.msra.mxu0 0.0
  %1036 = vmatprep.subr.mxu0 0.0
  %1037 = vmatpush2.msra.mxu0 0.0
  %1038 = vmatprep.subr.mxu0 0.0
  %1039 = vmatpush2.msra.mxu0 0.0
  %1040 = vmatprep.mubr.f32.mxu0 0.0
  %1041 = vmatmul.mubr.f32.gmra.mxu0 %v903
  %v1042 = vpop.f32.mrf.mxu0
  %v1043 = vadd.f32 0.0, %v1042
  %v1044 = vpop.f32.mrf.mxu0
  %1045 = vdwg.mxu0
  %v1046 = vld [vmem:[#allocation2 + $0x48] sm:$0xff]
  %v1047 = vld [vmem:[#allocation2 + $0x50] sm:$0xff]
  %v1048 = vld [vmem:[#allocation2 + $0x58] sm:$0xff]
  %v1049 = vadd.f32 %v1046, %v972
  %v1050 = vxor.u32 %v1049, 2147483648
  %v1051 = vmul.f32 %v1050, 1.442695
  %v1052 = vpow.pop %v1051
  %v1053 = vadd.f32 %v1052, 1.0
  %v1054 = vrcp.pop %v1053
  %v1055 = vmul.f32 1.0, %v1054
  %v1056 = vadd.f32 %v1047, %v974
  %v1057 = vxor.u32 %v1056, 2147483648
  %v1058 = vmul.f32 %v1057, 1.442695
  %v1059 = vpow.pop %v1058
  %v1060 = vadd.f32 %v1059, 1.0
  %v1061 = vrcp.pop %v1060
  %v1062 = vmul.f32 1.0, %v1061
  %v1063 = vadd.f32 %v1043, %v560
  %v1064 = vmul.f32 %v1055, %v1063
  %v1065 = vadd.f32 %v1048, %v1064
  %v1066 = vtanh.pop %v1065
  %v1067 = vsub.f32 1.0, %v1062
  %v1068 = vmul.f32 %v1067, %v1066
  %v1069 = vmul.f32 %v1062, %v903
  %v1070 = vadd.f32 %v1068, %v1069
  %1071 = vst [vmem:[#allocation3 + $0x18] sm:$0xff] %v1070
  %1072 = vmatprep.subr.mxu0 %v395
  %1073 = vmatpush1.msra.mxu0 %v394
  %1074 = vmatprep.subr.mxu0 %v392
  %1075 = vmatpush1.msra.mxu0 %v391
  %1076 = vmatprep.subr.mxu0 %v389
  %1077 = vmatpush1.msra.mxu0 %v388
  %1078 = vmatprep.subr.mxu0 %v386
  %1079 = vmatpush1.msra.mxu0 %v385
  %1080 = vmatprep.subr.mxu0 %v383
  %1081 = vmatpush1.msra.mxu0 %v382
  %1082 = vmatprep.subr.mxu0 %v380
  %1083 = vmatpush1.msra.mxu0 %v379
  %1084 = vmatprep.subr.mxu0 %v377
  %1085 = vmatpush1.msra.mxu0 %v376
  %1086 = vmatprep.subr.mxu0 %v374
  %1087 = vmatpush1.msra.mxu0 %v373
  %1088 = vmatprep.subr.mxu0 %v371
  %1089 = vmatpush1.msra.mxu0 %v370
  %1090 = vmatprep.subr.mxu0 %v368
  %1091 = vmatpush1.msra.mxu0 %v367
  %1092 = vmatprep.subr.mxu0 %v365
  %1093 = vmatpush1.msra.mxu0 %v364
  %1094 = vmatprep.subr.mxu0 %v362
  %1095 = vmatpush1.msra.mxu0 %v361
  %1096 = vmatprep.subr.mxu0 %v359
  %1097 = vmatpush1.msra.mxu0 %v358
  %1098 = vmatprep.subr.mxu0 %v356
  %1099 = vmatpush1.msra.mxu0 %v355
  %1100 = vmatprep.subr.mxu0 %v353
  %1101 = vmatpush1.msra.mxu0 %v352
  %1102 = vmatprep.subr.mxu0 %v350
  %1103 = vmatpush1.msra.mxu0 %v349
  %1104 = vmatprep.subr.mxu0 0.0
  %1105 = vmatpush2.msra.mxu0 0.0
  %1106 = vmatprep.subr.mxu0 0.0
  %1107 = vmatpush2.msra.mxu0 0.0
  %1108 = vmatprep.subr.mxu0 0.0
  %1109 = vmatpush2.msra.mxu0 0.0
  %1110 = vmatprep.subr.mxu0 0.0
  %1111 = vmatpush2.msra.mxu0 0.0
  %1112 = vmatprep.subr.mxu0 0.0
  %1113 = vmatpush2.msra.mxu0 0.0
  %1114 = vmatprep.subr.mxu0 0.0
  %1115 = vmatpush2.msra.mxu0 0.0
  %1116 = vmatprep.subr.mxu0 0.0
  %1117 = vmatpush2.msra.mxu0 0.0
  %1118 = vmatprep.subr.mxu0 0.0
  %1119 = vmatpush2.msra.mxu0 0.0
  %1120 = vmatprep.subr.mxu0 0.0
  %1121 = vmatpush2.msra.mxu0 0.0
  %1122 = vmatprep.subr.mxu0 0.0
  %1123 = vmatpush2.msra.mxu0 0.0
  %1124 = vmatprep.subr.mxu0 0.0
  %1125 = vmatpush2.msra.mxu0 0.0
  %1126 = vmatprep.subr.mxu0 0.0
  %1127 = vmatpush2.msra.mxu0 0.0
  %1128 = vmatprep.subr.mxu0 0.0
  %1129 = vmatpush2.msra.mxu0 0.0
  %1130 = vmatprep.subr.mxu0 0.0
  %1131 = vmatpush2.msra.mxu0 0.0
  %1132 = vmatprep.subr.mxu0 0.0
  %1133 = vmatpush2.msra.mxu0 0.0
  %1134 = vmatprep.subr.mxu0 0.0
  %1135 = vmatpush2.msra.mxu0 0.0
  %1136 = vmatprep.mubr.f32.mxu0 0.0
  %1137 = vmatmul.mubr.f32.gmra.mxu0 %v1070
  %v1138 = vpop.f32.mrf.mxu0
  %v1139 = vadd.f32 0.0, %v1138
  %v1140 = vpop.f32.mrf.mxu0
  %v1141 = vadd.f32 0.0, %v1140
  %1142 = vdwg.mxu0
  %1143 = vmatprep.subr.mxu0 0.0
  %1144 = vmatpush1.msra.mxu0 %v396
  %1145 = vmatprep.subr.mxu0 0.0
  %1146 = vmatpush1.msra.mxu0 %v393
  %1147 = vmatprep.subr.mxu0 0.0
  %1148 = vmatpush1.msra.mxu0 %v390
  %1149 = vmatprep.subr.mxu0 0.0
  %1150 = vmatpush1.msra.mxu0 %v387
  %1151 = vmatprep.subr.mxu0 0.0
  %1152 = vmatpush1.msra.mxu0 %v384
  %1153 = vmatprep.subr.mxu0 0.0
  %1154 = vmatpush1.msra.mxu0 %v381
  %1155 = vmatprep.subr.mxu0 0.0
  %1156 = vmatpush1.msra.mxu0 %v378
  %1157 = vmatprep.subr.mxu0 0.0
  %1158 = vmatpush1.msra.mxu0 %v375
  %1159 = vmatprep.subr.mxu0 0.0
  %1160 = vmatpush1.msra.mxu0 %v372
  %1161 = vmatprep.subr.mxu0 0.0
  %1162 = vmatpush1.msra.mxu0 %v369
  %1163 = vmatprep.subr.mxu0 0.0
  %1164 = vmatpush1.msra.mxu0 %v366
  %1165 = vmatprep.subr.mxu0 0.0
  %1166 = vmatpush1.msra.mxu0 %v363
  %1167 = vmatprep.subr.mxu0 0.0
  %1168 = vmatpush1.msra.mxu0 %v360
  %1169 = vmatprep.subr.mxu0 0.0
  %1170 = vmatpush1.msra.mxu0 %v357
  %1171 = vmatprep.subr.mxu0 0.0
  %1172 = vmatpush1.msra.mxu0 %v354
  %1173 = vmatprep.subr.mxu0 0.0
  %1174 = vmatpush1.msra.mxu0 %v351
  %1175 = vmatprep.subr.mxu0 0.0
  %1176 = vmatpush2.msra.mxu0 0.0
  %1177 = vmatprep.subr.mxu0 0.0
  %1178 = vmatpush2.msra.mxu0 0.0
  %1179 = vmatprep.subr.mxu0 0.0
  %1180 = vmatpush2.msra.mxu0 0.0
  %1181 = vmatprep.subr.mxu0 0.0
  %1182 = vmatpush2.msra.mxu0 0.0
  %1183 = vmatprep.subr.mxu0 0.0
  %1184 = vmatpush2.msra.mxu0 0.0
  %1185 = vmatprep.subr.mxu0 0.0
  %1186 = vmatpush2.msra.mxu0 0.0
  %1187 = vmatprep.subr.mxu0 0.0
  %1188 = vmatpush2.msra.mxu0 0.0
  %1189 = vmatprep.subr.mxu0 0.0
  %1190 = vmatpush2.msra.mxu0 0.0
  %1191 = vmatprep.subr.mxu0 0.0
  %1192 = vmatpush2.msra.mxu0 0.0
  %1193 = vmatprep.subr.mxu0 0.0
  %1194 = vmatpush2.msra.mxu0 0.0
  %1195 = vmatprep.subr.mxu0 0.0
  %1196 = vmatpush2.msra.mxu0 0.0
  %1197 = vmatprep.subr.mxu0 0.0
  %1198 = vmatpush2.msra.mxu0 0.0
  %1199 = vmatprep.subr.mxu0 0.0
  %1200 = vmatpush2.msra.mxu0 0.0
  %1201 = vmatprep.subr.mxu0 0.0
  %1202 = vmatpush2.msra.mxu0 0.0
  %1203 = vmatprep.subr.mxu0 0.0
  %1204 = vmatpush2.msra.mxu0 0.0
  %1205 = vmatprep.subr.mxu0 0.0
  %1206 = vmatpush2.msra.mxu0 0.0
  %1207 = vmatprep.mubr.f32.mxu0 0.0
  %1208 = vmatmul.mubr.f32.gmra.mxu0 %v1070
  %v1209 = vpop.f32.mrf.mxu0
  %v1210 = vadd.f32 0.0, %v1209
  %v1211 = vpop.f32.mrf.mxu0
  %1212 = vdwg.mxu0
  %v1213 = vld [vmem:[#allocation2 + $0x60] sm:$0xff]
  %v1214 = vld [vmem:[#allocation2 + $0x68] sm:$0xff]
  %v1215 = vld [vmem:[#allocation2 + $0x70] sm:$0xff]
  %v1216 = vadd.f32 %v1213, %v1139
  %v1217 = vxor.u32 %v1216, 2147483648
  %v1218 = vmul.f32 %v1217, 1.442695
  %v1219 = vpow.pop %v1218
  %v1220 = vadd.f32 %v1219, 1.0
  %v1221 = vrcp.pop %v1220
  %v1222 = vmul.f32 1.0, %v1221
  %v1223 = vadd.f32 %v1214, %v1141
  %v1224 = vxor.u32 %v1223, 2147483648
  %v1225 = vmul.f32 %v1224, 1.442695
  %v1226 = vpow.pop %v1225
  %v1227 = vadd.f32 %v1226, 1.0
  %v1228 = vrcp.pop %v1227
  %v1229 = vmul.f32 1.0, %v1228
  %v1230 = vadd.f32 %v1210, %v560
  %v1231 = vmul.f32 %v1222, %v1230
  %v1232 = vadd.f32 %v1215, %v1231
  %v1233 = vtanh.pop %v1232
  %v1234 = vsub.f32 1.0, %v1229
  %v1235 = vmul.f32 %v1234, %v1233
  %v1236 = vmul.f32 %v1229, %v1070
  %v1237 = vadd.f32 %v1235, %v1236
  %1238 = vst [vmem:[#allocation3 + $0x20] sm:$0xff] %v1237
  %1239 = vmatprep.subr.mxu0 %v395
  %1240 = vmatpush1.msra.mxu0 %v394
  %1241 = vmatprep.subr.mxu0 %v392
  %1242 = vmatpush1.msra.mxu0 %v391
  %1243 = vmatprep.subr.mxu0 %v389
  %1244 = vmatpush1.msra.mxu0 %v388
  %1245 = vmatprep.subr.mxu0 %v386
  %1246 = vmatpush1.msra.mxu0 %v385
  %1247 = vmatprep.subr.mxu0 %v383
  %1248 = vmatpush1.msra.mxu0 %v382
  %1249 = vmatprep.subr.mxu0 %v380
  %1250 = vmatpush1.msra.mxu0 %v379
  %1251 = vmatprep.subr.mxu0 %v377
  %1252 = vmatpush1.msra.mxu0 %v376
  %1253 = vmatprep.subr.mxu0 %v374
  %1254 = vmatpush1.msra.mxu0 %v373
  %1255 = vmatprep.subr.mxu0 %v371
  %1256 = vmatpush1.msra.mxu0 %v370
  %1257 = vmatprep.subr.mxu0 %v368
  %1258 = vmatpush1.msra.mxu0 %v367
  %1259 = vmatprep.subr.mxu0 %v365
  %1260 = vmatpush1.msra.mxu0 %v364
  %1261 = vmatprep.subr.mxu0 %v362
  %1262 = vmatpush1.msra.mxu0 %v361
  %1263 = vmatprep.subr.mxu0 %v359
  %1264 = vmatpush1.msra.mxu0 %v358
  %1265 = vmatprep.subr.mxu0 %v356
  %1266 = vmatpush1.msra.mxu0 %v355
  %1267 = vmatprep.subr.mxu0 %v353
  %1268 = vmatpush1.msra.mxu0 %v352
  %1269 = vmatprep.subr.mxu0 %v350
  %1270 = vmatpush1.msra.mxu0 %v349
  %1271 = vmatprep.subr.mxu0 0.0
  %1272 = vmatpush2.msra.mxu0 0.0
  %1273 = vmatprep.subr.mxu0 0.0
  %1274 = vmatpush2.msra.mxu0 0.0
  %1275 = vmatprep.subr.mxu0 0.0
  %1276 = vmatpush2.msra.mxu0 0.0
  %1277 = vmatprep.subr.mxu0 0.0
  %1278 = vmatpush2.msra.mxu0 0.0
  %1279 = vmatprep.subr.mxu0 0.0
  %1280 = vmatpush2.msra.mxu0 0.0
  %1281 = vmatprep.subr.mxu0 0.0
  %1282 = vmatpush2.msra.mxu0 0.0
  %1283 = vmatprep.subr.mxu0 0.0
  %1284 = vmatpush2.msra.mxu0 0.0
  %1285 = vmatprep.subr.mxu0 0.0
  %1286 = vmatpush2.msra.mxu0 0.0
  %1287 = vmatprep.subr.mxu0 0.0
  %1288 = vmatpush2.msra.mxu0 0.0
  %1289 = vmatprep.subr.mxu0 0.0
  %1290 = vmatpush2.msra.mxu0 0.0
  %1291 = vmatprep.subr.mxu0 0.0
  %1292 = vmatpush2.msra.mxu0 0.0
  %1293 = vmatprep.subr.mxu0 0.0
  %1294 = vmatpush2.msra.mxu0 0.0
  %1295 = vmatprep.subr.mxu0 0.0
  %1296 = vmatpush2.msra.mxu0 0.0
  %1297 = vmatprep.subr.mxu0 0.0
  %1298 = vmatpush2.msra.mxu0 0.0
  %1299 = vmatprep.subr.mxu0 0.0
  %1300 = vmatpush2.msra.mxu0 0.0
  %1301 = vmatprep.subr.mxu0 0.0
  %1302 = vmatpush2.msra.mxu0 0.0
  %1303 = vmatprep.mubr.f32.mxu0 0.0
  %1304 = vmatmul.mubr.f32.gmra.mxu0 %v1237
  %v1305 = vpop.f32.mrf.mxu0
  %v1306 = vadd.f32 0.0, %v1305
  %v1307 = vpop.f32.mrf.mxu0
  %v1308 = vadd.f32 0.0, %v1307
  %1309 = vdwg.mxu0
  %1310 = vmatprep.subr.mxu0 0.0
  %1311 = vmatpush1.msra.mxu0 %v396
  %1312 = vmatprep.subr.mxu0 0.0
  %1313 = vmatpush1.msra.mxu0 %v393
  %1314 = vmatprep.subr.mxu0 0.0
  %1315 = vmatpush1.msra.mxu0 %v390
  %1316 = vmatprep.subr.mxu0 0.0
  %1317 = vmatpush1.msra.mxu0 %v387
  %1318 = vmatprep.subr.mxu0 0.0
  %1319 = vmatpush1.msra.mxu0 %v384
  %1320 = vmatprep.subr.mxu0 0.0
  %1321 = vmatpush1.msra.mxu0 %v381
  %1322 = vmatprep.subr.mxu0 0.0
  %1323 = vmatpush1.msra.mxu0 %v378
  %1324 = vmatprep.subr.mxu0 0.0
  %1325 = vmatpush1.msra.mxu0 %v375
  %1326 = vmatprep.subr.mxu0 0.0
  %1327 = vmatpush1.msra.mxu0 %v372
  %1328 = vmatprep.subr.mxu0 0.0
  %1329 = vmatpush1.msra.mxu0 %v369
  %1330 = vmatprep.subr.mxu0 0.0
  %1331 = vmatpush1.msra.mxu0 %v366
  %1332 = vmatprep.subr.mxu0 0.0
  %1333 = vmatpush1.msra.mxu0 %v363
  %1334 = vmatprep.subr.mxu0 0.0
  %1335 = vmatpush1.msra.mxu0 %v360
  %1336 = vmatprep.subr.mxu0 0.0
  %1337 = vmatpush1.msra.mxu0 %v357
  %1338 = vmatprep.subr.mxu0 0.0
  %1339 = vmatpush1.msra.mxu0 %v354
  %1340 = vmatprep.subr.mxu0 0.0
  %1341 = vmatpush1.msra.mxu0 %v351
  %1342 = vmatprep.subr.mxu0 0.0
  %1343 = vmatpush2.msra.mxu0 0.0
  %1344 = vmatprep.subr.mxu0 0.0
  %1345 = vmatpush2.msra.mxu0 0.0
  %1346 = vmatprep.subr.mxu0 0.0
  %1347 = vmatpush2.msra.mxu0 0.0
  %1348 = vmatprep.subr.mxu0 0.0
  %1349 = vmatpush2.msra.mxu0 0.0
  %1350 = vmatprep.subr.mxu0 0.0
  %1351 = vmatpush2.msra.mxu0 0.0
  %1352 = vmatprep.subr.mxu0 0.0
  %1353 = vmatpush2.msra.mxu0 0.0
  %1354 = vmatprep.subr.mxu0 0.0
  %1355 = vmatpush2.msra.mxu0 0.0
  %1356 = vmatprep.subr.mxu0 0.0
  %1357 = vmatpush2.msra.mxu0 0.0
  %1358 = vmatprep.subr.mxu0 0.0
  %1359 = vmatpush2.msra.mxu0 0.0
  %1360 = vmatprep.subr.mxu0 0.0
  %1361 = vmatpush2.msra.mxu0 0.0
  %1362 = vmatprep.subr.mxu0 0.0
  %1363 = vmatpush2.msra.mxu0 0.0
  %1364 = vmatprep.subr.mxu0 0.0
  %1365 = vmatpush2.msra.mxu0 0.0
  %1366 = vmatprep.subr.mxu0 0.0
  %1367 = vmatpush2.msra.mxu0 0.0
  %1368 = vmatprep.subr.mxu0 0.0
  %1369 = vmatpush2.msra.mxu0 0.0
  %1370 = vmatprep.subr.mxu0 0.0
  %1371 = vmatpush2.msra.mxu0 0.0
  %1372 = vmatprep.subr.mxu0 0.0
  %1373 = vmatpush2.msra.mxu0 0.0
  %1374 = vmatprep.mubr.f32.mxu0 0.0
  %1375 = vmatmul.mubr.f32.gmra.mxu0 %v1237
  %v1376 = vpop.f32.mrf.mxu0
  %v1377 = vadd.f32 0.0, %v1376
  %v1378 = vpop.f32.mrf.mxu0
  %1379 = vdwg.mxu0
  %v1380 = vld [vmem:[#allocation2 + $0x78] sm:$0xff]
  %v1381 = vld [vmem:[#allocation2 + $0x80] sm:$0xff]
  %v1382 = vld [vmem:[#allocation2 + $0x88] sm:$0xff]
  %v1383 = vadd.f32 %v1380, %v1306
  %v1384 = vxor.u32 %v1383, 2147483648
  %v1385 = vmul.f32 %v1384, 1.442695
  %v1386 = vpow.pop %v1385
  %v1387 = vadd.f32 %v1386, 1.0
  %v1388 = vrcp.pop %v1387
  %v1389 = vmul.f32 1.0, %v1388
  %v1390 = vadd.f32 %v1381, %v1308
  %v1391 = vxor.u32 %v1390, 2147483648
  %v1392 = vmul.f32 %v1391, 1.442695
  %v1393 = vpow.pop %v1392
  %v1394 = vadd.f32 %v1393, 1.0
  %v1395 = vrcp.pop %v1394
  %v1396 = vmul.f32 1.0, %v1395
  %v1397 = vadd.f32 %v1377, %v560
  %v1398 = vmul.f32 %v1389, %v1397
  %v1399 = vadd.f32 %v1382, %v1398
  %v1400 = vtanh.pop %v1399
  %v1401 = vsub.f32 1.0, %v1396
  %v1402 = vmul.f32 %v1401, %v1400
  %v1403 = vmul.f32 %v1396, %v1237
  %v1404 = vadd.f32 %v1402, %v1403
  %1405 = vst [vmem:[#allocation3 + $0x28] sm:$0xff] %v1404
  %1406 = vmatprep.subr.mxu0 %v395
  %1407 = vmatpush1.msra.mxu0 %v394
  %1408 = vmatprep.subr.mxu0 %v392
  %1409 = vmatpush1.msra.mxu0 %v391
  %1410 = vmatprep.subr.mxu0 %v389
  %1411 = vmatpush1.msra.mxu0 %v388
  %1412 = vmatprep.subr.mxu0 %v386
  %1413 = vmatpush1.msra.mxu0 %v385
  %1414 = vmatprep.subr.mxu0 %v383
  %1415 = vmatpush1.msra.mxu0 %v382
  %1416 = vmatprep.subr.mxu0 %v380
  %1417 = vmatpush1.msra.mxu0 %v379
  %1418 = vmatprep.subr.mxu0 %v377
  %1419 = vmatpush1.msra.mxu0 %v376
  %1420 = vmatprep.subr.mxu0 %v374
  %1421 = vmatpush1.msra.mxu0 %v373
  %1422 = vmatprep.subr.mxu0 %v371
  %1423 = vmatpush1.msra.mxu0 %v370
  %1424 = vmatprep.subr.mxu0 %v368
  %1425 = vmatpush1.msra.mxu0 %v367
  %1426 = vmatprep.subr.mxu0 %v365
  %1427 = vmatpush1.msra.mxu0 %v364
  %1428 = vmatprep.subr.mxu0 %v362
  %1429 = vmatpush1.msra.mxu0 %v361
  %1430 = vmatprep.subr.mxu0 %v359
  %1431 = vmatpush1.msra.mxu0 %v358
  %1432 = vmatprep.subr.mxu0 %v356
  %1433 = vmatpush1.msra.mxu0 %v355
  %1434 = vmatprep.subr.mxu0 %v353
  %1435 = vmatpush1.msra.mxu0 %v352
  %1436 = vmatprep.subr.mxu0 %v350
  %1437 = vmatpush1.msra.mxu0 %v349
  %1438 = vmatprep.subr.mxu0 0.0
  %1439 = vmatpush2.msra.mxu0 0.0
  %1440 = vmatprep.subr.mxu0 0.0
  %1441 = vmatpush2.msra.mxu0 0.0
  %1442 = vmatprep.subr.mxu0 0.0
  %1443 = vmatpush2.msra.mxu0 0.0
  %1444 = vmatprep.subr.mxu0 0.0
  %1445 = vmatpush2.msra.mxu0 0.0
  %1446 = vmatprep.subr.mxu0 0.0
  %1447 = vmatpush2.msra.mxu0 0.0
  %1448 = vmatprep.subr.mxu0 0.0
  %1449 = vmatpush2.msra.mxu0 0.0
  %1450 = vmatprep.subr.mxu0 0.0
  %1451 = vmatpush2.msra.mxu0 0.0
  %1452 = vmatprep.subr.mxu0 0.0
  %1453 = vmatpush2.msra.mxu0 0.0
  %1454 = vmatprep.subr.mxu0 0.0
  %1455 = vmatpush2.msra.mxu0 0.0
  %1456 = vmatprep.subr.mxu0 0.0
  %1457 = vmatpush2.msra.mxu0 0.0
  %1458 = vmatprep.subr.mxu0 0.0
  %1459 = vmatpush2.msra.mxu0 0.0
  %1460 = vmatprep.subr.mxu0 0.0
  %1461 = vmatpush2.msra.mxu0 0.0
  %1462 = vmatprep.subr.mxu0 0.0
  %1463 = vmatpush2.msra.mxu0 0.0
  %1464 = vmatprep.subr.mxu0 0.0
  %1465 = vmatpush2.msra.mxu0 0.0
  %1466 = vmatprep.subr.mxu0 0.0
  %1467 = vmatpush2.msra.mxu0 0.0
  %1468 = vmatprep.subr.mxu0 0.0
  %1469 = vmatpush2.msra.mxu0 0.0
  %1470 = vmatprep.mubr.f32.mxu0 0.0
  %1471 = vmatmul.mubr.f32.gmra.mxu0 %v1404
  %v1472 = vpop.f32.mrf.mxu0
  %v1473 = vadd.f32 0.0, %v1472
  %v1474 = vpop.f32.mrf.mxu0
  %v1475 = vadd.f32 0.0, %v1474
  %1476 = vdwg.mxu0
  %1477 = vmatprep.subr.mxu0 0.0
  %1478 = vmatpush1.msra.mxu0 %v396
  %1479 = vmatprep.subr.mxu0 0.0
  %1480 = vmatpush1.msra.mxu0 %v393
  %1481 = vmatprep.subr.mxu0 0.0
  %1482 = vmatpush1.msra.mxu0 %v390
  %1483 = vmatprep.subr.mxu0 0.0
  %1484 = vmatpush1.msra.mxu0 %v387
  %1485 = vmatprep.subr.mxu0 0.0
  %1486 = vmatpush1.msra.mxu0 %v384
  %1487 = vmatprep.subr.mxu0 0.0
  %1488 = vmatpush1.msra.mxu0 %v381
  %1489 = vmatprep.subr.mxu0 0.0
  %1490 = vmatpush1.msra.mxu0 %v378
  %1491 = vmatprep.subr.mxu0 0.0
  %1492 = vmatpush1.msra.mxu0 %v375
  %1493 = vmatprep.subr.mxu0 0.0
  %1494 = vmatpush1.msra.mxu0 %v372
  %1495 = vmatprep.subr.mxu0 0.0
  %1496 = vmatpush1.msra.mxu0 %v369
  %1497 = vmatprep.subr.mxu0 0.0
  %1498 = vmatpush1.msra.mxu0 %v366
  %1499 = vmatprep.subr.mxu0 0.0
  %1500 = vmatpush1.msra.mxu0 %v363
  %1501 = vmatprep.subr.mxu0 0.0
  %1502 = vmatpush1.msra.mxu0 %v360
  %1503 = vmatprep.subr.mxu0 0.0
  %1504 = vmatpush1.msra.mxu0 %v357
  %1505 = vmatprep.subr.mxu0 0.0
  %1506 = vmatpush1.msra.mxu0 %v354
  %1507 = vmatprep.subr.mxu0 0.0
  %1508 = vmatpush1.msra.mxu0 %v351
  %1509 = vmatprep.subr.mxu0 0.0
  %1510 = vmatpush2.msra.mxu0 0.0
  %1511 = vmatprep.subr.mxu0 0.0
  %1512 = vmatpush2.msra.mxu0 0.0
  %1513 = vmatprep.subr.mxu0 0.0
  %1514 = vmatpush2.msra.mxu0 0.0
  %1515 = vmatprep.subr.mxu0 0.0
  %1516 = vmatpush2.msra.mxu0 0.0
  %1517 = vmatprep.subr.mxu0 0.0
  %1518 = vmatpush2.msra.mxu0 0.0
  %1519 = vmatprep.subr.mxu0 0.0
  %1520 = vmatpush2.msra.mxu0 0.0
  %1521 = vmatprep.subr.mxu0 0.0
  %1522 = vmatpush2.msra.mxu0 0.0
  %1523 = vmatprep.subr.mxu0 0.0
  %1524 = vmatpush2.msra.mxu0 0.0
  %1525 = vmatprep.subr.mxu0 0.0
  %1526 = vmatpush2.msra.mxu0 0.0
  %1527 = vmatprep.subr.mxu0 0.0
  %1528 = vmatpush2.msra.mxu0 0.0
  %1529 = vmatprep.subr.mxu0 0.0
  %1530 = vmatpush2.msra.mxu0 0.0
  %1531 = vmatprep.subr.mxu0 0.0
  %1532 = vmatpush2.msra.mxu0 0.0
  %1533 = vmatprep.subr.mxu0 0.0
  %1534 = vmatpush2.msra.mxu0 0.0
  %1535 = vmatprep.subr.mxu0 0.0
  %1536 = vmatpush2.msra.mxu0 0.0
  %1537 = vmatprep.subr.mxu0 0.0
  %1538 = vmatpush2.msra.mxu0 0.0
  %1539 = vmatprep.subr.mxu0 0.0
  %1540 = vmatpush2.msra.mxu0 0.0
  %1541 = vmatprep.mubr.f32.mxu0 0.0
  %1542 = vmatmul.mubr.f32.gmra.mxu0 %v1404
  %v1543 = vpop.f32.mrf.mxu0
  %v1544 = vadd.f32 0.0, %v1543
  %v1545 = vpop.f32.mrf.mxu0
  %1546 = vdwg.mxu0
  %v1547 = vld [vmem:[#allocation2 + $0x90] sm:$0xff]
  %v1548 = vld [vmem:[#allocation2 + $0x98] sm:$0xff]
  %v1549 = vld [vmem:[#allocation2 + $0xa0] sm:$0xff]
  %v1550 = vadd.f32 %v1547, %v1473
  %v1551 = vxor.u32 %v1550, 2147483648
  %v1552 = vmul.f32 %v1551, 1.442695
  %v1553 = vpow.pop %v1552
  %v1554 = vadd.f32 %v1553, 1.0
  %v1555 = vrcp.pop %v1554
  %v1556 = vmul.f32 1.0, %v1555
  %v1557 = vadd.f32 %v1548, %v1475
  %v1558 = vxor.u32 %v1557, 2147483648
  %v1559 = vmul.f32 %v1558, 1.442695
  %v1560 = vpow.pop %v1559
  %v1561 = vadd.f32 %v1560, 1.0
  %v1562 = vrcp.pop %v1561
  %v1563 = vmul.f32 1.0, %v1562
  %v1564 = vadd.f32 %v1544, %v560
  %v1565 = vmul.f32 %v1556, %v1564
  %v1566 = vadd.f32 %v1549, %v1565
  %v1567 = vtanh.pop %v1566
  %v1568 = vsub.f32 1.0, %v1563
  %v1569 = vmul.f32 %v1568, %v1567
  %v1570 = vmul.f32 %v1563, %v1404
  %v1571 = vadd.f32 %v1569, %v1570
  %1572 = vst [vmem:[#allocation3 + $0x30] sm:$0xff] %v1571
  %1573 = vmatprep.subr.mxu0 %v395
  %1574 = vmatpush1.msra.mxu0 %v394
  %1575 = vmatprep.subr.mxu0 %v392
  %1576 = vmatpush1.msra.mxu0 %v391
  %1577 = vmatprep.subr.mxu0 %v389
  %1578 = vmatpush1.msra.mxu0 %v388
  %1579 = vmatprep.subr.mxu0 %v386
  %1580 = vmatpush1.msra.mxu0 %v385
  %1581 = vmatprep.subr.mxu0 %v383
  %1582 = vmatpush1.msra.mxu0 %v382
  %1583 = vmatprep.subr.mxu0 %v380
  %1584 = vmatpush1.msra.mxu0 %v379
  %1585 = vmatprep.subr.mxu0 %v377
  %1586 = vmatpush1.msra.mxu0 %v376
  %1587 = vmatprep.subr.mxu0 %v374
  %1588 = vmatpush1.msra.mxu0 %v373
  %1589 = vmatprep.subr.mxu0 %v371
  %1590 = vmatpush1.msra.mxu0 %v370
  %1591 = vmatprep.subr.mxu0 %v368
  %1592 = vmatpush1.msra.mxu0 %v367
  %1593 = vmatprep.subr.mxu0 %v365
  %1594 = vmatpush1.msra.mxu0 %v364
  %1595 = vmatprep.subr.mxu0 %v362
  %1596 = vmatpush1.msra.mxu0 %v361
  %1597 = vmatprep.subr.mxu0 %v359
  %1598 = vmatpush1.msra.mxu0 %v358
  %1599 = vmatprep.subr.mxu0 %v356
  %1600 = vmatpush1.msra.mxu0 %v355
  %1601 = vmatprep.subr.mxu0 %v353
  %1602 = vmatpush1.msra.mxu0 %v352
  %1603 = vmatprep.subr.mxu0 %v350
  %1604 = vmatpush1.msra.mxu0 %v349
  %1605 = vmatprep.subr.mxu0 0.0
  %1606 = vmatpush2.msra.mxu0 0.0
  %1607 = vmatprep.subr.mxu0 0.0
  %1608 = vmatpush2.msra.mxu0 0.0
  %1609 = vmatprep.subr.mxu0 0.0
  %1610 = vmatpush2.msra.mxu0 0.0
  %1611 = vmatprep.subr.mxu0 0.0
  %1612 = vmatpush2.msra.mxu0 0.0
  %1613 = vmatprep.subr.mxu0 0.0
  %1614 = vmatpush2.msra.mxu0 0.0
  %1615 = vmatprep.subr.mxu0 0.0
  %1616 = vmatpush2.msra.mxu0 0.0
  %1617 = vmatprep.subr.mxu0 0.0
  %1618 = vmatpush2.msra.mxu0 0.0
  %1619 = vmatprep.subr.mxu0 0.0
  %1620 = vmatpush2.msra.mxu0 0.0
  %1621 = vmatprep.subr.mxu0 0.0
  %1622 = vmatpush2.msra.mxu0 0.0
  %1623 = vmatprep.subr.mxu0 0.0
  %1624 = vmatpush2.msra.mxu0 0.0
  %1625 = vmatprep.subr.mxu0 0.0
  %1626 = vmatpush2.msra.mxu0 0.0
  %1627 = vmatprep.subr.mxu0 0.0
  %1628 = vmatpush2.msra.mxu0 0.0
  %1629 = vmatprep.subr.mxu0 0.0
  %1630 = vmatpush2.msra.mxu0 0.0
  %1631 = vmatprep.subr.mxu0 0.0
  %1632 = vmatpush2.msra.mxu0 0.0
  %1633 = vmatprep.subr.mxu0 0.0
  %1634 = vmatpush2.msra.mxu0 0.0
  %1635 = vmatprep.subr.mxu0 0.0
  %1636 = vmatpush2.msra.mxu0 0.0
  %1637 = vmatprep.mubr.f32.mxu0 0.0
  %1638 = vmatmul.mubr.f32.gmra.mxu0 %v1571
  %v1639 = vpop.f32.mrf.mxu0
  %v1640 = vadd.f32 0.0, %v1639
  %v1641 = vpop.f32.mrf.mxu0
  %v1642 = vadd.f32 0.0, %v1641
  %1643 = vdwg.mxu0
  %1644 = vmatprep.subr.mxu0 0.0
  %1645 = vmatpush1.msra.mxu0 %v396
  %1646 = vmatprep.subr.mxu0 0.0
  %1647 = vmatpush1.msra.mxu0 %v393
  %1648 = vmatprep.subr.mxu0 0.0
  %1649 = vmatpush1.msra.mxu0 %v390
  %1650 = vmatprep.subr.mxu0 0.0
  %1651 = vmatpush1.msra.mxu0 %v387
  %1652 = vmatprep.subr.mxu0 0.0
  %1653 = vmatpush1.msra.mxu0 %v384
  %1654 = vmatprep.subr.mxu0 0.0
  %1655 = vmatpush1.msra.mxu0 %v381
  %1656 = vmatprep.subr.mxu0 0.0
  %1657 = vmatpush1.msra.mxu0 %v378
  %1658 = vmatprep.subr.mxu0 0.0
  %1659 = vmatpush1.msra.mxu0 %v375
  %1660 = vmatprep.subr.mxu0 0.0
  %1661 = vmatpush1.msra.mxu0 %v372
  %1662 = vmatprep.subr.mxu0 0.0
  %1663 = vmatpush1.msra.mxu0 %v369
  %1664 = vmatprep.subr.mxu0 0.0
  %1665 = vmatpush1.msra.mxu0 %v366
  %1666 = vmatprep.subr.mxu0 0.0
  %1667 = vmatpush1.msra.mxu0 %v363
  %1668 = vmatprep.subr.mxu0 0.0
  %1669 = vmatpush1.msra.mxu0 %v360
  %1670 = vmatprep.subr.mxu0 0.0
  %1671 = vmatpush1.msra.mxu0 %v357
  %1672 = vmatprep.subr.mxu0 0.0
  %1673 = vmatpush1.msra.mxu0 %v354
  %1674 = vmatprep.subr.mxu0 0.0
  %1675 = vmatpush1.msra.mxu0 %v351
  %1676 = vmatprep.subr.mxu0 0.0
  %1677 = vmatpush2.msra.mxu0 0.0
  %1678 = vmatprep.subr.mxu0 0.0
  %1679 = vmatpush2.msra.mxu0 0.0
  %1680 = vmatprep.subr.mxu0 0.0
  %1681 = vmatpush2.msra.mxu0 0.0
  %1682 = vmatprep.subr.mxu0 0.0
  %1683 = vmatpush2.msra.mxu0 0.0
  %1684 = vmatprep.subr.mxu0 0.0
  %1685 = vmatpush2.msra.mxu0 0.0
  %1686 = vmatprep.subr.mxu0 0.0
  %1687 = vmatpush2.msra.mxu0 0.0
  %1688 = vmatprep.subr.mxu0 0.0
  %1689 = vmatpush2.msra.mxu0 0.0
  %1690 = vmatprep.subr.mxu0 0.0
  %1691 = vmatpush2.msra.mxu0 0.0
  %1692 = vmatprep.subr.mxu0 0.0
  %1693 = vmatpush2.msra.mxu0 0.0
  %1694 = vmatprep.subr.mxu0 0.0
  %1695 = vmatpush2.msra.mxu0 0.0
  %1696 = vmatprep.subr.mxu0 0.0
  %1697 = vmatpush2.msra.mxu0 0.0
  %1698 = vmatprep.subr.mxu0 0.0
  %1699 = vmatpush2.msra.mxu0 0.0
  %1700 = vmatprep.subr.mxu0 0.0
  %1701 = vmatpush2.msra.mxu0 0.0
  %1702 = vmatprep.subr.mxu0 0.0
  %1703 = vmatpush2.msra.mxu0 0.0
  %1704 = vmatprep.subr.mxu0 0.0
  %1705 = vmatpush2.msra.mxu0 0.0
  %1706 = vmatprep.subr.mxu0 0.0
  %1707 = vmatpush2.msra.mxu0 0.0
  %1708 = vmatprep.mubr.f32.mxu0 0.0
  %1709 = vmatmul.mubr.f32.gmra.mxu0 %v1571
  %v1710 = vpop.f32.mrf.mxu0
  %v1711 = vadd.f32 0.0, %v1710
  %v1712 = vpop.f32.mrf.mxu0
  %1713 = vdwg.mxu0
  %v1714 = vld [vmem:[#allocation2 + $0xa8] sm:$0xff]
  %v1715 = vld [vmem:[#allocation2 + $0xb0] sm:$0xff]
  %v1716 = vld [vmem:[#allocation2 + $0xb8] sm:$0xff]
  %v1717 = vadd.f32 %v1714, %v1640
  %v1718 = vxor.u32 %v1717, 2147483648
  %v1719 = vmul.f32 %v1718, 1.442695
  %v1720 = vpow.pop %v1719
  %v1721 = vadd.f32 %v1720, 1.0
  %v1722 = vrcp.pop %v1721
  %v1723 = vmul.f32 1.0, %v1722
  %v1724 = vadd.f32 %v1715, %v1642
  %v1725 = vxor.u32 %v1724, 2147483648
  %v1726 = vmul.f32 %v1725, 1.442695
  %v1727 = vpow.pop %v1726
  %v1728 = vadd.f32 %v1727, 1.0
  %v1729 = vrcp.pop %v1728
  %v1730 = vmul.f32 1.0, %v1729
  %v1731 = vadd.f32 %v1711, %v560
  %v1732 = vmul.f32 %v1723, %v1731
  %v1733 = vadd.f32 %v1716, %v1732
  %v1734 = vtanh.pop %v1733
  %v1735 = vsub.f32 1.0, %v1730
  %v1736 = vmul.f32 %v1735, %v1734
  %v1737 = vmul.f32 %v1730, %v1571
  %v1738 = vadd.f32 %v1736, %v1737
  %1739 = vst [vmem:[#allocation3 + $0x38] sm:$0xff] %v1738
  %1740 = vst [vmem:[%s10] sm:$0xff] %v1738
  %v1741 = vld [vmem:[#allocation3] sm:$0xff]
  %v1742 = vld [vmem:[#allocation3 + $0x8] sm:$0xff]
  %v1743 = vld [vmem:[#allocation3 + $0x10] sm:$0xff]
  %v1744 = vld [vmem:[#allocation3 + $0x18] sm:$0xff]
  %v1745 = vld [vmem:[#allocation3 + $0x20] sm:$0xff]
  %v1746 = vld [vmem:[#allocation3 + $0x28] sm:$0xff]
  %v1747 = vld [vmem:[#allocation3 + $0x30] sm:$0xff]
  %v1748 = vld [vmem:[#allocation3 + $0x38] sm:$0xff]
  %v1749 = vld [vmem:[%s5] sm:$0xff]
  %v1750 = vld [vmem:[%s5 + $0x8] sm:$0xff]
  %v1751 = vld [vmem:[%s5 + $0x10] sm:$0xff]
  %v1752 = vld [vmem:[%s5 + $0x18] sm:$0xff]
  %v1753 = vld [vmem:[%s5 + $0x20] sm:$0xff]
  %v1754 = vld [vmem:[%s5 + $0x28] sm:$0xff]
  %v1755 = vld [vmem:[%s5 + $0x30] sm:$0xff]
  %v1756 = vld [vmem:[%s5 + $0x38] sm:$0xff]
  %v1757 = vld [vmem:[%s5 + $0x40] sm:$0xff]
  %v1758 = vld [vmem:[%s5 + $0x48] sm:$0xff]
  %v1759 = vld [vmem:[%s5 + $0x50] sm:$0xff]
  %v1760 = vld [vmem:[%s5 + $0x58] sm:$0xff]
  %v1761 = vld [vmem:[%s5 + $0x60] sm:$0xff]
  %v1762 = vld [vmem:[%s5 + $0x68] sm:$0xff]
  %v1763 = vld [vmem:[%s5 + $0x70] sm:$0xff]
  %v1764 = vld [vmem:[%s5 + $0x78] sm:$0xff]
  %v1765 = vld [vmem:[%s5 + $0x80] sm:$0xff]
  %v1766 = vld [vmem:[%s5 + $0x88] sm:$0xff]
  %v1767 = vld [vmem:[%s5 + $0x90] sm:$0xff]
  %v1768 = vld [vmem:[%s5 + $0x98] sm:$0xff]
  %v1769 = vld [vmem:[%s5 + $0xa0] sm:$0xff]
  %v1770 = vld [vmem:[%s5 + $0xa8] sm:$0xff]
  %v1771 = vld [vmem:[%s5 + $0xb0] sm:$0xff]
  %v1772 = vld [vmem:[%s5 + $0xb8] sm:$0xff]
  %v1773 = vld [vmem:[%s5 + $0xc0] sm:$0xff]
  %v1774 = vld [vmem:[%s5 + $0xc8] sm:$0xff]
  %v1775 = vld [vmem:[%s5 + $0xd0] sm:$0xff]
  %v1776 = vld [vmem:[%s5 + $0xd8] sm:$0xff]
  %v1777 = vld [vmem:[%s5 + $0xe0] sm:$0xff]
  %v1778 = vld [vmem:[%s5 + $0xe8] sm:$0xff]
  %v1779 = vld [vmem:[%s5 + $0xf0] sm:$0xff]
  %v1780 = vld [vmem:[%s5 + $0xf8] sm:$0xff]
  %v1781 = vld [vmem:[%s5 + $0x100] sm:$0xff]
  %v1782 = vld [vmem:[%s5 + $0x108] sm:$0xff]
  %v1783 = vld [vmem:[%s5 + $0x110] sm:$0xff]
  %v1784 = vld [vmem:[%s5 + $0x118] sm:$0xff]
  %v1785 = vld [vmem:[%s5 + $0x120] sm:$0xff]
  %v1786 = vld [vmem:[%s5 + $0x128] sm:$0xff]
  %v1787 = vld [vmem:[%s5 + $0x130] sm:$0xff]
  %v1788 = vld [vmem:[%s5 + $0x138] sm:$0xff]
  %v1789 = vld [vmem:[%s5 + $0x140] sm:$0xff]
  %v1790 = vld [vmem:[%s5 + $0x148] sm:$0xff]
  %v1791 = vld [vmem:[%s5 + $0x150] sm:$0xff]
  %v1792 = vld [vmem:[%s5 + $0x158] sm:$0xff]
  %v1793 = vld [vmem:[%s5 + $0x160] sm:$0xff]
  %v1794 = vld [vmem:[%s5 + $0x168] sm:$0xff]
  %v1795 = vld [vmem:[%s5 + $0x170] sm:$0xff]
  %v1796 = vld [vmem:[%s5 + $0x178] sm:$0xff]
  %v1797 = vld [vmem:[%s7] sm:$0x7]
  %v1799 = vlaneseq
  %v1800 = vshrl.u32 %v1799, 7
  %v1801 = vsub.s32 0, %v1800
  %v1802 = vrot.slane %v1797, %v1801
  %v1803 = vlaneseq
  %v1804 = vshrl.u32 %v1803, 7
  %v1805 = vsub.s32 1, %v1804
  %v1806 = vrot.slane %v1797, %v1805
  %v1807 = vlaneseq
  %v1808 = vshrl.u32 %v1807, 7
  %v1809 = vsub.s32 2, %v1808
  %v1810 = vrot.slane %v1797, %v1809
  %1814 = vmatprep.subr.mxu0 %v1795
  %1815 = vmatpush1.msra.mxu0 %v1794
  %1816 = vmatprep.subr.mxu0 %v1792
  %1817 = vmatpush1.msra.mxu0 %v1791
  %1818 = vmatprep.subr.mxu0 %v1789
  %1819 = vmatpush1.msra.mxu0 %v1788
  %1820 = vmatprep.subr.mxu0 %v1786
  %1821 = vmatpush1.msra.mxu0 %v1785
  %1822 = vmatprep.subr.mxu0 %v1783
  %1823 = vmatpush1.msra.mxu0 %v1782
  %1824 = vmatprep.subr.mxu0 %v1780
  %1825 = vmatpush1.msra.mxu0 %v1779
  %1826 = vmatprep.subr.mxu0 %v1777
  %1827 = vmatpush1.msra.mxu0 %v1776
  %1828 = vmatprep.subr.mxu0 %v1774
  %1829 = vmatpush1.msra.mxu0 %v1773
  %1830 = vmatprep.subr.mxu0 %v1771
  %1831 = vmatpush1.msra.mxu0 %v1770
  %1832 = vmatprep.subr.mxu0 %v1768
  %1833 = vmatpush1.msra.mxu0 %v1767
  %1834 = vmatprep.subr.mxu0 %v1765
  %1835 = vmatpush1.msra.mxu0 %v1764
  %1836 = vmatprep.subr.mxu0 %v1762
  %1837 = vmatpush1.msra.mxu0 %v1761
  %1838 = vmatprep.subr.mxu0 %v1759
  %1839 = vmatpush1.msra.mxu0 %v1758
  %1840 = vmatprep.subr.mxu0 %v1756
  %1841 = vmatpush1.msra.mxu0 %v1755
  %1842 = vmatprep.subr.mxu0 %v1753
  %1843 = vmatpush1.msra.mxu0 %v1752
  %1844 = vmatprep.subr.mxu0 %v1750
  %1845 = vmatpush1.msra.mxu0 %v1749
  %1846 = vmatprep.subr.mxu0 0.0
  %1847 = vmatpush2.msra.mxu0 0.0
  %1848 = vmatprep.subr.mxu0 0.0
  %1849 = vmatpush2.msra.mxu0 0.0
  %1850 = vmatprep.subr.mxu0 0.0
  %1851 = vmatpush2.msra.mxu0 0.0
  %1852 = vmatprep.subr.mxu0 0.0
  %1853 = vmatpush2.msra.mxu0 0.0
  %1854 = vmatprep.subr.mxu0 0.0
  %1855 = vmatpush2.msra.mxu0 0.0
  %1856 = vmatprep.subr.mxu0 0.0
  %1857 = vmatpush2.msra.mxu0 0.0
  %1858 = vmatprep.subr.mxu0 0.0
  %1859 = vmatpush2.msra.mxu0 0.0
  %1860 = vmatprep.subr.mxu0 0.0
  %1861 = vmatpush2.msra.mxu0 0.0
  %1862 = vmatprep.subr.mxu0 0.0
  %1863 = vmatpush2.msra.mxu0 0.0
  %1864 = vmatprep.subr.mxu0 0.0
  %1865 = vmatpush2.msra.mxu0 0.0
  %1866 = vmatprep.subr.mxu0 0.0
  %1867 = vmatpush2.msra.mxu0 0.0
  %1868 = vmatprep.subr.mxu0 0.0
  %1869 = vmatpush2.msra.mxu0 0.0
  %1870 = vmatprep.subr.mxu0 0.0
  %1871 = vmatpush2.msra.mxu0 0.0
  %1872 = vmatprep.subr.mxu0 0.0
  %1873 = vmatpush2.msra.mxu0 0.0
  %1874 = vmatprep.subr.mxu0 0.0
  %1875 = vmatpush2.msra.mxu0 0.0
  %1876 = vmatprep.subr.mxu0 0.0
  %1877 = vmatpush2.msra.mxu0 0.0
  %1878 = vmatprep.mubr.f32.mxu0 0.0
  %1879 = vmatmul.mubr.f32.gmra.mxu0 %v1741
  %v1880 = vpop.f32.mrf.mxu0
  %v1881 = vadd.f32 %v1802, %v1880
  %v1882 = vpop.f32.mrf.mxu0
  %v1883 = vadd.f32 %v1806, %v1882
  %1884 = vmatprep.mubr.f32.mxu0 0.0
  %1885 = vmatmul.mubr.f32.gmra.mxu0 %v1742
  %v1886 = vpop.f32.mrf.mxu0
  %v1887 = vadd.f32 %v1802, %v1886
  %v1888 = vpop.f32.mrf.mxu0
  %v1889 = vadd.f32 %v1806, %v1888
  %1890 = vmatprep.mubr.f32.mxu0 0.0
  %1891 = vmatmul.mubr.f32.gmra.mxu0 %v1743
  %v1892 = vpop.f32.mrf.mxu0
  %v1893 = vadd.f32 %v1802, %v1892
  %v1894 = vpop.f32.mrf.mxu0
  %v1895 = vadd.f32 %v1806, %v1894
  %1896 = vmatprep.mubr.f32.mxu0 0.0
  %1897 = vmatmul.mubr.f32.gmra.mxu0 %v1744
  %v1898 = vpop.f32.mrf.mxu0
  %v1899 = vadd.f32 %v1802, %v1898
  %v1900 = vpop.f32.mrf.mxu0
  %v1901 = vadd.f32 %v1806, %v1900
  %1902 = vmatprep.mubr.f32.mxu0 0.0
  %1903 = vmatmul.mubr.f32.gmra.mxu0 %v1745
  %v1904 = vpop.f32.mrf.mxu0
  %v1905 = vadd.f32 %v1802, %v1904
  %v1906 = vpop.f32.mrf.mxu0
  %v1907 = vadd.f32 %v1806, %v1906
  %1908 = vmatprep.mubr.f32.mxu0 0.0
  %1909 = vmatmul.mubr.f32.gmra.mxu0 %v1746
  %v1910 = vpop.f32.mrf.mxu0
  %v1911 = vadd.f32 %v1802, %v1910
  %v1912 = vpop.f32.mrf.mxu0
  %v1913 = vadd.f32 %v1806, %v1912
  %1914 = vmatprep.mubr.f32.mxu0 0.0
  %1915 = vmatmul.mubr.f32.gmra.mxu0 %v1747
  %v1916 = vpop.f32.mrf.mxu0
  %v1917 = vadd.f32 %v1802, %v1916
  %v1918 = vpop.f32.mrf.mxu0
  %v1919 = vadd.f32 %v1806, %v1918
  %1920 = vmatprep.mubr.f32.mxu0 0.0
  %1921 = vmatmul.mubr.f32.gmra.mxu0 %v1748
  %v1922 = vpop.f32.mrf.mxu0
  %v1923 = vadd.f32 %v1802, %v1922
  %v1924 = vpop.f32.mrf.mxu0
  %v1925 = vadd.f32 %v1806, %v1924
  %1926 = vdwg.mxu0
  %1927 = vmatprep.subr.mxu0 0.0
  %1928 = vmatpush1.msra.mxu0 %v1796
  %1929 = vmatprep.subr.mxu0 0.0
  %1930 = vmatpush1.msra.mxu0 %v1793
  %1931 = vmatprep.subr.mxu0 0.0
  %1932 = vmatpush1.msra.mxu0 %v1790
  %1933 = vmatprep.subr.mxu0 0.0
  %1934 = vmatpush1.msra.mxu0 %v1787
  %1935 = vmatprep.subr.mxu0 0.0
  %1936 = vmatpush1.msra.mxu0 %v1784
  %1937 = vmatprep.subr.mxu0 0.0
  %1938 = vmatpush1.msra.mxu0 %v1781
  %1939 = vmatprep.subr.mxu0 0.0
  %1940 = vmatpush1.msra.mxu0 %v1778
  %1941 = vmatprep.subr.mxu0 0.0
  %1942 = vmatpush1.msra.mxu0 %v1775
  %1943 = vmatprep.subr.mxu0 0.0
  %1944 = vmatpush1.msra.mxu0 %v1772
  %1945 = vmatprep.subr.mxu0 0.0
  %1946 = vmatpush1.msra.mxu0 %v1769
  %1947 = vmatprep.subr.mxu0 0.0
  %1948 = vmatpush1.msra.mxu0 %v1766
  %1949 = vmatprep.subr.mxu0 0.0
  %1950 = vmatpush1.msra.mxu0 %v1763
  %1951 = vmatprep.subr.mxu0 0.0
  %1952 = vmatpush1.msra.mxu0 %v1760
  %1953 = vmatprep.subr.mxu0 0.0
  %1954 = vmatpush1.msra.mxu0 %v1757
  %1955 = vmatprep.subr.mxu0 0.0
  %1956 = vmatpush1.msra.mxu0 %v1754
  %1957 = vmatprep.subr.mxu0 0.0
  %1958 = vmatpush1.msra.mxu0 %v1751
  %1959 = vmatprep.subr.mxu0 0.0
  %1960 = vmatpush2.msra.mxu0 0.0
  %1961 = vmatprep.subr.mxu0 0.0
  %1962 = vmatpush2.msra.mxu0 0.0
  %1963 = vmatprep.subr.mxu0 0.0
  %1964 = vmatpush2.msra.mxu0 0.0
  %1965 = vmatprep.subr.mxu0 0.0
  %1966 = vmatpush2.msra.mxu0 0.0
  %1967 = vmatprep.subr.mxu0 0.0
  %1968 = vmatpush2.msra.mxu0 0.0
  %1969 = vmatprep.subr.mxu0 0.0
  %1970 = vmatpush2.msra.mxu0 0.0
  %1971 = vmatprep.subr.mxu0 0.0
  %1972 = vmatpush2.msra.mxu0 0.0
  %1973 = vmatprep.subr.mxu0 0.0
  %1974 = vmatpush2.msra.mxu0 0.0
  %1975 = vmatprep.subr.mxu0 0.0
  %1976 = vmatpush2.msra.mxu0 0.0
  %1977 = vmatprep.subr.mxu0 0.0
  %1978 = vmatpush2.msra.mxu0 0.0
  %1979 = vmatprep.subr.mxu0 0.0
  %1980 = vmatpush2.msra.mxu0 0.0
  %1981 = vmatprep.subr.mxu0 0.0
  %1982 = vmatpush2.msra.mxu0 0.0
  %1983 = vmatprep.subr.mxu0 0.0
  %1984 = vmatpush2.msra.mxu0 0.0
  %1985 = vmatprep.subr.mxu0 0.0
  %1986 = vmatpush2.msra.mxu0 0.0
  %1987 = vmatprep.subr.mxu0 0.0
  %1988 = vmatpush2.msra.mxu0 0.0
  %1989 = vmatprep.subr.mxu0 0.0
  %1990 = vmatpush2.msra.mxu0 0.0
  %1991 = vmatprep.mubr.f32.mxu0 0.0
  %1992 = vmatmul.mubr.f32.gmra.mxu0 %v1741
  %v1993 = vpop.f32.mrf.mxu0
  %v1994 = vadd.f32 %v1810, %v1993
  %v1995 = vpop.f32.mrf.mxu0
  %1996 = vmatprep.mubr.f32.mxu0 0.0
  %1997 = vmatmul.mubr.f32.gmra.mxu0 %v1742
  %v1998 = vpop.f32.mrf.mxu0
  %v1999 = vadd.f32 %v1810, %v1998
  %v2000 = vpop.f32.mrf.mxu0
  %2001 = vmatprep.mubr.f32.mxu0 0.0
  %2002 = vmatmul.mubr.f32.gmra.mxu0 %v1743
  %v2003 = vpop.f32.mrf.mxu0
  %v2004 = vadd.f32 %v1810, %v2003
  %v2005 = vpop.f32.mrf.mxu0
  %2006 = vmatprep.mubr.f32.mxu0 0.0
  %2007 = vmatmul.mubr.f32.gmra.mxu0 %v1744
  %v2008 = vpop.f32.mrf.mxu0
  %v2009 = vadd.f32 %v1810, %v2008
  %v2010 = vpop.f32.mrf.mxu0
  %2011 = vmatprep.mubr.f32.mxu0 0.0
  %2012 = vmatmul.mubr.f32.gmra.mxu0 %v1745
  %v2013 = vpop.f32.mrf.mxu0
  %v2014 = vadd.f32 %v1810, %v2013
  %v2015 = vpop.f32.mrf.mxu0
  %2016 = vmatprep.mubr.f32.mxu0 0.0
  %2017 = vmatmul.mubr.f32.gmra.mxu0 %v1746
  %v2018 = vpop.f32.mrf.mxu0
  %v2019 = vadd.f32 %v1810, %v2018
  %v2020 = vpop.f32.mrf.mxu0
  %2021 = vmatprep.mubr.f32.mxu0 0.0
  %2022 = vmatmul.mubr.f32.gmra.mxu0 %v1747
  %v2023 = vpop.f32.mrf.mxu0
  %v2024 = vadd.f32 %v1810, %v2023
  %v2025 = vpop.f32.mrf.mxu0
  %2026 = vmatprep.mubr.f32.mxu0 0.0
  %2027 = vmatmul.mubr.f32.gmra.mxu0 %v1748
  %v2028 = vpop.f32.mrf.mxu0
  %v2029 = vadd.f32 %v1810, %v2028
  %v2030 = vpop.f32.mrf.mxu0
  %2031 = vdwg.mxu0
  %2032 = vst [vmem:[#allocation2] sm:$0xff] %v1881
  %2033 = vst [vmem:[#allocation2 + $0x8] sm:$0xff] %v1883
  %2034 = vst [vmem:[#allocation2 + $0x10] sm:$0xff] %v1994
  %2035 = vst [vmem:[#allocation2 + $0x18] sm:$0xff] %v1887
  %2036 = vst [vmem:[#allocation2 + $0x20] sm:$0xff] %v1889
  %2037 = vst [vmem:[#allocation2 + $0x28] sm:$0xff] %v1999
  %2038 = vst [vmem:[#allocation2 + $0x30] sm:$0xff] %v1893
  %2039 = vst [vmem:[#allocation2 + $0x38] sm:$0xff] %v1895
  %2040 = vst [vmem:[#allocation2 + $0x40] sm:$0xff] %v2004
  %2041 = vst [vmem:[#allocation2 + $0x48] sm:$0xff] %v1899
  %2042 = vst [vmem:[#allocation2 + $0x50] sm:$0xff] %v1901
  %2043 = vst [vmem:[#allocation2 + $0x58] sm:$0xff] %v2009
  %2044 = vst [vmem:[#allocation2 + $0x60] sm:$0xff] %v1905
  %2045 = vst [vmem:[#allocation2 + $0x68] sm:$0xff] %v1907
  %2046 = vst [vmem:[#allocation2 + $0x70] sm:$0xff] %v2014
  %2047 = vst [vmem:[#allocation2 + $0x78] sm:$0xff] %v1911
  %2048 = vst [vmem:[#allocation2 + $0x80] sm:$0xff] %v1913
  %2049 = vst [vmem:[#allocation2 + $0x88] sm:$0xff] %v2019
  %2050 = vst [vmem:[#allocation2 + $0x90] sm:$0xff] %v1917
  %2051 = vst [vmem:[#allocation2 + $0x98] sm:$0xff] %v1919
  %2052 = vst [vmem:[#allocation2 + $0xa0] sm:$0xff] %v2024
  %2053 = vst [vmem:[#allocation2 + $0xa8] sm:$0xff] %v1923
  %2054 = vst [vmem:[#allocation2 + $0xb0] sm:$0xff] %v1925
  %2055 = vst [vmem:[#allocation2 + $0xb8] sm:$0xff] %v2029
  %v2056 = vld [vmem:[%s6] sm:$0xff]
  %v2057 = vld [vmem:[%s6 + $0x8] sm:$0xff]
  %v2058 = vld [vmem:[%s6 + $0x10] sm:$0xff]
  %v2059 = vld [vmem:[%s6 + $0x18] sm:$0xff]
  %v2060 = vld [vmem:[%s6 + $0x20] sm:$0xff]
  %v2061 = vld [vmem:[%s6 + $0x28] sm:$0xff]
  %v2062 = vld [vmem:[%s6 + $0x30] sm:$0xff]
  %v2063 = vld [vmem:[%s6 + $0x38] sm:$0xff]
  %v2064 = vld [vmem:[%s6 + $0x40] sm:$0xff]
  %v2065 = vld [vmem:[%s6 + $0x48] sm:$0xff]
  %v2066 = vld [vmem:[%s6 + $0x50] sm:$0xff]
  %v2067 = vld [vmem:[%s6 + $0x58] sm:$0xff]
  %v2068 = vld [vmem:[%s6 + $0x60] sm:$0xff]
  %v2069 = vld [vmem:[%s6 + $0x68] sm:$0xff]
  %v2070 = vld [vmem:[%s6 + $0x70] sm:$0xff]
  %v2071 = vld [vmem:[%s6 + $0x78] sm:$0xff]
  %v2072 = vld [vmem:[%s6 + $0x80] sm:$0xff]
  %v2073 = vld [vmem:[%s6 + $0x88] sm:$0xff]
  %v2074 = vld [vmem:[%s6 + $0x90] sm:$0xff]
  %v2075 = vld [vmem:[%s6 + $0x98] sm:$0xff]
  %v2076 = vld [vmem:[%s6 + $0xa0] sm:$0xff]
  %v2077 = vld [vmem:[%s6 + $0xa8] sm:$0xff]
  %v2078 = vld [vmem:[%s6 + $0xb0] sm:$0xff]
  %v2079 = vld [vmem:[%s6 + $0xb8] sm:$0xff]
  %v2080 = vld [vmem:[%s6 + $0xc0] sm:$0xff]
  %v2081 = vld [vmem:[%s6 + $0xc8] sm:$0xff]
  %v2082 = vld [vmem:[%s6 + $0xd0] sm:$0xff]
  %v2083 = vld [vmem:[%s6 + $0xd8] sm:$0xff]
  %v2084 = vld [vmem:[%s6 + $0xe0] sm:$0xff]
  %v2085 = vld [vmem:[%s6 + $0xe8] sm:$0xff]
  %v2086 = vld [vmem:[%s6 + $0xf0] sm:$0xff]
  %v2087 = vld [vmem:[%s6 + $0xf8] sm:$0xff]
  %v2088 = vld [vmem:[%s6 + $0x100] sm:$0xff]
  %v2089 = vld [vmem:[%s6 + $0x108] sm:$0xff]
  %v2090 = vld [vmem:[%s6 + $0x110] sm:$0xff]
  %v2091 = vld [vmem:[%s6 + $0x118] sm:$0xff]
  %v2092 = vld [vmem:[%s6 + $0x120] sm:$0xff]
  %v2093 = vld [vmem:[%s6 + $0x128] sm:$0xff]
  %v2094 = vld [vmem:[%s6 + $0x130] sm:$0xff]
  %v2095 = vld [vmem:[%s6 + $0x138] sm:$0xff]
  %v2096 = vld [vmem:[%s6 + $0x140] sm:$0xff]
  %v2097 = vld [vmem:[%s6 + $0x148] sm:$0xff]
  %v2098 = vld [vmem:[%s6 + $0x150] sm:$0xff]
  %v2099 = vld [vmem:[%s6 + $0x158] sm:$0xff]
  %v2100 = vld [vmem:[%s6 + $0x160] sm:$0xff]
  %v2101 = vld [vmem:[%s6 + $0x168] sm:$0xff]
  %v2102 = vld [vmem:[%s6 + $0x170] sm:$0xff]
  %v2103 = vld [vmem:[%s6 + $0x178] sm:$0xff]
  %v2104 = vld [vmem:[%s8] sm:$0x1]
  %2105 = vmatprep.subr.mxu0 %v2102
  %2106 = vmatpush1.msra.mxu0 %v2101
  %2107 = vmatprep.subr.mxu0 %v2099
  %2108 = vmatpush1.msra.mxu0 %v2098
  %2109 = vmatprep.subr.mxu0 %v2096
  %2110 = vmatpush1.msra.mxu0 %v2095
  %2111 = vmatprep.subr.mxu0 %v2093
  %2112 = vmatpush1.msra.mxu0 %v2092
  %2113 = vmatprep.subr.mxu0 %v2090
  %2114 = vmatpush1.msra.mxu0 %v2089
  %2115 = vmatprep.subr.mxu0 %v2087
  %2116 = vmatpush1.msra.mxu0 %v2086
  %2117 = vmatprep.subr.mxu0 %v2084
  %2118 = vmatpush1.msra.mxu0 %v2083
  %2119 = vmatprep.subr.mxu0 %v2081
  %2120 = vmatpush1.msra.mxu0 %v2080
  %2121 = vmatprep.subr.mxu0 %v2078
  %2122 = vmatpush1.msra.mxu0 %v2077
  %2123 = vmatprep.subr.mxu0 %v2075
  %2124 = vmatpush1.msra.mxu0 %v2074
  %2125 = vmatprep.subr.mxu0 %v2072
  %2126 = vmatpush1.msra.mxu0 %v2071
  %2127 = vmatprep.subr.mxu0 %v2069
  %2128 = vmatpush1.msra.mxu0 %v2068
  %2129 = vmatprep.subr.mxu0 %v2066
  %2130 = vmatpush1.msra.mxu0 %v2065
  %2131 = vmatprep.subr.mxu0 %v2063
  %2132 = vmatpush1.msra.mxu0 %v2062
  %2133 = vmatprep.subr.mxu0 %v2060
  %2134 = vmatpush1.msra.mxu0 %v2059
  %2135 = vmatprep.subr.mxu0 %v2057
  %2136 = vmatpush1.msra.mxu0 %v2056
  %2137 = vmatprep.subr.mxu0 0.0
  %2138 = vmatpush2.msra.mxu0 0.0
  %2139 = vmatprep.subr.mxu0 0.0
  %2140 = vmatpush2.msra.mxu0 0.0
  %2141 = vmatprep.subr.mxu0 0.0
  %2142 = vmatpush2.msra.mxu0 0.0
  %2143 = vmatprep.subr.mxu0 0.0
  %2144 = vmatpush2.msra.mxu0 0.0
  %2145 = vmatprep.subr.mxu0 0.0
  %2146 = vmatpush2.msra.mxu0 0.0
  %2147 = vmatprep.subr.mxu0 0.0
  %2148 = vmatpush2.msra.mxu0 0.0
  %2149 = vmatprep.subr.mxu0 0.0
  %2150 = vmatpush2.msra.mxu0 0.0
  %2151 = vmatprep.subr.mxu0 0.0
  %2152 = vmatpush2.msra.mxu0 0.0
  %2153 = vmatprep.subr.mxu0 0.0
  %2154 = vmatpush2.msra.mxu0 0.0
  %2155 = vmatprep.subr.mxu0 0.0
  %2156 = vmatpush2.msra.mxu0 0.0
  %2157 = vmatprep.subr.mxu0 0.0
  %2158 = vmatpush2.msra.mxu0 0.0
  %2159 = vmatprep.subr.mxu0 0.0
  %2160 = vmatpush2.msra.mxu0 0.0
  %2161 = vmatprep.subr.mxu0 0.0
  %2162 = vmatpush2.msra.mxu0 0.0
  %2163 = vmatprep.subr.mxu0 0.0
  %2164 = vmatpush2.msra.mxu0 0.0
  %2165 = vmatprep.subr.mxu0 0.0
  %2166 = vmatpush2.msra.mxu0 0.0
  %2167 = vmatprep.subr.mxu0 0.0
  %2168 = vmatpush2.msra.mxu0 0.0
  %2169 = vmatprep.mubr.f32.mxu0 0.0
  %2170 = vmatmul.mubr.f32.gmra.mxu0 0.0
  %v2171 = vpop.f32.mrf.mxu0
  %v2172 = vadd.f32 0.0, %v2171
  %v2173 = vpop.f32.mrf.mxu0
  %v2174 = vadd.f32 0.0, %v2173
  %2175 = vdwg.mxu0
  %2176 = vmatprep.subr.mxu0 0.0
  %2177 = vmatpush1.msra.mxu0 %v2103
  %2178 = vmatprep.subr.mxu0 0.0
  %2179 = vmatpush1.msra.mxu0 %v2100
  %2180 = vmatprep.subr.mxu0 0.0
  %2181 = vmatpush1.msra.mxu0 %v2097
  %2182 = vmatprep.subr.mxu0 0.0
  %2183 = vmatpush1.msra.mxu0 %v2094
  %2184 = vmatprep.subr.mxu0 0.0
  %2185 = vmatpush1.msra.mxu0 %v2091
  %2186 = vmatprep.subr.mxu0 0.0
  %2187 = vmatpush1.msra.mxu0 %v2088
  %2188 = vmatprep.subr.mxu0 0.0
  %2189 = vmatpush1.msra.mxu0 %v2085
  %2190 = vmatprep.subr.mxu0 0.0
  %2191 = vmatpush1.msra.mxu0 %v2082
  %2192 = vmatprep.subr.mxu0 0.0
  %2193 = vmatpush1.msra.mxu0 %v2079
  %2194 = vmatprep.subr.mxu0 0.0
  %2195 = vmatpush1.msra.mxu0 %v2076
  %2196 = vmatprep.subr.mxu0 0.0
  %2197 = vmatpush1.msra.mxu0 %v2073
  %2198 = vmatprep.subr.mxu0 0.0
  %2199 = vmatpush1.msra.mxu0 %v2070
  %2200 = vmatprep.subr.mxu0 0.0
  %2201 = vmatpush1.msra.mxu0 %v2067
  %2202 = vmatprep.subr.mxu0 0.0
  %2203 = vmatpush1.msra.mxu0 %v2064
  %2204 = vmatprep.subr.mxu0 0.0
  %2205 = vmatpush1.msra.mxu0 %v2061
  %2206 = vmatprep.subr.mxu0 0.0
  %2207 = vmatpush1.msra.mxu0 %v2058
  %2208 = vmatprep.subr.mxu0 0.0
  %2209 = vmatpush2.msra.mxu0 0.0
  %2210 = vmatprep.subr.mxu0 0.0
  %2211 = vmatpush2.msra.mxu0 0.0
  %2212 = vmatprep.subr.mxu0 0.0
  %2213 = vmatpush2.msra.mxu0 0.0
  %2214 = vmatprep.subr.mxu0 0.0
  %2215 = vmatpush2.msra.mxu0 0.0
  %2216 = vmatprep.subr.mxu0 0.0
  %2217 = vmatpush2.msra.mxu0 0.0
  %2218 = vmatprep.subr.mxu0 0.0
  %2219 = vmatpush2.msra.mxu0 0.0
  %2220 = vmatprep.subr.mxu0 0.0
  %2221 = vmatpush2.msra.mxu0 0.0
  %2222 = vmatprep.subr.mxu0 0.0
  %2223 = vmatpush2.msra.mxu0 0.0
  %2224 = vmatprep.subr.mxu0 0.0
  %2225 = vmatpush2.msra.mxu0 0.0
  %2226 = vmatprep.subr.mxu0 0.0
  %2227 = vmatpush2.msra.mxu0 0.0
  %2228 = vmatprep.subr.mxu0 0.0
  %2229 = vmatpush2.msra.mxu0 0.0
  %2230 = vmatprep.subr.mxu0 0.0
  %2231 = vmatpush2.msra.mxu0 0.0
  %2232 = vmatprep.subr.mxu0 0.0
  %2233 = vmatpush2.msra.mxu0 0.0
  %2234 = vmatprep.subr.mxu0 0.0
  %2235 = vmatpush2.msra.mxu0 0.0
  %2236 = vmatprep.subr.mxu0 0.0
  %2237 = vmatpush2.msra.mxu0 0.0
  %2238 = vmatprep.subr.mxu0 0.0
  %2239 = vmatpush2.msra.mxu0 0.0
  %2240 = vmatprep.mubr.f32.mxu0 0.0
  %2241 = vmatmul.mubr.f32.gmra.mxu0 0.0
  %v2242 = vpop.f32.mrf.mxu0
  %v2243 = vadd.f32 0.0, %v2242
  %v2244 = vpop.f32.mrf.mxu0
  %2245 = vdwg.mxu0
  %v2246 = vld [vmem:[#allocation2] sm:$0xff]
  %v2247 = vld [vmem:[#allocation2 + $0x8] sm:$0xff]
  %v2248 = vld [vmem:[#allocation2 + $0x10] sm:$0xff]
  %v2249 = vadd.f32 %v2246, %v2172
  %v2250 = vxor.u32 %v2249, 2147483648
  %v2251 = vmul.f32 %v2250, 1.442695
  %v2252 = vpow.pop %v2251
  %v2253 = vadd.f32 %v2252, 1.0
  %v2254 = vrcp.pop %v2253
  %v2255 = vmul.f32 1.0, %v2254
  %v2256 = vadd.f32 %v2247, %v2174
  %v2257 = vxor.u32 %v2256, 2147483648
  %v2258 = vmul.f32 %v2257, 1.442695
  %v2259 = vpow.pop %v2258
  %v2260 = vadd.f32 %v2259, 1.0
  %v2261 = vrcp.pop %v2260
  %v2262 = vmul.f32 1.0, %v2261
  %v2264 = vlaneseq
  %v2265 = vshrl.u32 %v2264, 7
  %v2266 = vsub.s32 0, %v2265
  %v2267 = vrot.slane %v2104, %v2266
  %v2269 = vadd.f32 %v2243, %v2267
  %v2270 = vmul.f32 %v2255, %v2269
  %v2271 = vadd.f32 %v2248, %v2270
  %v2272 = vtanh.pop %v2271
  %v2273 = vsub.f32 1.0, %v2262
  %v2274 = vmul.f32 %v2273, %v2272
  %v2275 = vmul.f32 %v2262, 0.0
  %v2276 = vadd.f32 %v2274, %v2275
  %2277 = vst [vmem:[%s9] sm:$0xff] %v2276
  %2278 = vmatprep.subr.mxu0 %v2102
  %2279 = vmatpush1.msra.mxu0 %v2101
  %2280 = vmatprep.subr.mxu0 %v2099
  %2281 = vmatpush1.msra.mxu0 %v2098
  %2282 = vmatprep.subr.mxu0 %v2096
  %2283 = vmatpush1.msra.mxu0 %v2095
  %2284 = vmatprep.subr.mxu0 %v2093
  %2285 = vmatpush1.msra.mxu0 %v2092
  %2286 = vmatprep.subr.mxu0 %v2090
  %2287 = vmatpush1.msra.mxu0 %v2089
  %2288 = vmatprep.subr.mxu0 %v2087
  %2289 = vmatpush1.msra.mxu0 %v2086
  %2290 = vmatprep.subr.mxu0 %v2084
  %2291 = vmatpush1.msra.mxu0 %v2083
  %2292 = vmatprep.subr.mxu0 %v2081
  %2293 = vmatpush1.msra.mxu0 %v2080
  %2294 = vmatprep.subr.mxu0 %v2078
  %2295 = vmatpush1.msra.mxu0 %v2077
  %2296 = vmatprep.subr.mxu0 %v2075
  %2297 = vmatpush1.msra.mxu0 %v2074
  %2298 = vmatprep.subr.mxu0 %v2072
  %2299 = vmatpush1.msra.mxu0 %v2071
  %2300 = vmatprep.subr.mxu0 %v2069
  %2301 = vmatpush1.msra.mxu0 %v2068
  %2302 = vmatprep.subr.mxu0 %v2066
  %2303 = vmatpush1.msra.mxu0 %v2065
  %2304 = vmatprep.subr.mxu0 %v2063
  %2305 = vmatpush1.msra.mxu0 %v2062
  %2306 = vmatprep.subr.mxu0 %v2060
  %2307 = vmatpush1.msra.mxu0 %v2059
  %2308 = vmatprep.subr.mxu0 %v2057
  %2309 = vmatpush1.msra.mxu0 %v2056
  %2310 = vmatprep.subr.mxu0 0.0
  %2311 = vmatpush2.msra.mxu0 0.0
  %2312 = vmatprep.subr.mxu0 0.0
  %2313 = vmatpush2.msra.mxu0 0.0
  %2314 = vmatprep.subr.mxu0 0.0
  %2315 = vmatpush2.msra.mxu0 0.0
  %2316 = vmatprep.subr.mxu0 0.0
  %2317 = vmatpush2.msra.mxu0 0.0
  %2318 = vmatprep.subr.mxu0 0.0
  %2319 = vmatpush2.msra.mxu0 0.0
  %2320 = vmatprep.subr.mxu0 0.0
  %2321 = vmatpush2.msra.mxu0 0.0
  %2322 = vmatprep.subr.mxu0 0.0
  %2323 = vmatpush2.msra.mxu0 0.0
  %2324 = vmatprep.subr.mxu0 0.0
  %2325 = vmatpush2.msra.mxu0 0.0
  %2326 = vmatprep.subr.mxu0 0.0
  %2327 = vmatpush2.msra.mxu0 0.0
  %2328 = vmatprep.subr.mxu0 0.0
  %2329 = vmatpush2.msra.mxu0 0.0
  %2330 = vmatprep.subr.mxu0 0.0
  %2331 = vmatpush2.msra.mxu0 0.0
  %2332 = vmatprep.subr.mxu0 0.0
  %2333 = vmatpush2.msra.mxu0 0.0
  %2334 = vmatprep.subr.mxu0 0.0
  %2335 = vmatpush2.msra.mxu0 0.0
  %2336 = vmatprep.subr.mxu0 0.0
  %2337 = vmatpush2.msra.mxu0 0.0
  %2338 = vmatprep.subr.mxu0 0.0
  %2339 = vmatpush2.msra.mxu0 0.0
  %2340 = vmatprep.subr.mxu0 0.0
  %2341 = vmatpush2.msra.mxu0 0.0
  %2342 = vmatprep.mubr.f32.mxu0 0.0
  %2343 = vmatmul.mubr.f32.gmra.mxu0 %v2276
  %v2344 = vpop.f32.mrf.mxu0
  %v2345 = vadd.f32 0.0, %v2344
  %v2346 = vpop.f32.mrf.mxu0
  %v2347 = vadd.f32 0.0, %v2346
  %2348 = vdwg.mxu0
  %2349 = vmatprep.subr.mxu0 0.0
  %2350 = vmatpush1.msra.mxu0 %v2103
  %2351 = vmatprep.subr.mxu0 0.0
  %2352 = vmatpush1.msra.mxu0 %v2100
  %2353 = vmatprep.subr.mxu0 0.0
  %2354 = vmatpush1.msra.mxu0 %v2097
  %2355 = vmatprep.subr.mxu0 0.0
  %2356 = vmatpush1.msra.mxu0 %v2094
  %2357 = vmatprep.subr.mxu0 0.0
  %2358 = vmatpush1.msra.mxu0 %v2091
  %2359 = vmatprep.subr.mxu0 0.0
  %2360 = vmatpush1.msra.mxu0 %v2088
  %2361 = vmatprep.subr.mxu0 0.0
  %2362 = vmatpush1.msra.mxu0 %v2085
  %2363 = vmatprep.subr.mxu0 0.0
  %2364 = vmatpush1.msra.mxu0 %v2082
  %2365 = vmatprep.subr.mxu0 0.0
  %2366 = vmatpush1.msra.mxu0 %v2079
  %2367 = vmatprep.subr.mxu0 0.0
  %2368 = vmatpush1.msra.mxu0 %v2076
  %2369 = vmatprep.subr.mxu0 0.0
  %2370 = vmatpush1.msra.mxu0 %v2073
  %2371 = vmatprep.subr.mxu0 0.0
  %2372 = vmatpush1.msra.mxu0 %v2070
  %2373 = vmatprep.subr.mxu0 0.0
  %2374 = vmatpush1.msra.mxu0 %v2067
  %2375 = vmatprep.subr.mxu0 0.0
  %2376 = vmatpush1.msra.mxu0 %v2064
  %2377 = vmatprep.subr.mxu0 0.0
  %2378 = vmatpush1.msra.mxu0 %v2061
  %2379 = vmatprep.subr.mxu0 0.0
  %2380 = vmatpush1.msra.mxu0 %v2058
  %2381 = vmatprep.subr.mxu0 0.0
  %2382 = vmatpush2.msra.mxu0 0.0
  %2383 = vmatprep.subr.mxu0 0.0
  %2384 = vmatpush2.msra.mxu0 0.0
  %2385 = vmatprep.subr.mxu0 0.0
  %2386 = vmatpush2.msra.mxu0 0.0
  %2387 = vmatprep.subr.mxu0 0.0
  %2388 = vmatpush2.msra.mxu0 0.0
  %2389 = vmatprep.subr.mxu0 0.0
  %2390 = vmatpush2.msra.mxu0 0.0
  %2391 = vmatprep.subr.mxu0 0.0
  %2392 = vmatpush2.msra.mxu0 0.0
  %2393 = vmatprep.subr.mxu0 0.0
  %2394 = vmatpush2.msra.mxu0 0.0
  %2395 = vmatprep.subr.mxu0 0.0
  %2396 = vmatpush2.msra.mxu0 0.0
  %2397 = vmatprep.subr.mxu0 0.0
  %2398 = vmatpush2.msra.mxu0 0.0
  %2399 = vmatprep.subr.mxu0 0.0
  %2400 = vmatpush2.msra.mxu0 0.0
  %2401 = vmatprep.subr.mxu0 0.0
  %2402 = vmatpush2.msra.mxu0 0.0
  %2403 = vmatprep.subr.mxu0 0.0
  %2404 = vmatpush2.msra.mxu0 0.0
  %2405 = vmatprep.subr.mxu0 0.0
  %2406 = vmatpush2.msra.mxu0 0.0
  %2407 = vmatprep.subr.mxu0 0.0
  %2408 = vmatpush2.msra.mxu0 0.0
  %2409 = vmatprep.subr.mxu0 0.0
  %2410 = vmatpush2.msra.mxu0 0.0
  %2411 = vmatprep.subr.mxu0 0.0
  %2412 = vmatpush2.msra.mxu0 0.0
  %2413 = vmatprep.mubr.f32.mxu0 0.0
  %2414 = vmatmul.mubr.f32.gmra.mxu0 %v2276
  %v2415 = vpop.f32.mrf.mxu0
  %v2416 = vadd.f32 0.0, %v2415
  %v2417 = vpop.f32.mrf.mxu0
  %2418 = vdwg.mxu0
  %v2419 = vld [vmem:[#allocation2 + $0x18] sm:$0xff]
  %v2420 = vld [vmem:[#allocation2 + $0x20] sm:$0xff]
  %v2421 = vld [vmem:[#allocation2 + $0x28] sm:$0xff]
  %v2422 = vadd.f32 %v2419, %v2345
  %v2423 = vxor.u32 %v2422, 2147483648
  %v2424 = vmul.f32 %v2423, 1.442695
  %v2425 = vpow.pop %v2424
  %v2426 = vadd.f32 %v2425, 1.0
  %v2427 = vrcp.pop %v2426
  %v2428 = vmul.f32 1.0, %v2427
  %v2429 = vadd.f32 %v2420, %v2347
  %v2430 = vxor.u32 %v2429, 2147483648
  %v2431 = vmul.f32 %v2430, 1.442695
  %v2432 = vpow.pop %v2431
  %v2433 = vadd.f32 %v2432, 1.0
  %v2434 = vrcp.pop %v2433
  %v2435 = vmul.f32 1.0, %v2434
  %v2436 = vadd.f32 %v2416, %v2267
  %v2437 = vmul.f32 %v2428, %v2436
  %v2438 = vadd.f32 %v2421, %v2437
  %v2439 = vtanh.pop %v2438
  %v2440 = vsub.f32 1.0, %v2435
  %v2441 = vmul.f32 %v2440, %v2439
  %v2442 = vmul.f32 %v2435, %v2276
  %v2443 = vadd.f32 %v2441, %v2442
  %2444 = vst [vmem:[%s9 + $0x8] sm:$0xff] %v2443
  %2445 = vmatprep.subr.mxu0 %v2102
  %2446 = vmatpush1.msra.mxu0 %v2101
  %2447 = vmatprep.subr.mxu0 %v2099
  %2448 = vmatpush1.msra.mxu0 %v2098
  %2449 = vmatprep.subr.mxu0 %v2096
  %2450 = vmatpush1.msra.mxu0 %v2095
  %2451 = vmatprep.subr.mxu0 %v2093
  %2452 = vmatpush1.msra.mxu0 %v2092
  %2453 = vmatprep.subr.mxu0 %v2090
  %2454 = vmatpush1.msra.mxu0 %v2089
  %2455 = vmatprep.subr.mxu0 %v2087
  %2456 = vmatpush1.msra.mxu0 %v2086
  %2457 = vmatprep.subr.mxu0 %v2084
  %2458 = vmatpush1.msra.mxu0 %v2083
  %2459 = vmatprep.subr.mxu0 %v2081
  %2460 = vmatpush1.msra.mxu0 %v2080
  %2461 = vmatprep.subr.mxu0 %v2078
  %2462 = vmatpush1.msra.mxu0 %v2077
  %2463 = vmatprep.subr.mxu0 %v2075
  %2464 = vmatpush1.msra.mxu0 %v2074
  %2465 = vmatprep.subr.mxu0 %v2072
  %2466 = vmatpush1.msra.mxu0 %v2071
  %2467 = vmatprep.subr.mxu0 %v2069
  %2468 = vmatpush1.msra.mxu0 %v2068
  %2469 = vmatprep.subr.mxu0 %v2066
  %2470 = vmatpush1.msra.mxu0 %v2065
  %2471 = vmatprep.subr.mxu0 %v2063
  %2472 = vmatpush1.msra.mxu0 %v2062
  %2473 = vmatprep.subr.mxu0 %v2060
  %2474 = vmatpush1.msra.mxu0 %v2059
  %2475 = vmatprep.subr.mxu0 %v2057
  %2476 = vmatpush1.msra.mxu0 %v2056
  %2477 = vmatprep.subr.mxu0 0.0
  %2478 = vmatpush2.msra.mxu0 0.0
  %2479 = vmatprep.subr.mxu0 0.0
  %2480 = vmatpush2.msra.mxu0 0.0
  %2481 = vmatprep.subr.mxu0 0.0
  %2482 = vmatpush2.msra.mxu0 0.0
  %2483 = vmatprep.subr.mxu0 0.0
  %2484 = vmatpush2.msra.mxu0 0.0
  %2485 = vmatprep.subr.mxu0 0.0
  %2486 = vmatpush2.msra.mxu0 0.0
  %2487 = vmatprep.subr.mxu0 0.0
  %2488 = vmatpush2.msra.mxu0 0.0
  %2489 = vmatprep.subr.mxu0 0.0
  %2490 = vmatpush2.msra.mxu0 0.0
  %2491 = vmatprep.subr.mxu0 0.0
  %2492 = vmatpush2.msra.mxu0 0.0
  %2493 = vmatprep.subr.mxu0 0.0
  %2494 = vmatpush2.msra.mxu0 0.0
  %2495 = vmatprep.subr.mxu0 0.0
  %2496 = vmatpush2.msra.mxu0 0.0
  %2497 = vmatprep.subr.mxu0 0.0
  %2498 = vmatpush2.msra.mxu0 0.0
  %2499 = vmatprep.subr.mxu0 0.0
  %2500 = vmatpush2.msra.mxu0 0.0
  %2501 = vmatprep.subr.mxu0 0.0
  %2502 = vmatpush2.msra.mxu0 0.0
  %2503 = vmatprep.subr.mxu0 0.0
  %2504 = vmatpush2.msra.mxu0 0.0
  %2505 = vmatprep.subr.mxu0 0.0
  %2506 = vmatpush2.msra.mxu0 0.0
  %2507 = vmatprep.subr.mxu0 0.0
  %2508 = vmatpush2.msra.mxu0 0.0
  %2509 = vmatprep.mubr.f32.mxu0 0.0
  %2510 = vmatmul.mubr.f32.gmra.mxu0 %v2443
  %v2511 = vpop.f32.mrf.mxu0
  %v2512 = vadd.f32 0.0, %v2511
  %v2513 = vpop.f32.mrf.mxu0
  %v2514 = vadd.f32 0.0, %v2513
  %2515 = vdwg.mxu0
  %2516 = vmatprep.subr.mxu0 0.0
  %2517 = vmatpush1.msra.mxu0 %v2103
  %2518 = vmatprep.subr.mxu0 0.0
  %2519 = vmatpush1.msra.mxu0 %v2100
  %2520 = vmatprep.subr.mxu0 0.0
  %2521 = vmatpush1.msra.mxu0 %v2097
  %2522 = vmatprep.subr.mxu0 0.0
  %2523 = vmatpush1.msra.mxu0 %v2094
  %2524 = vmatprep.subr.mxu0 0.0
  %2525 = vmatpush1.msra.mxu0 %v2091
  %2526 = vmatprep.subr.mxu0 0.0
  %2527 = vmatpush1.msra.mxu0 %v2088
  %2528 = vmatprep.subr.mxu0 0.0
  %2529 = vmatpush1.msra.mxu0 %v2085
  %2530 = vmatprep.subr.mxu0 0.0
  %2531 = vmatpush1.msra.mxu0 %v2082
  %2532 = vmatprep.subr.mxu0 0.0
  %2533 = vmatpush1.msra.mxu0 %v2079
  %2534 = vmatprep.subr.mxu0 0.0
  %2535 = vmatpush1.msra.mxu0 %v2076
  %2536 = vmatprep.subr.mxu0 0.0
  %2537 = vmatpush1.msra.mxu0 %v2073
  %2538 = vmatprep.subr.mxu0 0.0
  %2539 = vmatpush1.msra.mxu0 %v2070
  %2540 = vmatprep.subr.mxu0 0.0
  %2541 = vmatpush1.msra.mxu0 %v2067
  %2542 = vmatprep.subr.mxu0 0.0
  %2543 = vmatpush1.msra.mxu0 %v2064
  %2544 = vmatprep.subr.mxu0 0.0
  %2545 = vmatpush1.msra.mxu0 %v2061
  %2546 = vmatprep.subr.mxu0 0.0
  %2547 = vmatpush1.msra.mxu0 %v2058
  %2548 = vmatprep.subr.mxu0 0.0
  %2549 = vmatpush2.msra.mxu0 0.0
  %2550 = vmatprep.subr.mxu0 0.0
  %2551 = vmatpush2.msra.mxu0 0.0
  %2552 = vmatprep.subr.mxu0 0.0
  %2553 = vmatpush2.msra.mxu0 0.0
  %2554 = vmatprep.subr.mxu0 0.0
  %2555 = vmatpush2.msra.mxu0 0.0
  %2556 = vmatprep.subr.mxu0 0.0
  %2557 = vmatpush2.msra.mxu0 0.0
  %2558 = vmatprep.subr.mxu0 0.0
  %2559 = vmatpush2.msra.mxu0 0.0
  %2560 = vmatprep.subr.mxu0 0.0
  %2561 = vmatpush2.msra.mxu0 0.0
  %2562 = vmatprep.subr.mxu0 0.0
  %2563 = vmatpush2.msra.mxu0 0.0
  %2564 = vmatprep.subr.mxu0 0.0
  %2565 = vmatpush2.msra.mxu0 0.0
  %2566 = vmatprep.subr.mxu0 0.0
  %2567 = vmatpush2.msra.mxu0 0.0
  %2568 = vmatprep.subr.mxu0 0.0
  %2569 = vmatpush2.msra.mxu0 0.0
  %2570 = vmatprep.subr.mxu0 0.0
  %2571 = vmatpush2.msra.mxu0 0.0
  %2572 = vmatprep.subr.mxu0 0.0
  %2573 = vmatpush2.msra.mxu0 0.0
  %2574 = vmatprep.subr.mxu0 0.0
  %2575 = vmatpush2.msra.mxu0 0.0
  %2576 = vmatprep.subr.mxu0 0.0
  %2577 = vmatpush2.msra.mxu0 0.0
  %2578 = vmatprep.subr.mxu0 0.0
  %2579 = vmatpush2.msra.mxu0 0.0
  %2580 = vmatprep.mubr.f32.mxu0 0.0
  %2581 = vmatmul.mubr.f32.gmra.mxu0 %v2443
  %v2582 = vpop.f32.mrf.mxu0
  %v2583 = vadd.f32 0.0, %v2582
  %v2584 = vpop.f32.mrf.mxu0
  %2585 = vdwg.mxu0
  %v2586 = vld [vmem:[#allocation2 + $0x30] sm:$0xff]
  %v2587 = vld [vmem:[#allocation2 + $0x38] sm:$0xff]
  %v2588 = vld [vmem:[#allocation2 + $0x40] sm:$0xff]
  %v2589 = vadd.f32 %v2586, %v2512
  %v2590 = vxor.u32 %v2589, 2147483648
  %v2591 = vmul.f32 %v2590, 1.442695
  %v2592 = vpow.pop %v2591
  %v2593 = vadd.f32 %v2592, 1.0
  %v2594 = vrcp.pop %v2593
  %v2595 = vmul.f32 1.0, %v2594
  %v2596 = vadd.f32 %v2587, %v2514
  %v2597 = vxor.u32 %v2596, 2147483648
  %v2598 = vmul.f32 %v2597, 1.442695
  %v2599 = vpow.pop %v2598
  %v2600 = vadd.f32 %v2599, 1.0
  %v2601 = vrcp.pop %v2600
  %v2602 = vmul.f32 1.0, %v2601
  %v2603 = vadd.f32 %v2583, %v2267
  %v2604 = vmul.f32 %v2595, %v2603
  %v2605 = vadd.f32 %v2588, %v2604
  %v2606 = vtanh.pop %v2605
  %v2607 = vsub.f32 1.0, %v2602
  %v2608 = vmul.f32 %v2607, %v2606
  %v2609 = vmul.f32 %v2602, %v2443
  %v2610 = vadd.f32 %v2608, %v2609
  %2611 = vst [vmem:[%s9 + $0x10] sm:$0xff] %v2610
  %2612 = vmatprep.subr.mxu0 %v2102
  %2613 = vmatpush1.msra.mxu0 %v2101
  %2614 = vmatprep.subr.mxu0 %v2099
  %2615 = vmatpush1.msra.mxu0 %v2098
  %2616 = vmatprep.subr.mxu0 %v2096
  %2617 = vmatpush1.msra.mxu0 %v2095
  %2618 = vmatprep.subr.mxu0 %v2093
  %2619 = vmatpush1.msra.mxu0 %v2092
  %2620 = vmatprep.subr.mxu0 %v2090
  %2621 = vmatpush1.msra.mxu0 %v2089
  %2622 = vmatprep.subr.mxu0 %v2087
  %2623 = vmatpush1.msra.mxu0 %v2086
  %2624 = vmatprep.subr.mxu0 %v2084
  %2625 = vmatpush1.msra.mxu0 %v2083
  %2626 = vmatprep.subr.mxu0 %v2081
  %2627 = vmatpush1.msra.mxu0 %v2080
  %2628 = vmatprep.subr.mxu0 %v2078
  %2629 = vmatpush1.msra.mxu0 %v2077
  %2630 = vmatprep.subr.mxu0 %v2075
  %2631 = vmatpush1.msra.mxu0 %v2074
  %2632 = vmatprep.subr.mxu0 %v2072
  %2633 = vmatpush1.msra.mxu0 %v2071
  %2634 = vmatprep.subr.mxu0 %v2069
  %2635 = vmatpush1.msra.mxu0 %v2068
  %2636 = vmatprep.subr.mxu0 %v2066
  %2637 = vmatpush1.msra.mxu0 %v2065
  %2638 = vmatprep.subr.mxu0 %v2063
  %2639 = vmatpush1.msra.mxu0 %v2062
  %2640 = vmatprep.subr.mxu0 %v2060
  %2641 = vmatpush1.msra.mxu0 %v2059
  %2642 = vmatprep.subr.mxu0 %v2057
  %2643 = vmatpush1.msra.mxu0 %v2056
  %2644 = vmatprep.subr.mxu0 0.0
  %2645 = vmatpush2.msra.mxu0 0.0
  %2646 = vmatprep.subr.mxu0 0.0
  %2647 = vmatpush2.msra.mxu0 0.0
  %2648 = vmatprep.subr.mxu0 0.0
  %2649 = vmatpush2.msra.mxu0 0.0
  %2650 = vmatprep.subr.mxu0 0.0
  %2651 = vmatpush2.msra.mxu0 0.0
  %2652 = vmatprep.subr.mxu0 0.0
  %2653 = vmatpush2.msra.mxu0 0.0
  %2654 = vmatprep.subr.mxu0 0.0
  %2655 = vmatpush2.msra.mxu0 0.0
  %2656 = vmatprep.subr.mxu0 0.0
  %2657 = vmatpush2.msra.mxu0 0.0
  %2658 = vmatprep.subr.mxu0 0.0
  %2659 = vmatpush2.msra.mxu0 0.0
  %2660 = vmatprep.subr.mxu0 0.0
  %2661 = vmatpush2.msra.mxu0 0.0
  %2662 = vmatprep.subr.mxu0 0.0
  %2663 = vmatpush2.msra.mxu0 0.0
  %2664 = vmatprep.subr.mxu0 0.0
  %2665 = vmatpush2.msra.mxu0 0.0
  %2666 = vmatprep.subr.mxu0 0.0
  %2667 = vmatpush2.msra.mxu0 0.0
  %2668 = vmatprep.subr.mxu0 0.0
  %2669 = vmatpush2.msra.mxu0 0.0
  %2670 = vmatprep.subr.mxu0 0.0
  %2671 = vmatpush2.msra.mxu0 0.0
  %2672 = vmatprep.subr.mxu0 0.0
  %2673 = vmatpush2.msra.mxu0 0.0
  %2674 = vmatprep.subr.mxu0 0.0
  %2675 = vmatpush2.msra.mxu0 0.0
  %2676 = vmatprep.mubr.f32.mxu0 0.0
  %2677 = vmatmul.mubr.f32.gmra.mxu0 %v2610
  %v2678 = vpop.f32.mrf.mxu0
  %v2679 = vadd.f32 0.0, %v2678
  %v2680 = vpop.f32.mrf.mxu0
  %v2681 = vadd.f32 0.0, %v2680
  %2682 = vdwg.mxu0
  %2683 = vmatprep.subr.mxu0 0.0
  %2684 = vmatpush1.msra.mxu0 %v2103
  %2685 = vmatprep.subr.mxu0 0.0
  %2686 = vmatpush1.msra.mxu0 %v2100
  %2687 = vmatprep.subr.mxu0 0.0
  %2688 = vmatpush1.msra.mxu0 %v2097
  %2689 = vmatprep.subr.mxu0 0.0
  %2690 = vmatpush1.msra.mxu0 %v2094
  %2691 = vmatprep.subr.mxu0 0.0
  %2692 = vmatpush1.msra.mxu0 %v2091
  %2693 = vmatprep.subr.mxu0 0.0
  %2694 = vmatpush1.msra.mxu0 %v2088
  %2695 = vmatprep.subr.mxu0 0.0
  %2696 = vmatpush1.msra.mxu0 %v2085
  %2697 = vmatprep.subr.mxu0 0.0
  %2698 = vmatpush1.msra.mxu0 %v2082
  %2699 = vmatprep.subr.mxu0 0.0
  %2700 = vmatpush1.msra.mxu0 %v2079
  %2701 = vmatprep.subr.mxu0 0.0
  %2702 = vmatpush1.msra.mxu0 %v2076
  %2703 = vmatprep.subr.mxu0 0.0
  %2704 = vmatpush1.msra.mxu0 %v2073
  %2705 = vmatprep.subr.mxu0 0.0
  %2706 = vmatpush1.msra.mxu0 %v2070
  %2707 = vmatprep.subr.mxu0 0.0
  %2708 = vmatpush1.msra.mxu0 %v2067
  %2709 = vmatprep.subr.mxu0 0.0
  %2710 = vmatpush1.msra.mxu0 %v2064
  %2711 = vmatprep.subr.mxu0 0.0
  %2712 = vmatpush1.msra.mxu0 %v2061
  %2713 = vmatprep.subr.mxu0 0.0
  %2714 = vmatpush1.msra.mxu0 %v2058
  %2715 = vmatprep.subr.mxu0 0.0
  %2716 = vmatpush2.msra.mxu0 0.0
  %2717 = vmatprep.subr.mxu0 0.0
  %2718 = vmatpush2.msra.mxu0 0.0
  %2719 = vmatprep.subr.mxu0 0.0
  %2720 = vmatpush2.msra.mxu0 0.0
  %2721 = vmatprep.subr.mxu0 0.0
  %2722 = vmatpush2.msra.mxu0 0.0
  %2723 = vmatprep.subr.mxu0 0.0
  %2724 = vmatpush2.msra.mxu0 0.0
  %2725 = vmatprep.subr.mxu0 0.0
  %2726 = vmatpush2.msra.mxu0 0.0
  %2727 = vmatprep.subr.mxu0 0.0
  %2728 = vmatpush2.msra.mxu0 0.0
  %2729 = vmatprep.subr.mxu0 0.0
  %2730 = vmatpush2.msra.mxu0 0.0
  %2731 = vmatprep.subr.mxu0 0.0
  %2732 = vmatpush2.msra.mxu0 0.0
  %2733 = vmatprep.subr.mxu0 0.0
  %2734 = vmatpush2.msra.mxu0 0.0
  %2735 = vmatprep.subr.mxu0 0.0
  %2736 = vmatpush2.msra.mxu0 0.0
  %2737 = vmatprep.subr.mxu0 0.0
  %2738 = vmatpush2.msra.mxu0 0.0
  %2739 = vmatprep.subr.mxu0 0.0
  %2740 = vmatpush2.msra.mxu0 0.0
  %2741 = vmatprep.subr.mxu0 0.0
  %2742 = vmatpush2.msra.mxu0 0.0
  %2743 = vmatprep.subr.mxu0 0.0
  %2744 = vmatpush2.msra.mxu0 0.0
  %2745 = vmatprep.subr.mxu0 0.0
  %2746 = vmatpush2.msra.mxu0 0.0
  %2747 = vmatprep.mubr.f32.mxu0 0.0
  %2748 = vmatmul.mubr.f32.gmra.mxu0 %v2610
  %v2749 = vpop.f32.mrf.mxu0
  %v2750 = vadd.f32 0.0, %v2749
  %v2751 = vpop.f32.mrf.mxu0
  %2752 = vdwg.mxu0
  %v2753 = vld [vmem:[#allocation2 + $0x48] sm:$0xff]
  %v2754 = vld [vmem:[#allocation2 + $0x50] sm:$0xff]
  %v2755 = vld [vmem:[#allocation2 + $0x58] sm:$0xff]
  %v2756 = vadd.f32 %v2753, %v2679
  %v2757 = vxor.u32 %v2756, 2147483648
  %v2758 = vmul.f32 %v2757, 1.442695
  %v2759 = vpow.pop %v2758
  %v2760 = vadd.f32 %v2759, 1.0
  %v2761 = vrcp.pop %v2760
  %v2762 = vmul.f32 1.0, %v2761
  %v2763 = vadd.f32 %v2754, %v2681
  %v2764 = vxor.u32 %v2763, 2147483648
  %v2765 = vmul.f32 %v2764, 1.442695
  %v2766 = vpow.pop %v2765
  %v2767 = vadd.f32 %v2766, 1.0
  %v2768 = vrcp.pop %v2767
  %v2769 = vmul.f32 1.0, %v2768
  %v2770 = vadd.f32 %v2750, %v2267
  %v2771 = vmul.f32 %v2762, %v2770
  %v2772 = vadd.f32 %v2755, %v2771
  %v2773 = vtanh.pop %v2772
  %v2774 = vsub.f32 1.0, %v2769
  %v2775 = vmul.f32 %v2774, %v2773
  %v2776 = vmul.f32 %v2769, %v2610
  %v2777 = vadd.f32 %v2775, %v2776
  %2778 = vst [vmem:[%s9 + $0x18] sm:$0xff] %v2777
  %2779 = vmatprep.subr.mxu0 %v2102
  %2780 = vmatpush1.msra.mxu0 %v2101
  %2781 = vmatprep.subr.mxu0 %v2099
  %2782 = vmatpush1.msra.mxu0 %v2098
  %2783 = vmatprep.subr.mxu0 %v2096
  %2784 = vmatpush1.msra.mxu0 %v2095
  %2785 = vmatprep.subr.mxu0 %v2093
  %2786 = vmatpush1.msra.mxu0 %v2092
  %2787 = vmatprep.subr.mxu0 %v2090
  %2788 = vmatpush1.msra.mxu0 %v2089
  %2789 = vmatprep.subr.mxu0 %v2087
  %2790 = vmatpush1.msra.mxu0 %v2086
  %2791 = vmatprep.subr.mxu0 %v2084
  %2792 = vmatpush1.msra.mxu0 %v2083
  %2793 = vmatprep.subr.mxu0 %v2081
  %2794 = vmatpush1.msra.mxu0 %v2080
  %2795 = vmatprep.subr.mxu0 %v2078
  %2796 = vmatpush1.msra.mxu0 %v2077
  %2797 = vmatprep.subr.mxu0 %v2075
  %2798 = vmatpush1.msra.mxu0 %v2074
  %2799 = vmatprep.subr.mxu0 %v2072
  %2800 = vmatpush1.msra.mxu0 %v2071
  %2801 = vmatprep.subr.mxu0 %v2069
  %2802 = vmatpush1.msra.mxu0 %v2068
  %2803 = vmatprep.subr.mxu0 %v2066
  %2804 = vmatpush1.msra.mxu0 %v2065
  %2805 = vmatprep.subr.mxu0 %v2063
  %2806 = vmatpush1.msra.mxu0 %v2062
  %2807 = vmatprep.subr.mxu0 %v2060
  %2808 = vmatpush1.msra.mxu0 %v2059
  %2809 = vmatprep.subr.mxu0 %v2057
  %2810 = vmatpush1.msra.mxu0 %v2056
  %2811 = vmatprep.subr.mxu0 0.0
  %2812 = vmatpush2.msra.mxu0 0.0
  %2813 = vmatprep.subr.mxu0 0.0
  %2814 = vmatpush2.msra.mxu0 0.0
  %2815 = vmatprep.subr.mxu0 0.0
  %2816 = vmatpush2.msra.mxu0 0.0
  %2817 = vmatprep.subr.mxu0 0.0
  %2818 = vmatpush2.msra.mxu0 0.0
  %2819 = vmatprep.subr.mxu0 0.0
  %2820 = vmatpush2.msra.mxu0 0.0
  %2821 = vmatprep.subr.mxu0 0.0
  %2822 = vmatpush2.msra.mxu0 0.0
  %2823 = vmatprep.subr.mxu0 0.0
  %2824 = vmatpush2.msra.mxu0 0.0
  %2825 = vmatprep.subr.mxu0 0.0
  %2826 = vmatpush2.msra.mxu0 0.0
  %2827 = vmatprep.subr.mxu0 0.0
  %2828 = vmatpush2.msra.mxu0 0.0
  %2829 = vmatprep.subr.mxu0 0.0
  %2830 = vmatpush2.msra.mxu0 0.0
  %2831 = vmatprep.subr.mxu0 0.0
  %2832 = vmatpush2.msra.mxu0 0.0
  %2833 = vmatprep.subr.mxu0 0.0
  %2834 = vmatpush2.msra.mxu0 0.0
  %2835 = vmatprep.subr.mxu0 0.0
  %2836 = vmatpush2.msra.mxu0 0.0
  %2837 = vmatprep.subr.mxu0 0.0
  %2838 = vmatpush2.msra.mxu0 0.0
  %2839 = vmatprep.subr.mxu0 0.0
  %2840 = vmatpush2.msra.mxu0 0.0
  %2841 = vmatprep.subr.mxu0 0.0
  %2842 = vmatpush2.msra.mxu0 0.0
  %2843 = vmatprep.mubr.f32.mxu0 0.0
  %2844 = vmatmul.mubr.f32.gmra.mxu0 %v2777
  %v2845 = vpop.f32.mrf.mxu0
  %v2846 = vadd.f32 0.0, %v2845
  %v2847 = vpop.f32.mrf.mxu0
  %v2848 = vadd.f32 0.0, %v2847
  %2849 = vdwg.mxu0
  %2850 = vmatprep.subr.mxu0 0.0
  %2851 = vmatpush1.msra.mxu0 %v2103
  %2852 = vmatprep.subr.mxu0 0.0
  %2853 = vmatpush1.msra.mxu0 %v2100
  %2854 = vmatprep.subr.mxu0 0.0
  %2855 = vmatpush1.msra.mxu0 %v2097
  %2856 = vmatprep.subr.mxu0 0.0
  %2857 = vmatpush1.msra.mxu0 %v2094
  %2858 = vmatprep.subr.mxu0 0.0
  %2859 = vmatpush1.msra.mxu0 %v2091
  %2860 = vmatprep.subr.mxu0 0.0
  %2861 = vmatpush1.msra.mxu0 %v2088
  %2862 = vmatprep.subr.mxu0 0.0
  %2863 = vmatpush1.msra.mxu0 %v2085
  %2864 = vmatprep.subr.mxu0 0.0
  %2865 = vmatpush1.msra.mxu0 %v2082
  %2866 = vmatprep.subr.mxu0 0.0
  %2867 = vmatpush1.msra.mxu0 %v2079
  %2868 = vmatprep.subr.mxu0 0.0
  %2869 = vmatpush1.msra.mxu0 %v2076
  %2870 = vmatprep.subr.mxu0 0.0
  %2871 = vmatpush1.msra.mxu0 %v2073
  %2872 = vmatprep.subr.mxu0 0.0
  %2873 = vmatpush1.msra.mxu0 %v2070
  %2874 = vmatprep.subr.mxu0 0.0
  %2875 = vmatpush1.msra.mxu0 %v2067
  %2876 = vmatprep.subr.mxu0 0.0
  %2877 = vmatpush1.msra.mxu0 %v2064
  %2878 = vmatprep.subr.mxu0 0.0
  %2879 = vmatpush1.msra.mxu0 %v2061
  %2880 = vmatprep.subr.mxu0 0.0
  %2881 = vmatpush1.msra.mxu0 %v2058
  %2882 = vmatprep.subr.mxu0 0.0
  %2883 = vmatpush2.msra.mxu0 0.0
  %2884 = vmatprep.subr.mxu0 0.0
  %2885 = vmatpush2.msra.mxu0 0.0
  %2886 = vmatprep.subr.mxu0 0.0
  %2887 = vmatpush2.msra.mxu0 0.0
  %2888 = vmatprep.subr.mxu0 0.0
  %2889 = vmatpush2.msra.mxu0 0.0
  %2890 = vmatprep.subr.mxu0 0.0
  %2891 = vmatpush2.msra.mxu0 0.0
  %2892 = vmatprep.subr.mxu0 0.0
  %2893 = vmatpush2.msra.mxu0 0.0
  %2894 = vmatprep.subr.mxu0 0.0
  %2895 = vmatpush2.msra.mxu0 0.0
  %2896 = vmatprep.subr.mxu0 0.0
  %2897 = vmatpush2.msra.mxu0 0.0
  %2898 = vmatprep.subr.mxu0 0.0
  %2899 = vmatpush2.msra.mxu0 0.0
  %2900 = vmatprep.subr.mxu0 0.0
  %2901 = vmatpush2.msra.mxu0 0.0
  %2902 = vmatprep.subr.mxu0 0.0
  %2903 = vmatpush2.msra.mxu0 0.0
  %2904 = vmatprep.subr.mxu0 0.0
  %2905 = vmatpush2.msra.mxu0 0.0
  %2906 = vmatprep.subr.mxu0 0.0
  %2907 = vmatpush2.msra.mxu0 0.0
  %2908 = vmatprep.subr.mxu0 0.0
  %2909 = vmatpush2.msra.mxu0 0.0
  %2910 = vmatprep.subr.mxu0 0.0
  %2911 = vmatpush2.msra.mxu0 0.0
  %2912 = vmatprep.subr.mxu0 0.0
  %2913 = vmatpush2.msra.mxu0 0.0
  %2914 = vmatprep.mubr.f32.mxu0 0.0
  %2915 = vmatmul.mubr.f32.gmra.mxu0 %v2777
  %v2916 = vpop.f32.mrf.mxu0
  %v2917 = vadd.f32 0.0, %v2916
  %v2918 = vpop.f32.mrf.mxu0
  %2919 = vdwg.mxu0
  %v2920 = vld [vmem:[#allocation2 + $0x60] sm:$0xff]
  %v2921 = vld [vmem:[#allocation2 + $0x68] sm:$0xff]
  %v2922 = vld [vmem:[#allocation2 + $0x70] sm:$0xff]
  %v2923 = vadd.f32 %v2920, %v2846
  %v2924 = vxor.u32 %v2923, 2147483648
  %v2925 = vmul.f32 %v2924, 1.442695
  %v2926 = vpow.pop %v2925
  %v2927 = vadd.f32 %v2926, 1.0
  %v2928 = vrcp.pop %v2927
  %v2929 = vmul.f32 1.0, %v2928
  %v2930 = vadd.f32 %v2921, %v2848
  %v2931 = vxor.u32 %v2930, 2147483648
  %v2932 = vmul.f32 %v2931, 1.442695
  %v2933 = vpow.pop %v2932
  %v2934 = vadd.f32 %v2933, 1.0
  %v2935 = vrcp.pop %v2934
  %v2936 = vmul.f32 1.0, %v2935
  %v2937 = vadd.f32 %v2917, %v2267
  %v2938 = vmul.f32 %v2929, %v2937
  %v2939 = vadd.f32 %v2922, %v2938
  %v2940 = vtanh.pop %v2939
  %v2941 = vsub.f32 1.0, %v2936
  %v2942 = vmul.f32 %v2941, %v2940
  %v2943 = vmul.f32 %v2936, %v2777
  %v2944 = vadd.f32 %v2942, %v2943
  %2945 = vst [vmem:[%s9 + $0x20] sm:$0xff] %v2944
  %2946 = vmatprep.subr.mxu0 %v2102
  %2947 = vmatpush1.msra.mxu0 %v2101
  %2948 = vmatprep.subr.mxu0 %v2099
  %2949 = vmatpush1.msra.mxu0 %v2098
  %2950 = vmatprep.subr.mxu0 %v2096
  %2951 = vmatpush1.msra.mxu0 %v2095
  %2952 = vmatprep.subr.mxu0 %v2093
  %2953 = vmatpush1.msra.mxu0 %v2092
  %2954 = vmatprep.subr.mxu0 %v2090
  %2955 = vmatpush1.msra.mxu0 %v2089
  %2956 = vmatprep.subr.mxu0 %v2087
  %2957 = vmatpush1.msra.mxu0 %v2086
  %2958 = vmatprep.subr.mxu0 %v2084
  %2959 = vmatpush1.msra.mxu0 %v2083
  %2960 = vmatprep.subr.mxu0 %v2081
  %2961 = vmatpush1.msra.mxu0 %v2080
  %2962 = vmatprep.subr.mxu0 %v2078
  %2963 = vmatpush1.msra.mxu0 %v2077
  %2964 = vmatprep.subr.mxu0 %v2075
  %2965 = vmatpush1.msra.mxu0 %v2074
  %2966 = vmatprep.subr.mxu0 %v2072
  %2967 = vmatpush1.msra.mxu0 %v2071
  %2968 = vmatprep.subr.mxu0 %v2069
  %2969 = vmatpush1.msra.mxu0 %v2068
  %2970 = vmatprep.subr.mxu0 %v2066
  %2971 = vmatpush1.msra.mxu0 %v2065
  %2972 = vmatprep.subr.mxu0 %v2063
  %2973 = vmatpush1.msra.mxu0 %v2062
  %2974 = vmatprep.subr.mxu0 %v2060
  %2975 = vmatpush1.msra.mxu0 %v2059
  %2976 = vmatprep.subr.mxu0 %v2057
  %2977 = vmatpush1.msra.mxu0 %v2056
  %2978 = vmatprep.subr.mxu0 0.0
  %2979 = vmatpush2.msra.mxu0 0.0
  %2980 = vmatprep.subr.mxu0 0.0
  %2981 = vmatpush2.msra.mxu0 0.0
  %2982 = vmatprep.subr.mxu0 0.0
  %2983 = vmatpush2.msra.mxu0 0.0
  %2984 = vmatprep.subr.mxu0 0.0
  %2985 = vmatpush2.msra.mxu0 0.0
  %2986 = vmatprep.subr.mxu0 0.0
  %2987 = vmatpush2.msra.mxu0 0.0
  %2988 = vmatprep.subr.mxu0 0.0
  %2989 = vmatpush2.msra.mxu0 0.0
  %2990 = vmatprep.subr.mxu0 0.0
  %2991 = vmatpush2.msra.mxu0 0.0
  %2992 = vmatprep.subr.mxu0 0.0
  %2993 = vmatpush2.msra.mxu0 0.0
  %2994 = vmatprep.subr.mxu0 0.0
  %2995 = vmatpush2.msra.mxu0 0.0
  %2996 = vmatprep.subr.mxu0 0.0
  %2997 = vmatpush2.msra.mxu0 0.0
  %2998 = vmatprep.subr.mxu0 0.0
  %2999 = vmatpush2.msra.mxu0 0.0
  %3000 = vmatprep.subr.mxu0 0.0
  %3001 = vmatpush2.msra.mxu0 0.0
  %3002 = vmatprep.subr.mxu0 0.0
  %3003 = vmatpush2.msra.mxu0 0.0
  %3004 = vmatprep.subr.mxu0 0.0
  %3005 = vmatpush2.msra.mxu0 0.0
  %3006 = vmatprep.subr.mxu0 0.0
  %3007 = vmatpush2.msra.mxu0 0.0
  %3008 = vmatprep.subr.mxu0 0.0
  %3009 = vmatpush2.msra.mxu0 0.0
  %3010 = vmatprep.mubr.f32.mxu0 0.0
  %3011 = vmatmul.mubr.f32.gmra.mxu0 %v2944
  %v3012 = vpop.f32.mrf.mxu0
  %v3013 = vadd.f32 0.0, %v3012
  %v3014 = vpop.f32.mrf.mxu0
  %v3015 = vadd.f32 0.0, %v3014
  %3016 = vdwg.mxu0
  %3017 = vmatprep.subr.mxu0 0.0
  %3018 = vmatpush1.msra.mxu0 %v2103
  %3019 = vmatprep.subr.mxu0 0.0
  %3020 = vmatpush1.msra.mxu0 %v2100
  %3021 = vmatprep.subr.mxu0 0.0
  %3022 = vmatpush1.msra.mxu0 %v2097
  %3023 = vmatprep.subr.mxu0 0.0
  %3024 = vmatpush1.msra.mxu0 %v2094
  %3025 = vmatprep.subr.mxu0 0.0
  %3026 = vmatpush1.msra.mxu0 %v2091
  %3027 = vmatprep.subr.mxu0 0.0
  %3028 = vmatpush1.msra.mxu0 %v2088
  %3029 = vmatprep.subr.mxu0 0.0
  %3030 = vmatpush1.msra.mxu0 %v2085
  %3031 = vmatprep.subr.mxu0 0.0
  %3032 = vmatpush1.msra.mxu0 %v2082
  %3033 = vmatprep.subr.mxu0 0.0
  %3034 = vmatpush1.msra.mxu0 %v2079
  %3035 = vmatprep.subr.mxu0 0.0
  %3036 = vmatpush1.msra.mxu0 %v2076
  %3037 = vmatprep.subr.mxu0 0.0
  %3038 = vmatpush1.msra.mxu0 %v2073
  %3039 = vmatprep.subr.mxu0 0.0
  %3040 = vmatpush1.msra.mxu0 %v2070
  %3041 = vmatprep.subr.mxu0 0.0
  %3042 = vmatpush1.msra.mxu0 %v2067
  %3043 = vmatprep.subr.mxu0 0.0
  %3044 = vmatpush1.msra.mxu0 %v2064
  %3045 = vmatprep.subr.mxu0 0.0
  %3046 = vmatpush1.msra.mxu0 %v2061
  %3047 = vmatprep.subr.mxu0 0.0
  %3048 = vmatpush1.msra.mxu0 %v2058
  %3049 = vmatprep.subr.mxu0 0.0
  %3050 = vmatpush2.msra.mxu0 0.0
  %3051 = vmatprep.subr.mxu0 0.0
  %3052 = vmatpush2.msra.mxu0 0.0
  %3053 = vmatprep.subr.mxu0 0.0
  %3054 = vmatpush2.msra.mxu0 0.0
  %3055 = vmatprep.subr.mxu0 0.0
  %3056 = vmatpush2.msra.mxu0 0.0
  %3057 = vmatprep.subr.mxu0 0.0
  %3058 = vmatpush2.msra.mxu0 0.0
  %3059 = vmatprep.subr.mxu0 0.0
  %3060 = vmatpush2.msra.mxu0 0.0
  %3061 = vmatprep.subr.mxu0 0.0
  %3062 = vmatpush2.msra.mxu0 0.0
  %3063 = vmatprep.subr.mxu0 0.0
  %3064 = vmatpush2.msra.mxu0 0.0
  %3065 = vmatprep.subr.mxu0 0.0
  %3066 = vmatpush2.msra.mxu0 0.0
  %3067 = vmatprep.subr.mxu0 0.0
  %3068 = vmatpush2.msra.mxu0 0.0
  %3069 = vmatprep.subr.mxu0 0.0
  %3070 = vmatpush2.msra.mxu0 0.0
  %3071 = vmatprep.subr.mxu0 0.0
  %3072 = vmatpush2.msra.mxu0 0.0
  %3073 = vmatprep.subr.mxu0 0.0
  %3074 = vmatpush2.msra.mxu0 0.0
  %3075 = vmatprep.subr.mxu0 0.0
  %3076 = vmatpush2.msra.mxu0 0.0
  %3077 = vmatprep.subr.mxu0 0.0
  %3078 = vmatpush2.msra.mxu0 0.0
  %3079 = vmatprep.subr.mxu0 0.0
  %3080 = vmatpush2.msra.mxu0 0.0
  %3081 = vmatprep.mubr.f32.mxu0 0.0
  %3082 = vmatmul.mubr.f32.gmra.mxu0 %v2944
  %v3083 = vpop.f32.mrf.mxu0
  %v3084 = vadd.f32 0.0, %v3083
  %v3085 = vpop.f32.mrf.mxu0
  %3086 = vdwg.mxu0
  %v3087 = vld [vmem:[#allocation2 + $0x78] sm:$0xff]
  %v3088 = vld [vmem:[#allocation2 + $0x80] sm:$0xff]
  %v3089 = vld [vmem:[#allocation2 + $0x88] sm:$0xff]
  %v3090 = vadd.f32 %v3087, %v3013
  %v3091 = vxor.u32 %v3090, 2147483648
  %v3092 = vmul.f32 %v3091, 1.442695
  %v3093 = vpow.pop %v3092
  %v3094 = vadd.f32 %v3093, 1.0
  %v3095 = vrcp.pop %v3094
  %v3096 = vmul.f32 1.0, %v3095
  %v3097 = vadd.f32 %v3088, %v3015
  %v3098 = vxor.u32 %v3097, 2147483648
  %v3099 = vmul.f32 %v3098, 1.442695
  %v3100 = vpow.pop %v3099
  %v3101 = vadd.f32 %v3100, 1.0
  %v3102 = vrcp.pop %v3101
  %v3103 = vmul.f32 1.0, %v3102
  %v3104 = vadd.f32 %v3084, %v2267
  %v3105 = vmul.f32 %v3096, %v3104
  %v3106 = vadd.f32 %v3089, %v3105
  %v3107 = vtanh.pop %v3106
  %v3108 = vsub.f32 1.0, %v3103
  %v3109 = vmul.f32 %v3108, %v3107
  %v3110 = vmul.f32 %v3103, %v2944
  %v3111 = vadd.f32 %v3109, %v3110
  %3112 = vst [vmem:[%s9 + $0x28] sm:$0xff] %v3111
  %3113 = vmatprep.subr.mxu0 %v2102
  %3114 = vmatpush1.msra.mxu0 %v2101
  %3115 = vmatprep.subr.mxu0 %v2099
  %3116 = vmatpush1.msra.mxu0 %v2098
  %3117 = vmatprep.subr.mxu0 %v2096
  %3118 = vmatpush1.msra.mxu0 %v2095
  %3119 = vmatprep.subr.mxu0 %v2093
  %3120 = vmatpush1.msra.mxu0 %v2092
  %3121 = vmatprep.subr.mxu0 %v2090
  %3122 = vmatpush1.msra.mxu0 %v2089
  %3123 = vmatprep.subr.mxu0 %v2087
  %3124 = vmatpush1.msra.mxu0 %v2086
  %3125 = vmatprep.subr.mxu0 %v2084
  %3126 = vmatpush1.msra.mxu0 %v2083
  %3127 = vmatprep.subr.mxu0 %v2081
  %3128 = vmatpush1.msra.mxu0 %v2080
  %3129 = vmatprep.subr.mxu0 %v2078
  %3130 = vmatpush1.msra.mxu0 %v2077
  %3131 = vmatprep.subr.mxu0 %v2075
  %3132 = vmatpush1.msra.mxu0 %v2074
  %3133 = vmatprep.subr.mxu0 %v2072
  %3134 = vmatpush1.msra.mxu0 %v2071
  %3135 = vmatprep.subr.mxu0 %v2069
  %3136 = vmatpush1.msra.mxu0 %v2068
  %3137 = vmatprep.subr.mxu0 %v2066
  %3138 = vmatpush1.msra.mxu0 %v2065
  %3139 = vmatprep.subr.mxu0 %v2063
  %3140 = vmatpush1.msra.mxu0 %v2062
  %3141 = vmatprep.subr.mxu0 %v2060
  %3142 = vmatpush1.msra.mxu0 %v2059
  %3143 = vmatprep.subr.mxu0 %v2057
  %3144 = vmatpush1.msra.mxu0 %v2056
  %3145 = vmatprep.subr.mxu0 0.0
  %3146 = vmatpush2.msra.mxu0 0.0
  %3147 = vmatprep.subr.mxu0 0.0
  %3148 = vmatpush2.msra.mxu0 0.0
  %3149 = vmatprep.subr.mxu0 0.0
  %3150 = vmatpush2.msra.mxu0 0.0
  %3151 = vmatprep.subr.mxu0 0.0
  %3152 = vmatpush2.msra.mxu0 0.0
  %3153 = vmatprep.subr.mxu0 0.0
  %3154 = vmatpush2.msra.mxu0 0.0
  %3155 = vmatprep.subr.mxu0 0.0
  %3156 = vmatpush2.msra.mxu0 0.0
  %3157 = vmatprep.subr.mxu0 0.0
  %3158 = vmatpush2.msra.mxu0 0.0
  %3159 = vmatprep.subr.mxu0 0.0
  %3160 = vmatpush2.msra.mxu0 0.0
  %3161 = vmatprep.subr.mxu0 0.0
  %3162 = vmatpush2.msra.mxu0 0.0
  %3163 = vmatprep.subr.mxu0 0.0
  %3164 = vmatpush2.msra.mxu0 0.0
  %3165 = vmatprep.subr.mxu0 0.0
  %3166 = vmatpush2.msra.mxu0 0.0
  %3167 = vmatprep.subr.mxu0 0.0
  %3168 = vmatpush2.msra.mxu0 0.0
  %3169 = vmatprep.subr.mxu0 0.0
  %3170 = vmatpush2.msra.mxu0 0.0
  %3171 = vmatprep.subr.mxu0 0.0
  %3172 = vmatpush2.msra.mxu0 0.0
  %3173 = vmatprep.subr.mxu0 0.0
  %3174 = vmatpush2.msra.mxu0 0.0
  %3175 = vmatprep.subr.mxu0 0.0
  %3176 = vmatpush2.msra.mxu0 0.0
  %3177 = vmatprep.mubr.f32.mxu0 0.0
  %3178 = vmatmul.mubr.f32.gmra.mxu0 %v3111
  %v3179 = vpop.f32.mrf.mxu0
  %v3180 = vadd.f32 0.0, %v3179
  %v3181 = vpop.f32.mrf.mxu0
  %v3182 = vadd.f32 0.0, %v3181
  %3183 = vdwg.mxu0
  %3184 = vmatprep.subr.mxu0 0.0
  %3185 = vmatpush1.msra.mxu0 %v2103
  %3186 = vmatprep.subr.mxu0 0.0
  %3187 = vmatpush1.msra.mxu0 %v2100
  %3188 = vmatprep.subr.mxu0 0.0
  %3189 = vmatpush1.msra.mxu0 %v2097
  %3190 = vmatprep.subr.mxu0 0.0
  %3191 = vmatpush1.msra.mxu0 %v2094
  %3192 = vmatprep.subr.mxu0 0.0
  %3193 = vmatpush1.msra.mxu0 %v2091
  %3194 = vmatprep.subr.mxu0 0.0
  %3195 = vmatpush1.msra.mxu0 %v2088
  %3196 = vmatprep.subr.mxu0 0.0
  %3197 = vmatpush1.msra.mxu0 %v2085
  %3198 = vmatprep.subr.mxu0 0.0
  %3199 = vmatpush1.msra.mxu0 %v2082
  %3200 = vmatprep.subr.mxu0 0.0
  %3201 = vmatpush1.msra.mxu0 %v2079
  %3202 = vmatprep.subr.mxu0 0.0
  %3203 = vmatpush1.msra.mxu0 %v2076
  %3204 = vmatprep.subr.mxu0 0.0
  %3205 = vmatpush1.msra.mxu0 %v2073
  %3206 = vmatprep.subr.mxu0 0.0
  %3207 = vmatpush1.msra.mxu0 %v2070
  %3208 = vmatprep.subr.mxu0 0.0
  %3209 = vmatpush1.msra.mxu0 %v2067
  %3210 = vmatprep.subr.mxu0 0.0
  %3211 = vmatpush1.msra.mxu0 %v2064
  %3212 = vmatprep.subr.mxu0 0.0
  %3213 = vmatpush1.msra.mxu0 %v2061
  %3214 = vmatprep.subr.mxu0 0.0
  %3215 = vmatpush1.msra.mxu0 %v2058
  %3216 = vmatprep.subr.mxu0 0.0
  %3217 = vmatpush2.msra.mxu0 0.0
  %3218 = vmatprep.subr.mxu0 0.0
  %3219 = vmatpush2.msra.mxu0 0.0
  %3220 = vmatprep.subr.mxu0 0.0
  %3221 = vmatpush2.msra.mxu0 0.0
  %3222 = vmatprep.subr.mxu0 0.0
  %3223 = vmatpush2.msra.mxu0 0.0
  %3224 = vmatprep.subr.mxu0 0.0
  %3225 = vmatpush2.msra.mxu0 0.0
  %3226 = vmatprep.subr.mxu0 0.0
  %3227 = vmatpush2.msra.mxu0 0.0
  %3228 = vmatprep.subr.mxu0 0.0
  %3229 = vmatpush2.msra.mxu0 0.0
  %3230 = vmatprep.subr.mxu0 0.0
  %3231 = vmatpush2.msra.mxu0 0.0
  %3232 = vmatprep.subr.mxu0 0.0
  %3233 = vmatpush2.msra.mxu0 0.0
  %3234 = vmatprep.subr.mxu0 0.0
  %3235 = vmatpush2.msra.mxu0 0.0
  %3236 = vmatprep.subr.mxu0 0.0
  %3237 = vmatpush2.msra.mxu0 0.0
  %3238 = vmatprep.subr.mxu0 0.0
  %3239 = vmatpush2.msra.mxu0 0.0
  %3240 = vmatprep.subr.mxu0 0.0
  %3241 = vmatpush2.msra.mxu0 0.0
  %3242 = vmatprep.subr.mxu0 0.0
  %3243 = vmatpush2.msra.mxu0 0.0
  %3244 = vmatprep.subr.mxu0 0.0
  %3245 = vmatpush2.msra.mxu0 0.0
  %3246 = vmatprep.subr.mxu0 0.0
  %3247 = vmatpush2.msra.mxu0 0.0
  %3248 = vmatprep.mubr.f32.mxu0 0.0
  %3249 = vmatmul.mubr.f32.gmra.mxu0 %v3111
  %v3250 = vpop.f32.mrf.mxu0
  %v3251 = vadd.f32 0.0, %v3250
  %v3252 = vpop.f32.mrf.mxu0
  %3253 = vdwg.mxu0
  %v3254 = vld [vmem:[#allocation2 + $0x90] sm:$0xff]
  %v3255 = vld [vmem:[#allocation2 + $0x98] sm:$0xff]
  %v3256 = vld [vmem:[#allocation2 + $0xa0] sm:$0xff]
  %v3257 = vadd.f32 %v3254, %v3180
  %v3258 = vxor.u32 %v3257, 2147483648
  %v3259 = vmul.f32 %v3258, 1.442695
  %v3260 = vpow.pop %v3259
  %v3261 = vadd.f32 %v3260, 1.0
  %v3262 = vrcp.pop %v3261
  %v3263 = vmul.f32 1.0, %v3262
  %v3264 = vadd.f32 %v3255, %v3182
  %v3265 = vxor.u32 %v3264, 2147483648
  %v3266 = vmul.f32 %v3265, 1.442695
  %v3267 = vpow.pop %v3266
  %v3268 = vadd.f32 %v3267, 1.0
  %v3269 = vrcp.pop %v3268
  %v3270 = vmul.f32 1.0, %v3269
  %v3271 = vadd.f32 %v3251, %v2267
  %v3272 = vmul.f32 %v3263, %v3271
  %v3273 = vadd.f32 %v3256, %v3272
  %v3274 = vtanh.pop %v3273
  %v3275 = vsub.f32 1.0, %v3270
  %v3276 = vmul.f32 %v3275, %v3274
  %v3277 = vmul.f32 %v3270, %v3111
  %v3278 = vadd.f32 %v3276, %v3277
  %3279 = vst [vmem:[%s9 + $0x30] sm:$0xff] %v3278
  %3280 = vmatprep.subr.mxu0 %v2102
  %3281 = vmatpush1.msra.mxu0 %v2101
  %3282 = vmatprep.subr.mxu0 %v2099
  %3283 = vmatpush1.msra.mxu0 %v2098
  %3284 = vmatprep.subr.mxu0 %v2096
  %3285 = vmatpush1.msra.mxu0 %v2095
  %3286 = vmatprep.subr.mxu0 %v2093
  %3287 = vmatpush1.msra.mxu0 %v2092
  %3288 = vmatprep.subr.mxu0 %v2090
  %3289 = vmatpush1.msra.mxu0 %v2089
  %3290 = vmatprep.subr.mxu0 %v2087
  %3291 = vmatpush1.msra.mxu0 %v2086
  %3292 = vmatprep.subr.mxu0 %v2084
  %3293 = vmatpush1.msra.mxu0 %v2083
  %3294 = vmatprep.subr.mxu0 %v2081
  %3295 = vmatpush1.msra.mxu0 %v2080
  %3296 = vmatprep.subr.mxu0 %v2078
  %3297 = vmatpush1.msra.mxu0 %v2077
  %3298 = vmatprep.subr.mxu0 %v2075
  %3299 = vmatpush1.msra.mxu0 %v2074
  %3300 = vmatprep.subr.mxu0 %v2072
  %3301 = vmatpush1.msra.mxu0 %v2071
  %3302 = vmatprep.subr.mxu0 %v2069
  %3303 = vmatpush1.msra.mxu0 %v2068
  %3304 = vmatprep.subr.mxu0 %v2066
  %3305 = vmatpush1.msra.mxu0 %v2065
  %3306 = vmatprep.subr.mxu0 %v2063
  %3307 = vmatpush1.msra.mxu0 %v2062
  %3308 = vmatprep.subr.mxu0 %v2060
  %3309 = vmatpush1.msra.mxu0 %v2059
  %3310 = vmatprep.subr.mxu0 %v2057
  %3311 = vmatpush1.msra.mxu0 %v2056
  %3312 = vmatprep.subr.mxu0 0.0
  %3313 = vmatpush2.msra.mxu0 0.0
  %3314 = vmatprep.subr.mxu0 0.0
  %3315 = vmatpush2.msra.mxu0 0.0
  %3316 = vmatprep.subr.mxu0 0.0
  %3317 = vmatpush2.msra.mxu0 0.0
  %3318 = vmatprep.subr.mxu0 0.0
  %3319 = vmatpush2.msra.mxu0 0.0
  %3320 = vmatprep.subr.mxu0 0.0
  %3321 = vmatpush2.msra.mxu0 0.0
  %3322 = vmatprep.subr.mxu0 0.0
  %3323 = vmatpush2.msra.mxu0 0.0
  %3324 = vmatprep.subr.mxu0 0.0
  %3325 = vmatpush2.msra.mxu0 0.0
  %3326 = vmatprep.subr.mxu0 0.0
  %3327 = vmatpush2.msra.mxu0 0.0
  %3328 = vmatprep.subr.mxu0 0.0
  %3329 = vmatpush2.msra.mxu0 0.0
  %3330 = vmatprep.subr.mxu0 0.0
  %3331 = vmatpush2.msra.mxu0 0.0
  %3332 = vmatprep.subr.mxu0 0.0
  %3333 = vmatpush2.msra.mxu0 0.0
  %3334 = vmatprep.subr.mxu0 0.0
  %3335 = vmatpush2.msra.mxu0 0.0
  %3336 = vmatprep.subr.mxu0 0.0
  %3337 = vmatpush2.msra.mxu0 0.0
  %3338 = vmatprep.subr.mxu0 0.0
  %3339 = vmatpush2.msra.mxu0 0.0
  %3340 = vmatprep.subr.mxu0 0.0
  %3341 = vmatpush2.msra.mxu0 0.0
  %3342 = vmatprep.subr.mxu0 0.0
  %3343 = vmatpush2.msra.mxu0 0.0
  %3344 = vmatprep.mubr.f32.mxu0 0.0
  %3345 = vmatmul.mubr.f32.gmra.mxu0 %v3278
  %v3346 = vpop.f32.mrf.mxu0
  %v3347 = vadd.f32 0.0, %v3346
  %v3348 = vpop.f32.mrf.mxu0
  %v3349 = vadd.f32 0.0, %v3348
  %3350 = vdwg.mxu0
  %3351 = vmatprep.subr.mxu0 0.0
  %3352 = vmatpush1.msra.mxu0 %v2103
  %3353 = vmatprep.subr.mxu0 0.0
  %3354 = vmatpush1.msra.mxu0 %v2100
  %3355 = vmatprep.subr.mxu0 0.0
  %3356 = vmatpush1.msra.mxu0 %v2097
  %3357 = vmatprep.subr.mxu0 0.0
  %3358 = vmatpush1.msra.mxu0 %v2094
  %3359 = vmatprep.subr.mxu0 0.0
  %3360 = vmatpush1.msra.mxu0 %v2091
  %3361 = vmatprep.subr.mxu0 0.0
  %3362 = vmatpush1.msra.mxu0 %v2088
  %3363 = vmatprep.subr.mxu0 0.0
  %3364 = vmatpush1.msra.mxu0 %v2085
  %3365 = vmatprep.subr.mxu0 0.0
  %3366 = vmatpush1.msra.mxu0 %v2082
  %3367 = vmatprep.subr.mxu0 0.0
  %3368 = vmatpush1.msra.mxu0 %v2079
  %3369 = vmatprep.subr.mxu0 0.0
  %3370 = vmatpush1.msra.mxu0 %v2076
  %3371 = vmatprep.subr.mxu0 0.0
  %3372 = vmatpush1.msra.mxu0 %v2073
  %3373 = vmatprep.subr.mxu0 0.0
  %3374 = vmatpush1.msra.mxu0 %v2070
  %3375 = vmatprep.subr.mxu0 0.0
  %3376 = vmatpush1.msra.mxu0 %v2067
  %3377 = vmatprep.subr.mxu0 0.0
  %3378 = vmatpush1.msra.mxu0 %v2064
  %3379 = vmatprep.subr.mxu0 0.0
  %3380 = vmatpush1.msra.mxu0 %v2061
  %3381 = vmatprep.subr.mxu0 0.0
  %3382 = vmatpush1.msra.mxu0 %v2058
  %3383 = vmatprep.subr.mxu0 0.0
  %3384 = vmatpush2.msra.mxu0 0.0
  %3385 = vmatprep.subr.mxu0 0.0
  %3386 = vmatpush2.msra.mxu0 0.0
  %3387 = vmatprep.subr.mxu0 0.0
  %3388 = vmatpush2.msra.mxu0 0.0
  %3389 = vmatprep.subr.mxu0 0.0
  %3390 = vmatpush2.msra.mxu0 0.0
  %3391 = vmatprep.subr.mxu0 0.0
  %3392 = vmatpush2.msra.mxu0 0.0
  %3393 = vmatprep.subr.mxu0 0.0
  %3394 = vmatpush2.msra.mxu0 0.0
  %3395 = vmatprep.subr.mxu0 0.0
  %3396 = vmatpush2.msra.mxu0 0.0
  %3397 = vmatprep.subr.mxu0 0.0
  %3398 = vmatpush2.msra.mxu0 0.0
  %3399 = vmatprep.subr.mxu0 0.0
  %3400 = vmatpush2.msra.mxu0 0.0
  %3401 = vmatprep.subr.mxu0 0.0
  %3402 = vmatpush2.msra.mxu0 0.0
  %3403 = vmatprep.subr.mxu0 0.0
  %3404 = vmatpush2.msra.mxu0 0.0
  %3405 = vmatprep.subr.mxu0 0.0
  %3406 = vmatpush2.msra.mxu0 0.0
  %3407 = vmatprep.subr.mxu0 0.0
  %3408 = vmatpush2.msra.mxu0 0.0
  %3409 = vmatprep.subr.mxu0 0.0
  %3410 = vmatpush2.msra.mxu0 0.0
  %3411 = vmatprep.subr.mxu0 0.0
  %3412 = vmatpush2.msra.mxu0 0.0
  %3413 = vmatprep.subr.mxu0 0.0
  %3414 = vmatpush2.msra.mxu0 0.0
  %3415 = vmatprep.mubr.f32.mxu0 0.0
  %3416 = vmatmul.mubr.f32.gmra.mxu0 %v3278
  %v3417 = vpop.f32.mrf.mxu0
  %v3418 = vadd.f32 0.0, %v3417
  %v3419 = vpop.f32.mrf.mxu0
  %3420 = vdwg.mxu0
  %v3421 = vld [vmem:[#allocation2 + $0xa8] sm:$0xff]
  %v3422 = vld [vmem:[#allocation2 + $0xb0] sm:$0xff]
  %v3423 = vld [vmem:[#allocation2 + $0xb8] sm:$0xff]
  %v3424 = vadd.f32 %v3421, %v3347
  %v3425 = vxor.u32 %v3424, 2147483648
  %v3426 = vmul.f32 %v3425, 1.442695
  %v3427 = vpow.pop %v3426
  %v3428 = vadd.f32 %v3427, 1.0
  %v3429 = vrcp.pop %v3428
  %v3430 = vmul.f32 1.0, %v3429
  %v3431 = vadd.f32 %v3422, %v3349
  %v3432 = vxor.u32 %v3431, 2147483648
  %v3433 = vmul.f32 %v3432, 1.442695
  %v3434 = vpow.pop %v3433
  %v3435 = vadd.f32 %v3434, 1.0
  %v3436 = vrcp.pop %v3435
  %v3437 = vmul.f32 1.0, %v3436
  %v3438 = vadd.f32 %v3418, %v2267
  %v3439 = vmul.f32 %v3430, %v3438
  %v3440 = vadd.f32 %v3423, %v3439
  %v3441 = vtanh.pop %v3440
  %v3442 = vsub.f32 1.0, %v3437
  %v3443 = vmul.f32 %v3442, %v3441
  %v3444 = vmul.f32 %v3437, %v3278
  %v3445 = vadd.f32 %v3443, %v3444
  %3446 = vst [vmem:[%s9 + $0x38] sm:$0xff] %v3445
  %s3447 = scalar_lea.vmem %s10, 8
  %3448 = vst [vmem:[%s3447] sm:$0xff] %v3445
  // Predicated region
  $region38: #{temporal_net_forward.1} parent=0 // pred_check
    _
  $region39: #{temporal_net_forward.1} parent=0 // pred_check_branch
    %3450 = sbr.rel (0) target = $region41
  $region40: #{temporal_net_forward.1} parent=0 // pred_region
    _
  $region41: #{temporal_net_forward.1} parent=0 // pred_fallthru
    _
  // Predicated region
  $region42: #{temporal_net_forward.1} parent=0 // pred_check
    _
  $region43: #{temporal_net_forward.1} parent=0 // pred_check_branch
    %3452 = sbr.rel (0) target = $region45
  $region44: #{temporal_net_forward.1} parent=0 // pred_region
    _
  $region45: #{temporal_net_forward.1} parent=0 // pred_fallthru
    _
  // Predicated region
  $region46: #{temporal_net_forward.1} parent=0 // pred_check
    _
  $region47: #{temporal_net_forward.1} parent=0 // pred_check_branch
    %3454 = sbr.rel (0) target = $region49
  $region48: #{temporal_net_forward.1} parent=0 // pred_region
    _
  $region49: #{temporal_net_forward.1} parent=0 // pred_fallthru
    _
  // Predicated region
  $region50: #{temporal_net_forward.1} parent=0 // pred_check
    _
  $region51: #{temporal_net_forward.1} parent=0 // pred_check_branch
    %3456 = sbr.rel (0) target = $region53
  $region52: #{temporal_net_forward.1} parent=0 // pred_region
    _
  $region53: #{temporal_net_forward.1} parent=0 // pred_fallthru
    _

</llo_original>
